<compile_context>
chip_gen: v7x
topology: tpu7x:2x2x1
jax: 0.10.0
libtpu: 0.0.40
codegen_flags: <defaults>
</compile_context>

<pallas_src>
import jax
import jax.numpy as jnp
from jax.experimental import pallas as pl
from jax.experimental.pallas import tpu as pltpu

IN_FEATURES = 5632
HIDDEN = 256


def _domain_classifier_kernel(x_ref, w_ref, b_ref, o_ref):
    """Fused fc1 (bf16 MXU, f32 accumulate) + bias + ReLU + log_softmax(dim=1)."""
    # MXU matmul: bf16 x bf16 inputs, f32 accumulation.
    h = jnp.dot(x_ref[...], w_ref[...], preferred_element_type=jnp.float32)
    # bias + ReLU (f32 on the VPU)
    h = jnp.maximum(h + b_ref[...], 0.0)
    # TODO(synk): F.dropout with training=True would need an in-kernel PRNG mask
    # (pltpu.prng_seed + pltpu.prng_random_bits); eval-mode identity implemented.
    # Numerically-stable log_softmax over dim=1 (the 256 hidden features).
    m = jnp.max(h, axis=1, keepdims=True)
    s = h - m
    lse = jnp.log(jnp.sum(jnp.exp(s), axis=1, keepdims=True))
    o_ref[...] = (s - lse).astype(o_ref.dtype)


def domain_classifier_forward(x, w, b):
    """x: [B, 5632], w: [5632, 256] (= PyTorch fc1.weight.T), b: [1, 256].

    Returns [B, 256] f32 log-probabilities. x / w are streamed as bf16 (in a
    real model store w as bf16 to avoid the per-call cast); accumulation and
    the epilogue are f32.
    """
    B, K = x.shape
    assert K == IN_FEATURES
    N = w.shape[1]

    x_bf16 = x.astype(jnp.bfloat16)
    w_bf16 = w.astype(jnp.bfloat16)
    b_f32 = b.astype(jnp.float32)

    return pl.pallas_call(
        _domain_classifier_kernel,
        out_shape=jax.ShapeDtypeStruct((B, N), jnp.float32),
        grid_spec=pltpu.PrefetchScalarGridSpec(
            num_scalar_prefetch=0,
            grid=(1,),  # single K step: nothing worth pipelining at this size
            in_specs=[
                pl.BlockSpec((B, K), lambda k: (0, 0)),    # x (bf16, ~90 KB)
                pl.BlockSpec((K, N), lambda k: (0, 0),     # W (bf16, 2.88 MB)
                             pipeline_mode=pl.Buffered(1)),
                pl.BlockSpec((1, N), lambda k: (0, 0)),    # bias (f32, resident)
            ],
            out_specs=pl.BlockSpec((B, N), lambda k: (0, 0)),
        ),
        compiler_params=pltpu.CompilerParams(
            dimension_semantics=("arbitrary",),
        ),
    )(x_bf16, w_bf16, b_f32)


def reference_forward(x, w, b):
    # Apply the same bf16 weight/activation quantization as the kernel,
    # then an exact f32 matmul, so the check validates the kernel itself.
    xb = x.astype(jnp.bfloat16).astype(jnp.float32)
    wb = w.astype(jnp.bfloat16).astype(jnp.float32)
    h = jnp.dot(xb, wb, precision=jax.lax.Precision.HIGHEST) + b
    h = jnp.maximum(h, 0.0)
    return jax.nn.log_softmax(h, axis=1)


if __name__ == "__main__":
    key = jax.random.PRNGKey(0)
    kx, kw, kb = jax.random.split(key, 3)

    B = 8  # small batch (exactly one (8, 128) sublane tile)
    # Deterministic synthetic parameters (shapes from nn.Linear(5632, 256)).
    # Stored transposed relative to PyTorch: W [in, out], b [1, out].
    bound = 1.0 / (IN_FEATURES ** 0.5)
    w1 = jax.random.uniform(kw, (IN_FEATURES, HIDDEN), jnp.float32, -bound, bound)
    b1 = jax.random.uniform(kb, (1, HIDDEN), jnp.float32, -bound, bound)
    # (fc2 weights exist in __init__ but are unused in forward; not materialized.)

    x = jax.random.normal(kx, (B, IN_FEATURES), jnp.float32)

    out = domain_classifier_forward(x, w1, b1)
    out = jax.block_until_ready(out)

    ref = reference_forward(x, w1, b1)
    assert out.shape == (B, HIDDEN)
    assert bool(jnp.allclose(out, ref, atol=2e-3, rtol=2e-3)), (
        f"max abs err {jnp.max(jnp.abs(out - ref))}"
    )
    print("KERNEL_OK")
</pallas_src>

<mosaic_0001>
module attributes {stable_mosaic.version = 11 : i64} {
  func.func @_domain_classifier_kernel(%arg0: i32, %arg1: memref<8x5632xbf16, #tpu.memory_space<vmem>>, %arg2: memref<5632x256xbf16, #tpu.memory_space<vmem>>, %arg3: memref<1x256xf32, #tpu.memory_space<vmem>>, %arg4: memref<8x256xf32, #tpu.memory_space<vmem>>) attributes {dimension_semantics = [#tpu.dimension_semantics<arbitrary>], iteration_bounds = array<i64: 1>, scalar_prefetch = 0 : i64, scratch_operands = 0 : i64, tpu.core_type = #tpu.core_type<tc>, window_params = [{pipeline_mode = #tpu.pipeline_mode<synchronous>, transform_indices = @transform_0, window_bounds = array<i64: 8, 5632>}, {pipeline_mode = #tpu.pipeline_mode<synchronous>, transform_indices = @transform_1, window_bounds = array<i64: 5632, 256>}, {pipeline_mode = #tpu.pipeline_mode<synchronous>, transform_indices = @transform_2, window_bounds = array<i64: 1, 256>}, {pipeline_mode = #tpu.pipeline_mode<synchronous>, transform_indices = @transform_3, window_bounds = array<i64: 8, 256>}]} {
    %c0 = arith.constant 0 : index
    %c0_0 = arith.constant 0 : index
    %0 = vector.load %arg1[%c0, %c0_0] : memref<8x5632xbf16, #tpu.memory_space<vmem>>, vector<8x5632xbf16>
    %c0_1 = arith.constant 0 : index
    %c0_2 = arith.constant 0 : index
    %1 = vector.load %arg2[%c0_1, %c0_2] : memref<5632x256xbf16, #tpu.memory_space<vmem>>, vector<5632x256xbf16>
    %cst = arith.constant dense<0.000000e+00> : vector<8x256xf32>
    %2 = tpu.matmul %0, %1, %cst {dimension_numbers = #tpu.dot_dimension_numbers<[1], [0], [0], [1], [0, 0, 1, 1], [], []>} : vector<8x5632xbf16>, vector<5632x256xbf16>, vector<8x256xf32> -> vector<8x256xf32>
    %c0_3 = arith.constant 0 : index
    %c0_4 = arith.constant 0 : index
    %3 = vector.load %arg3[%c0_3, %c0_4] : memref<1x256xf32, #tpu.memory_space<vmem>>, vector<1x256xf32>
    %4 = vector.broadcast %3 : vector<1x256xf32> to vector<8x256xf32>
    %5 = arith.addf %2, %4 : vector<8x256xf32>
    %cst_5 = arith.constant 0.000000e+00 : f32
    %6 = vector.broadcast %cst_5 : f32 to vector<8x256xf32>
    %7 = arith.maximumf %5, %6 : vector<8x256xf32>
    %cst_6 = arith.constant dense<0xFF800000> : vector<8xf32>
    %8 = vector.multi_reduction <maximumf>, %7, %cst_6 [1] : vector<8x256xf32> to vector<8xf32>
    %9 = vector.shape_cast %8 : vector<8xf32> to vector<8x1xf32>
    %10 = vector.broadcast %9 : vector<8x1xf32> to vector<8x256xf32>
    %11 = arith.subf %7, %10 : vector<8x256xf32>
    %12 = math.exp %11 : vector<8x256xf32>
    %cst_7 = arith.constant dense<0.000000e+00> : vector<8xf32>
    %13 = vector.multi_reduction <add>, %12, %cst_7 [1] : vector<8x256xf32> to vector<8xf32>
    %14 = vector.shape_cast %13 : vector<8xf32> to vector<8x1xf32>
    %15 = math.log %14 : vector<8x1xf32>
    %16 = vector.broadcast %15 : vector<8x1xf32> to vector<8x256xf32>
    %17 = arith.subf %11, %16 : vector<8x256xf32>
    %c0_8 = arith.constant 0 : index
    %c0_9 = arith.constant 0 : index
    %18 = vector.load %arg4[%c0_8, %c0_9] : memref<8x256xf32, #tpu.memory_space<vmem>>, vector<8x256xf32>
    tpu.vector_store %arg4[%c0_8, %c0_9], %17 {strides = array<i32>} : memref<8x256xf32, #tpu.memory_space<vmem>>, vector<8x256xf32>,
    return
  }
  func.func @transform_0(%arg0: i32) -> (i32, i32) {
    %c0_i32 = arith.constant 0 : i32
    %c0_i32_0 = arith.constant 0 : i32
    %c0_i32_1 = arith.constant 0 : i32
    return %c0_i32, %c0_i32_0 : i32, i32
  }
  func.func @transform_1(%arg0: i32) -> (i32, i32) {
    %c0_i32 = arith.constant 0 : i32
    %c0_i32_0 = arith.constant 0 : i32
    %c0_i32_1 = arith.constant 0 : i32
    return %c0_i32, %c0_i32_0 : i32, i32
  }
  func.func @transform_2(%arg0: i32) -> (i32, i32) {
    %c0_i32 = arith.constant 0 : i32
    %c0_i32_0 = arith.constant 0 : i32
    %c0_i32_1 = arith.constant 0 : i32
    return %c0_i32, %c0_i32_0 : i32, i32
  }
  func.func @transform_3(%arg0: i32) -> (i32, i32) {
    %c0_i32 = arith.constant 0 : i32
    %c0_i32_0 = arith.constant 0 : i32
    %c0_i32_1 = arith.constant 0 : i32
    return %c0_i32, %c0_i32_0 : i32, i32
  }
}

</mosaic_0001>

<llo_original>
// kernel: tpu_custom_call.1
$region0: #{tpu_custom_call.1}
  #allocation0 [shape = 'u32[]', space=smem, size = 0x4, offset = 0x4, fixed_abs, tag = 'smem constant byte address 0x4 - core index']
  #allocation1 [shape = 'u32[144,128]{1,0:T(1,128)}', space=vmem, size = 0x12000, scoped, tag = 'internal scratch']
  %s0 = inlined_call_operand.hbm [shape: bf16[8,5632], index: 0, kind: input, shape index: {}]
  %s1 = inlined_call_operand.hbm [shape: bf16[5632,256], index: 1, kind: input, shape index: {}]
  %s2 = inlined_call_operand.hbm [shape: f32[1,256], index: 2, kind: input, shape index: {}]
  %s3 = inlined_call_operand.hbm [shape: f32[8,256], index: 3, kind: output, shape index: {}]
  %s4 = sld [smem:[#allocation0]]
  $region34: #{tpu_custom_call.1} parent=0
    _
  %s6 = ssub.s32 1, %s4
  %s7 = scalar_select 0, %s6, %s4
  $region1: #{tpu_custom_call.1} parent=0
    #allocation2 [shape = 'u8[90112]{0}', space=vmem, size = 0x16000, scoped, tag = 'input window, operand 0, single buffered']
    #allocation3 [shape = 's32[1]{0}', space=sflag, size = 0x4, scoped, tag = 'scoped memory for tpu_custom_call.1']
    #allocation4 [shape = 's32[1]{0}', space=sflag, size = 0x4, scoped, tag = 'scoped memory for tpu_custom_call.1']
    #allocation5 [shape = 'u8[2883584]{0}', space=vmem, size = 0x2c0000, scoped, tag = 'input window, operand 1, single buffered']
    #allocation6 [shape = 's32[1]{0}', space=sflag, size = 0x4, scoped, tag = 'scoped memory for tpu_custom_call.1']
    #allocation7 [shape = 'u8[1024]{0}', space=vmem, size = 0x400, scoped, tag = 'input window, operand 2, single buffered']
    #allocation8 [shape = 'u8[8192]{0}', space=vmem, size = 0x2000, scoped, tag = 'output window, operand 0, single buffered']
    %8 = vsyncpa [#allocation3], 0
    %9 = vsyncpa [#allocation6], 0
    %10 = vsyncpa [#allocation4], 0
    // Predicated region
    $region2: #{tpu_custom_call.1} parent=1 // pred_check
      _
    $region3: #{tpu_custom_call.1} parent=1 // pred_check_branch
      %12 = sbr.rel (0) target = $region5
    $region4: #{tpu_custom_call.1} parent=1 // pred_region
      %s14 = ssub.s32 2816, 2816
      %15 = vsyncadd [#allocation3], %s14
      %s17 = sshll.u32 [#allocation2], 4
      %s18 = int_to_ptr.vmem [resolvable:$true] %s17
      %20 = dma.hbm_to_vmem [thread:$0]  %s0, 2816, %s18, [#allocation3]
    $region5: #{tpu_custom_call.1} parent=1 // pred_fallthru
      _
    // Predicated region
    $region6: #{tpu_custom_call.1} parent=1 // pred_check
      _
    $region7: #{tpu_custom_call.1} parent=1 // pred_check_branch
      %22 = sbr.rel (0) target = $region9
    $region8: #{tpu_custom_call.1} parent=1 // pred_region
      %s24 = ssub.s32 90112, 90112
      %25 = vsyncadd [#allocation6], %s24
      %s26 = sshll.u32 [#allocation5], 4
      %s27 = int_to_ptr.vmem [resolvable:$true] %s26
      %32 = dma.hbm_to_vmem [thread:$0]  %s1, 90112, %s27, [#allocation6], 128, 128, 8
    $region9: #{tpu_custom_call.1} parent=1 // pred_fallthru
      _
    // Predicated region
    $region10: #{tpu_custom_call.1} parent=1 // pred_check
      _
    $region11: #{tpu_custom_call.1} parent=1 // pred_check_branch
      %34 = sbr.rel (0) target = $region13
    $region12: #{tpu_custom_call.1} parent=1 // pred_region
      %s36 = ssub.s32 32, 32
      %37 = vsyncadd [#allocation6], %s36
      %s39 = sshll.u32 [#allocation7], 4
      %s40 = int_to_ptr.vmem [resolvable:$true] %s39
      %42 = dma.hbm_to_vmem [thread:$0]  %s2, 32, %s40, [#allocation6]
    $region13: #{tpu_custom_call.1} parent=1 // pred_fallthru
      _
    // Predicated region
    $region14: #{tpu_custom_call.1} parent=1 // pred_check
      _
    $region15: #{tpu_custom_call.1} parent=1 // pred_check_branch
      %44 = sbr.rel (0) target = $region17
    $region16: #{tpu_custom_call.1} parent=1 // pred_region
      %45 = dma.done [#allocation3], 2816
    $region17: #{tpu_custom_call.1} parent=1 // pred_fallthru
      _
    // Predicated region
    $region18: #{tpu_custom_call.1} parent=1 // pred_check
      _
    $region19: #{tpu_custom_call.1} parent=1 // pred_check_branch
      %47 = sbr.rel (0) target = $region21
    $region20: #{tpu_custom_call.1} parent=1 // pred_region
      %48 = dma.done [#allocation6], 90112
    $region21: #{tpu_custom_call.1} parent=1 // pred_fallthru
      _
    // Predicated region
    $region22: #{tpu_custom_call.1} parent=1 // pred_check
      _
    $region23: #{tpu_custom_call.1} parent=1 // pred_check_branch
      %50 = sbr.rel (0) target = $region25
    $region24: #{tpu_custom_call.1} parent=1 // pred_region
      %51 = dma.done [#allocation6], 32
    $region25: #{tpu_custom_call.1} parent=1 // pred_fallthru
      _
    %v52 = vld [vmem:[#allocation2] sm:$0xff]
    %v53 = vld [vmem:[#allocation2 + $0x8] sm:$0xff]
    %v54 = vld [vmem:[#allocation2 + $0x10] sm:$0xff]
    %v55 = vld [vmem:[#allocation2 + $0x18] sm:$0xff]
    %v56 = vld [vmem:[#allocation2 + $0x20] sm:$0xff]
    %v57 = vld [vmem:[#allocation2 + $0x28] sm:$0xff]
    %v58 = vld [vmem:[#allocation2 + $0x30] sm:$0xff]
    %v59 = vld [vmem:[#allocation2 + $0x38] sm:$0xff]
    %v60 = vld [vmem:[#allocation2 + $0x40] sm:$0xff]
    %v61 = vld [vmem:[#allocation2 + $0x48] sm:$0xff]
    %v62 = vld [vmem:[#allocation2 + $0x50] sm:$0xff]
    %v63 = vld [vmem:[#allocation2 + $0x58] sm:$0xff]
    %v64 = vld [vmem:[#allocation2 + $0x60] sm:$0xff]
    %v65 = vld [vmem:[#allocation2 + $0x68] sm:$0xff]
    %v66 = vld [vmem:[#allocation2 + $0x70] sm:$0xff]
    %v67 = vld [vmem:[#allocation2 + $0x78] sm:$0xff]
    %v68 = vld [vmem:[#allocation2 + $0x80] sm:$0xff]
    %v69 = vld [vmem:[#allocation2 + $0x88] sm:$0xff]
    %v70 = vld [vmem:[#allocation2 + $0x90] sm:$0xff]
    %v71 = vld [vmem:[#allocation2 + $0x98] sm:$0xff]
    %v72 = vld [vmem:[#allocation2 + $0xa0] sm:$0xff]
    %v73 = vld [vmem:[#allocation2 + $0xa8] sm:$0xff]
    %v74 = vld [vmem:[#allocation5] sm:$0xff]
    %v75 = vld [vmem:[#allocation5 + $0x8] sm:$0xff]
    %v76 = vld [vmem:[#allocation5 + $0x10] sm:$0xff]
    %v77 = vld [vmem:[#allocation5 + $0x18] sm:$0xff]
    %v78 = vld [vmem:[#allocation5 + $0x20] sm:$0xff]
    %v79 = vld [vmem:[#allocation5 + $0x28] sm:$0xff]
    %v80 = vld [vmem:[#allocation5 + $0x30] sm:$0xff]
    %v81 = vld [vmem:[#allocation5 + $0x38] sm:$0xff]
    %v82 = vld [vmem:[#allocation5 + $0x40] sm:$0xff]
    %v83 = vld [vmem:[#allocation5 + $0x48] sm:$0xff]
    %v84 = vld [vmem:[#allocation5 + $0x50] sm:$0xff]
    %v85 = vld [vmem:[#allocation5 + $0x58] sm:$0xff]
    %v86 = vld [vmem:[#allocation5 + $0x60] sm:$0xff]
    %v87 = vld [vmem:[#allocation5 + $0x68] sm:$0xff]
    %v88 = vld [vmem:[#allocation5 + $0x70] sm:$0xff]
    %v89 = vld [vmem:[#allocation5 + $0x78] sm:$0xff]
    %v90 = vld [vmem:[#allocation5 + $0x80] sm:$0xff]
    %v91 = vld [vmem:[#allocation5 + $0x88] sm:$0xff]
    %v92 = vld [vmem:[#allocation5 + $0x90] sm:$0xff]
    %v93 = vld [vmem:[#allocation5 + $0x98] sm:$0xff]
    %v94 = vld [vmem:[#allocation5 + $0xa0] sm:$0xff]
    %v95 = vld [vmem:[#allocation5 + $0xa8] sm:$0xff]
    %v96 = vld [vmem:[#allocation5 + $0xb0] sm:$0xff]
    %v97 = vld [vmem:[#allocation5 + $0xb8] sm:$0xff]
    %v98 = vld [vmem:[#allocation5 + $0xc0] sm:$0xff]
    %v99 = vld [vmem:[#allocation5 + $0xc8] sm:$0xff]
    %v100 = vld [vmem:[#allocation5 + $0xd0] sm:$0xff]
    %v101 = vld [vmem:[#allocation5 + $0xd8] sm:$0xff]
    %v102 = vld [vmem:[#allocation5 + $0xe0] sm:$0xff]
    %v103 = vld [vmem:[#allocation5 + $0xe8] sm:$0xff]
    %v104 = vld [vmem:[#allocation5 + $0xf0] sm:$0xff]
    %v105 = vld [vmem:[#allocation5 + $0xf8] sm:$0xff]
    %v106 = vld [vmem:[#allocation5 + $0x100] sm:$0xff]
    %v107 = vld [vmem:[#allocation5 + $0x108] sm:$0xff]
    %v108 = vld [vmem:[#allocation5 + $0x110] sm:$0xff]
    %v109 = vld [vmem:[#allocation5 + $0x118] sm:$0xff]
    %v110 = vld [vmem:[#allocation5 + $0x120] sm:$0xff]
    %v111 = vld [vmem:[#allocation5 + $0x128] sm:$0xff]
    %v112 = vld [vmem:[#allocation5 + $0x130] sm:$0xff]
    %v113 = vld [vmem:[#allocation5 + $0x138] sm:$0xff]
    %v114 = vld [vmem:[#allocation5 + $0x140] sm:$0xff]
    %v115 = vld [vmem:[#allocation5 + $0x148] sm:$0xff]
    %v116 = vld [vmem:[#allocation5 + $0x150] sm:$0xff]
    %v117 = vld [vmem:[#allocation5 + $0x158] sm:$0xff]
    %v118 = vld [vmem:[#allocation5 + $0x160] sm:$0xff]
    %v119 = vld [vmem:[#allocation5 + $0x168] sm:$0xff]
    %v120 = vld [vmem:[#allocation5 + $0x170] sm:$0xff]
    %v121 = vld [vmem:[#allocation5 + $0x178] sm:$0xff]
    %v122 = vld [vmem:[#allocation5 + $0x180] sm:$0xff]
    %v123 = vld [vmem:[#allocation5 + $0x188] sm:$0xff]
    %v124 = vld [vmem:[#allocation5 + $0x190] sm:$0xff]
    %v125 = vld [vmem:[#allocation5 + $0x198] sm:$0xff]
    %v126 = vld [vmem:[#allocation5 + $0x1a0] sm:$0xff]
    %v127 = vld [vmem:[#allocation5 + $0x1a8] sm:$0xff]
    %v128 = vld [vmem:[#allocation5 + $0x1b0] sm:$0xff]
    %v129 = vld [vmem:[#allocation5 + $0x1b8] sm:$0xff]
    %v130 = vld [vmem:[#allocation5 + $0x1c0] sm:$0xff]
    %v131 = vld [vmem:[#allocation5 + $0x1c8] sm:$0xff]
    %v132 = vld [vmem:[#allocation5 + $0x1d0] sm:$0xff]
    %v133 = vld [vmem:[#allocation5 + $0x1d8] sm:$0xff]
    %v134 = vld [vmem:[#allocation5 + $0x1e0] sm:$0xff]
    %v135 = vld [vmem:[#allocation5 + $0x1e8] sm:$0xff]
    %v136 = vld [vmem:[#allocation5 + $0x1f0] sm:$0xff]
    %v137 = vld [vmem:[#allocation5 + $0x1f8] sm:$0xff]
    %v138 = vld [vmem:[#allocation5 + $0x200] sm:$0xff]
    %v139 = vld [vmem:[#allocation5 + $0x208] sm:$0xff]
    %v140 = vld [vmem:[#allocation5 + $0x210] sm:$0xff]
    %v141 = vld [vmem:[#allocation5 + $0x218] sm:$0xff]
    %v142 = vld [vmem:[#allocation5 + $0x220] sm:$0xff]
    %v143 = vld [vmem:[#allocation5 + $0x228] sm:$0xff]
    %v144 = vld [vmem:[#allocation5 + $0x230] sm:$0xff]
    %v145 = vld [vmem:[#allocation5 + $0x238] sm:$0xff]
    %v146 = vld [vmem:[#allocation5 + $0x240] sm:$0xff]
    %v147 = vld [vmem:[#allocation5 + $0x248] sm:$0xff]
    %v148 = vld [vmem:[#allocation5 + $0x250] sm:$0xff]
    %v149 = vld [vmem:[#allocation5 + $0x258] sm:$0xff]
    %v150 = vld [vmem:[#allocation5 + $0x260] sm:$0xff]
    %v151 = vld [vmem:[#allocation5 + $0x268] sm:$0xff]
    %v152 = vld [vmem:[#allocation5 + $0x270] sm:$0xff]
    %v153 = vld [vmem:[#allocation5 + $0x278] sm:$0xff]
    %v154 = vld [vmem:[#allocation5 + $0x280] sm:$0xff]
    %v155 = vld [vmem:[#allocation5 + $0x288] sm:$0xff]
    %v156 = vld [vmem:[#allocation5 + $0x290] sm:$0xff]
    %v157 = vld [vmem:[#allocation5 + $0x298] sm:$0xff]
    %v158 = vld [vmem:[#allocation5 + $0x2a0] sm:$0xff]
    %v159 = vld [vmem:[#allocation5 + $0x2a8] sm:$0xff]
    %v160 = vld [vmem:[#allocation5 + $0x2b0] sm:$0xff]
    %v161 = vld [vmem:[#allocation5 + $0x2b8] sm:$0xff]
    %v162 = vld [vmem:[#allocation5 + $0x2c0] sm:$0xff]
    %v163 = vld [vmem:[#allocation5 + $0x2c8] sm:$0xff]
    %v164 = vld [vmem:[#allocation5 + $0x2d0] sm:$0xff]
    %v165 = vld [vmem:[#allocation5 + $0x2d8] sm:$0xff]
    %v166 = vld [vmem:[#allocation5 + $0x2e0] sm:$0xff]
    %v167 = vld [vmem:[#allocation5 + $0x2e8] sm:$0xff]
    %v168 = vld [vmem:[#allocation5 + $0x2f0] sm:$0xff]
    %v169 = vld [vmem:[#allocation5 + $0x2f8] sm:$0xff]
    %v170 = vld [vmem:[#allocation5 + $0x300] sm:$0xff]
    %v171 = vld [vmem:[#allocation5 + $0x308] sm:$0xff]
    %v172 = vld [vmem:[#allocation5 + $0x310] sm:$0xff]
    %v173 = vld [vmem:[#allocation5 + $0x318] sm:$0xff]
    %v174 = vld [vmem:[#allocation5 + $0x320] sm:$0xff]
    %v175 = vld [vmem:[#allocation5 + $0x328] sm:$0xff]
    %v176 = vld [vmem:[#allocation5 + $0x330] sm:$0xff]
    %v177 = vld [vmem:[#allocation5 + $0x338] sm:$0xff]
    %v178 = vld [vmem:[#allocation5 + $0x340] sm:$0xff]
    %v179 = vld [vmem:[#allocation5 + $0x348] sm:$0xff]
    %v180 = vld [vmem:[#allocation5 + $0x350] sm:$0xff]
    %v181 = vld [vmem:[#allocation5 + $0x358] sm:$0xff]
    %v182 = vld [vmem:[#allocation5 + $0x360] sm:$0xff]
    %v183 = vld [vmem:[#allocation5 + $0x368] sm:$0xff]
    %v184 = vld [vmem:[#allocation5 + $0x370] sm:$0xff]
    %v185 = vld [vmem:[#allocation5 + $0x378] sm:$0xff]
    %v186 = vld [vmem:[#allocation5 + $0x380] sm:$0xff]
    %v187 = vld [vmem:[#allocation5 + $0x388] sm:$0xff]
    %v188 = vld [vmem:[#allocation5 + $0x390] sm:$0xff]
    %v189 = vld [vmem:[#allocation5 + $0x398] sm:$0xff]
    %v190 = vld [vmem:[#allocation5 + $0x3a0] sm:$0xff]
    %v191 = vld [vmem:[#allocation5 + $0x3a8] sm:$0xff]
    %v192 = vld [vmem:[#allocation5 + $0x3b0] sm:$0xff]
    %v193 = vld [vmem:[#allocation5 + $0x3b8] sm:$0xff]
    %v194 = vld [vmem:[#allocation5 + $0x3c0] sm:$0xff]
    %v195 = vld [vmem:[#allocation5 + $0x3c8] sm:$0xff]
    %v196 = vld [vmem:[#allocation5 + $0x3d0] sm:$0xff]
    %v197 = vld [vmem:[#allocation5 + $0x3d8] sm:$0xff]
    %v198 = vld [vmem:[#allocation5 + $0x3e0] sm:$0xff]
    %v199 = vld [vmem:[#allocation5 + $0x3e8] sm:$0xff]
    %v200 = vld [vmem:[#allocation5 + $0x3f0] sm:$0xff]
    %v201 = vld [vmem:[#allocation5 + $0x3f8] sm:$0xff]
    %v202 = vld [vmem:[#allocation5 + $0x400] sm:$0xff]
    %v203 = vld [vmem:[#allocation5 + $0x408] sm:$0xff]
    %v204 = vld [vmem:[#allocation5 + $0x410] sm:$0xff]
    %v205 = vld [vmem:[#allocation5 + $0x418] sm:$0xff]
    %v206 = vld [vmem:[#allocation5 + $0x420] sm:$0xff]
    %v207 = vld [vmem:[#allocation5 + $0x428] sm:$0xff]
    %v208 = vld [vmem:[#allocation5 + $0x430] sm:$0xff]
    %v209 = vld [vmem:[#allocation5 + $0x438] sm:$0xff]
    %v210 = vld [vmem:[#allocation5 + $0x440] sm:$0xff]
    %v211 = vld [vmem:[#allocation5 + $0x448] sm:$0xff]
    %v212 = vld [vmem:[#allocation5 + $0x450] sm:$0xff]
    %v213 = vld [vmem:[#allocation5 + $0x458] sm:$0xff]
    %v214 = vld [vmem:[#allocation5 + $0x460] sm:$0xff]
    %v215 = vld [vmem:[#allocation5 + $0x468] sm:$0xff]
    %v216 = vld [vmem:[#allocation5 + $0x470] sm:$0xff]
    %v217 = vld [vmem:[#allocation5 + $0x478] sm:$0xff]
    %v218 = vld [vmem:[#allocation5 + $0x480] sm:$0xff]
    %v219 = vld [vmem:[#allocation5 + $0x488] sm:$0xff]
    %v220 = vld [vmem:[#allocation5 + $0x490] sm:$0xff]
    %v221 = vld [vmem:[#allocation5 + $0x498] sm:$0xff]
    %v222 = vld [vmem:[#allocation5 + $0x4a0] sm:$0xff]
    %v223 = vld [vmem:[#allocation5 + $0x4a8] sm:$0xff]
    %v224 = vld [vmem:[#allocation5 + $0x4b0] sm:$0xff]
    %v225 = vld [vmem:[#allocation5 + $0x4b8] sm:$0xff]
    %v226 = vld [vmem:[#allocation5 + $0x4c0] sm:$0xff]
    %v227 = vld [vmem:[#allocation5 + $0x4c8] sm:$0xff]
    %v228 = vld [vmem:[#allocation5 + $0x4d0] sm:$0xff]
    %v229 = vld [vmem:[#allocation5 + $0x4d8] sm:$0xff]
    %v230 = vld [vmem:[#allocation5 + $0x4e0] sm:$0xff]
    %v231 = vld [vmem:[#allocation5 + $0x4e8] sm:$0xff]
    %v232 = vld [vmem:[#allocation5 + $0x4f0] sm:$0xff]
    %v233 = vld [vmem:[#allocation5 + $0x4f8] sm:$0xff]
    %v234 = vld [vmem:[#allocation5 + $0x500] sm:$0xff]
    %v235 = vld [vmem:[#allocation5 + $0x508] sm:$0xff]
    %v236 = vld [vmem:[#allocation5 + $0x510] sm:$0xff]
    %v237 = vld [vmem:[#allocation5 + $0x518] sm:$0xff]
    %v238 = vld [vmem:[#allocation5 + $0x520] sm:$0xff]
    %v239 = vld [vmem:[#allocation5 + $0x528] sm:$0xff]
    %v240 = vld [vmem:[#allocation5 + $0x530] sm:$0xff]
    %v241 = vld [vmem:[#allocation5 + $0x538] sm:$0xff]
    %v242 = vld [vmem:[#allocation5 + $0x540] sm:$0xff]
    %v243 = vld [vmem:[#allocation5 + $0x548] sm:$0xff]
    %v244 = vld [vmem:[#allocation5 + $0x550] sm:$0xff]
    %v245 = vld [vmem:[#allocation5 + $0x558] sm:$0xff]
    %v246 = vld [vmem:[#allocation5 + $0x560] sm:$0xff]
    %v247 = vld [vmem:[#allocation5 + $0x568] sm:$0xff]
    %v248 = vld [vmem:[#allocation5 + $0x570] sm:$0xff]
    %v249 = vld [vmem:[#allocation5 + $0x578] sm:$0xff]
    %v250 = vld [vmem:[#allocation5 + $0x580] sm:$0xff]
    %v251 = vld [vmem:[#allocation5 + $0x588] sm:$0xff]
    %v252 = vld [vmem:[#allocation5 + $0x590] sm:$0xff]
    %v253 = vld [vmem:[#allocation5 + $0x598] sm:$0xff]
    %v254 = vld [vmem:[#allocation5 + $0x5a0] sm:$0xff]
    %v255 = vld [vmem:[#allocation5 + $0x5a8] sm:$0xff]
    %v256 = vld [vmem:[#allocation5 + $0x5b0] sm:$0xff]
    %v257 = vld [vmem:[#allocation5 + $0x5b8] sm:$0xff]
    %v258 = vld [vmem:[#allocation5 + $0x5c0] sm:$0xff]
    %v259 = vld [vmem:[#allocation5 + $0x5c8] sm:$0xff]
    %v260 = vld [vmem:[#allocation5 + $0x5d0] sm:$0xff]
    %v261 = vld [vmem:[#allocation5 + $0x5d8] sm:$0xff]
    %v262 = vld [vmem:[#allocation5 + $0x5e0] sm:$0xff]
    %v263 = vld [vmem:[#allocation5 + $0x5e8] sm:$0xff]
    %v264 = vld [vmem:[#allocation5 + $0x5f0] sm:$0xff]
    %v265 = vld [vmem:[#allocation5 + $0x5f8] sm:$0xff]
    %v266 = vld [vmem:[#allocation5 + $0x600] sm:$0xff]
    %v267 = vld [vmem:[#allocation5 + $0x608] sm:$0xff]
    %v268 = vld [vmem:[#allocation5 + $0x610] sm:$0xff]
    %v269 = vld [vmem:[#allocation5 + $0x618] sm:$0xff]
    %v270 = vld [vmem:[#allocation5 + $0x620] sm:$0xff]
    %v271 = vld [vmem:[#allocation5 + $0x628] sm:$0xff]
    %v272 = vld [vmem:[#allocation5 + $0x630] sm:$0xff]
    %v273 = vld [vmem:[#allocation5 + $0x638] sm:$0xff]
    %v274 = vld [vmem:[#allocation5 + $0x640] sm:$0xff]
    %v275 = vld [vmem:[#allocation5 + $0x648] sm:$0xff]
    %v276 = vld [vmem:[#allocation5 + $0x650] sm:$0xff]
    %v277 = vld [vmem:[#allocation5 + $0x658] sm:$0xff]
    %v278 = vld [vmem:[#allocation5 + $0x660] sm:$0xff]
    %v279 = vld [vmem:[#allocation5 + $0x668] sm:$0xff]
    %v280 = vld [vmem:[#allocation5 + $0x670] sm:$0xff]
    %v281 = vld [vmem:[#allocation5 + $0x678] sm:$0xff]
    %v282 = vld [vmem:[#allocation5 + $0x680] sm:$0xff]
    %v283 = vld [vmem:[#allocation5 + $0x688] sm:$0xff]
    %v284 = vld [vmem:[#allocation5 + $0x690] sm:$0xff]
    %v285 = vld [vmem:[#allocation5 + $0x698] sm:$0xff]
    %v286 = vld [vmem:[#allocation5 + $0x6a0] sm:$0xff]
    %v287 = vld [vmem:[#allocation5 + $0x6a8] sm:$0xff]
    %v288 = vld [vmem:[#allocation5 + $0x6b0] sm:$0xff]
    %v289 = vld [vmem:[#allocation5 + $0x6b8] sm:$0xff]
    %v290 = vld [vmem:[#allocation5 + $0x6c0] sm:$0xff]
    %v291 = vld [vmem:[#allocation5 + $0x6c8] sm:$0xff]
    %v292 = vld [vmem:[#allocation5 + $0x6d0] sm:$0xff]
    %v293 = vld [vmem:[#allocation5 + $0x6d8] sm:$0xff]
    %v294 = vld [vmem:[#allocation5 + $0x6e0] sm:$0xff]
    %v295 = vld [vmem:[#allocation5 + $0x6e8] sm:$0xff]
    %v296 = vld [vmem:[#allocation5 + $0x6f0] sm:$0xff]
    %v297 = vld [vmem:[#allocation5 + $0x6f8] sm:$0xff]
    %v298 = vld [vmem:[#allocation5 + $0x700] sm:$0xff]
    %v299 = vld [vmem:[#allocation5 + $0x708] sm:$0xff]
    %v300 = vld [vmem:[#allocation5 + $0x710] sm:$0xff]
    %v301 = vld [vmem:[#allocation5 + $0x718] sm:$0xff]
    %v302 = vld [vmem:[#allocation5 + $0x720] sm:$0xff]
    %v303 = vld [vmem:[#allocation5 + $0x728] sm:$0xff]
    %v304 = vld [vmem:[#allocation5 + $0x730] sm:$0xff]
    %v305 = vld [vmem:[#allocation5 + $0x738] sm:$0xff]
    %v306 = vld [vmem:[#allocation5 + $0x740] sm:$0xff]
    %v307 = vld [vmem:[#allocation5 + $0x748] sm:$0xff]
    %v308 = vld [vmem:[#allocation5 + $0x750] sm:$0xff]
    %v309 = vld [vmem:[#allocation5 + $0x758] sm:$0xff]
    %v310 = vld [vmem:[#allocation5 + $0x760] sm:$0xff]
    %v311 = vld [vmem:[#allocation5 + $0x768] sm:$0xff]
    %v312 = vld [vmem:[#allocation5 + $0x770] sm:$0xff]
    %v313 = vld [vmem:[#allocation5 + $0x778] sm:$0xff]
    %v314 = vld [vmem:[#allocation5 + $0x780] sm:$0xff]
    %v315 = vld [vmem:[#allocation5 + $0x788] sm:$0xff]
    %v316 = vld [vmem:[#allocation5 + $0x790] sm:$0xff]
    %v317 = vld [vmem:[#allocation5 + $0x798] sm:$0xff]
    %v318 = vld [vmem:[#allocation5 + $0x7a0] sm:$0xff]
    %v319 = vld [vmem:[#allocation5 + $0x7a8] sm:$0xff]
    %v320 = vld [vmem:[#allocation5 + $0x7b0] sm:$0xff]
    %v321 = vld [vmem:[#allocation5 + $0x7b8] sm:$0xff]
    %v322 = vld [vmem:[#allocation5 + $0x7c0] sm:$0xff]
    %v323 = vld [vmem:[#allocation5 + $0x7c8] sm:$0xff]
    %v324 = vld [vmem:[#allocation5 + $0x7d0] sm:$0xff]
    %v325 = vld [vmem:[#allocation5 + $0x7d8] sm:$0xff]
    %v326 = vld [vmem:[#allocation5 + $0x7e0] sm:$0xff]
    %v327 = vld [vmem:[#allocation5 + $0x7e8] sm:$0xff]
    %v328 = vld [vmem:[#allocation5 + $0x7f0] sm:$0xff]
    %v329 = vld [vmem:[#allocation5 + $0x7f8] sm:$0xff]
    %v330 = vld [vmem:[#allocation5 + $0x800] sm:$0xff]
    %v331 = vld [vmem:[#allocation5 + $0x808] sm:$0xff]
    %v332 = vld [vmem:[#allocation5 + $0x810] sm:$0xff]
    %v333 = vld [vmem:[#allocation5 + $0x818] sm:$0xff]
    %v334 = vld [vmem:[#allocation5 + $0x820] sm:$0xff]
    %v335 = vld [vmem:[#allocation5 + $0x828] sm:$0xff]
    %v336 = vld [vmem:[#allocation5 + $0x830] sm:$0xff]
    %v337 = vld [vmem:[#allocation5 + $0x838] sm:$0xff]
    %v338 = vld [vmem:[#allocation5 + $0x840] sm:$0xff]
    %v339 = vld [vmem:[#allocation5 + $0x848] sm:$0xff]
    %v340 = vld [vmem:[#allocation5 + $0x850] sm:$0xff]
    %v341 = vld [vmem:[#allocation5 + $0x858] sm:$0xff]
    %v342 = vld [vmem:[#allocation5 + $0x860] sm:$0xff]
    %v343 = vld [vmem:[#allocation5 + $0x868] sm:$0xff]
    %v344 = vld [vmem:[#allocation5 + $0x870] sm:$0xff]
    %v345 = vld [vmem:[#allocation5 + $0x878] sm:$0xff]
    %v346 = vld [vmem:[#allocation5 + $0x880] sm:$0xff]
    %v347 = vld [vmem:[#allocation5 + $0x888] sm:$0xff]
    %v348 = vld [vmem:[#allocation5 + $0x890] sm:$0xff]
    %v349 = vld [vmem:[#allocation5 + $0x898] sm:$0xff]
    %v350 = vld [vmem:[#allocation5 + $0x8a0] sm:$0xff]
    %v351 = vld [vmem:[#allocation5 + $0x8a8] sm:$0xff]
    %v352 = vld [vmem:[#allocation5 + $0x8b0] sm:$0xff]
    %v353 = vld [vmem:[#allocation5 + $0x8b8] sm:$0xff]
    %v354 = vld [vmem:[#allocation5 + $0x8c0] sm:$0xff]
    %v355 = vld [vmem:[#allocation5 + $0x8c8] sm:$0xff]
    %v356 = vld [vmem:[#allocation5 + $0x8d0] sm:$0xff]
    %v357 = vld [vmem:[#allocation5 + $0x8d8] sm:$0xff]
    %v358 = vld [vmem:[#allocation5 + $0x8e0] sm:$0xff]
    %v359 = vld [vmem:[#allocation5 + $0x8e8] sm:$0xff]
    %v360 = vld [vmem:[#allocation5 + $0x8f0] sm:$0xff]
    %v361 = vld [vmem:[#allocation5 + $0x8f8] sm:$0xff]
    %v362 = vld [vmem:[#allocation5 + $0x900] sm:$0xff]
    %v363 = vld [vmem:[#allocation5 + $0x908] sm:$0xff]
    %v364 = vld [vmem:[#allocation5 + $0x910] sm:$0xff]
    %v365 = vld [vmem:[#allocation5 + $0x918] sm:$0xff]
    %v366 = vld [vmem:[#allocation5 + $0x920] sm:$0xff]
    %v367 = vld [vmem:[#allocation5 + $0x928] sm:$0xff]
    %v368 = vld [vmem:[#allocation5 + $0x930] sm:$0xff]
    %v369 = vld [vmem:[#allocation5 + $0x938] sm:$0xff]
    %v370 = vld [vmem:[#allocation5 + $0x940] sm:$0xff]
    %v371 = vld [vmem:[#allocation5 + $0x948] sm:$0xff]
    %v372 = vld [vmem:[#allocation5 + $0x950] sm:$0xff]
    %v373 = vld [vmem:[#allocation5 + $0x958] sm:$0xff]
    %v374 = vld [vmem:[#allocation5 + $0x960] sm:$0xff]
    %v375 = vld [vmem:[#allocation5 + $0x968] sm:$0xff]
    %v376 = vld [vmem:[#allocation5 + $0x970] sm:$0xff]
    %v377 = vld [vmem:[#allocation5 + $0x978] sm:$0xff]
    %v378 = vld [vmem:[#allocation5 + $0x980] sm:$0xff]
    %v379 = vld [vmem:[#allocation5 + $0x988] sm:$0xff]
    %v380 = vld [vmem:[#allocation5 + $0x990] sm:$0xff]
    %v381 = vld [vmem:[#allocation5 + $0x998] sm:$0xff]
    %v382 = vld [vmem:[#allocation5 + $0x9a0] sm:$0xff]
    %v383 = vld [vmem:[#allocation5 + $0x9a8] sm:$0xff]
    %v384 = vld [vmem:[#allocation5 + $0x9b0] sm:$0xff]
    %v385 = vld [vmem:[#allocation5 + $0x9b8] sm:$0xff]
    %v386 = vld [vmem:[#allocation5 + $0x9c0] sm:$0xff]
    %v387 = vld [vmem:[#allocation5 + $0x9c8] sm:$0xff]
    %v388 = vld [vmem:[#allocation5 + $0x9d0] sm:$0xff]
    %v389 = vld [vmem:[#allocation5 + $0x9d8] sm:$0xff]
    %v390 = vld [vmem:[#allocation5 + $0x9e0] sm:$0xff]
    %v391 = vld [vmem:[#allocation5 + $0x9e8] sm:$0xff]
    %v392 = vld [vmem:[#allocation5 + $0x9f0] sm:$0xff]
    %v393 = vld [vmem:[#allocation5 + $0x9f8] sm:$0xff]
    %v394 = vld [vmem:[#allocation5 + $0xa00] sm:$0xff]
    %v395 = vld [vmem:[#allocation5 + $0xa08] sm:$0xff]
    %v396 = vld [vmem:[#allocation5 + $0xa10] sm:$0xff]
    %v397 = vld [vmem:[#allocation5 + $0xa18] sm:$0xff]
    %v398 = vld [vmem:[#allocation5 + $0xa20] sm:$0xff]
    %v399 = vld [vmem:[#allocation5 + $0xa28] sm:$0xff]
    %v400 = vld [vmem:[#allocation5 + $0xa30] sm:$0xff]
    %v401 = vld [vmem:[#allocation5 + $0xa38] sm:$0xff]
    %v402 = vld [vmem:[#allocation5 + $0xa40] sm:$0xff]
    %v403 = vld [vmem:[#allocation5 + $0xa48] sm:$0xff]
    %v404 = vld [vmem:[#allocation5 + $0xa50] sm:$0xff]
    %v405 = vld [vmem:[#allocation5 + $0xa58] sm:$0xff]
    %v406 = vld [vmem:[#allocation5 + $0xa60] sm:$0xff]
    %v407 = vld [vmem:[#allocation5 + $0xa68] sm:$0xff]
    %v408 = vld [vmem:[#allocation5 + $0xa70] sm:$0xff]
    %v409 = vld [vmem:[#allocation5 + $0xa78] sm:$0xff]
    %v410 = vld [vmem:[#allocation5 + $0xa80] sm:$0xff]
    %v411 = vld [vmem:[#allocation5 + $0xa88] sm:$0xff]
    %v412 = vld [vmem:[#allocation5 + $0xa90] sm:$0xff]
    %v413 = vld [vmem:[#allocation5 + $0xa98] sm:$0xff]
    %v414 = vld [vmem:[#allocation5 + $0xaa0] sm:$0xff]
    %v415 = vld [vmem:[#allocation5 + $0xaa8] sm:$0xff]
    %v416 = vld [vmem:[#allocation5 + $0xab0] sm:$0xff]
    %v417 = vld [vmem:[#allocation5 + $0xab8] sm:$0xff]
    %v418 = vld [vmem:[#allocation5 + $0xac0] sm:$0xff]
    %v419 = vld [vmem:[#allocation5 + $0xac8] sm:$0xff]
    %v420 = vld [vmem:[#allocation5 + $0xad0] sm:$0xff]
    %v421 = vld [vmem:[#allocation5 + $0xad8] sm:$0xff]
    %v422 = vld [vmem:[#allocation5 + $0xae0] sm:$0xff]
    %v423 = vld [vmem:[#allocation5 + $0xae8] sm:$0xff]
    %v424 = vld [vmem:[#allocation5 + $0xaf0] sm:$0xff]
    %v425 = vld [vmem:[#allocation5 + $0xaf8] sm:$0xff]
    %v426 = vld [vmem:[#allocation5 + $0xb00] sm:$0xff]
    %v427 = vld [vmem:[#allocation5 + $0xb08] sm:$0xff]
    %v428 = vld [vmem:[#allocation5 + $0xb10] sm:$0xff]
    %v429 = vld [vmem:[#allocation5 + $0xb18] sm:$0xff]
    %v430 = vld [vmem:[#allocation5 + $0xb20] sm:$0xff]
    %v431 = vld [vmem:[#allocation5 + $0xb28] sm:$0xff]
    %v432 = vld [vmem:[#allocation5 + $0xb30] sm:$0xff]
    %v433 = vld [vmem:[#allocation5 + $0xb38] sm:$0xff]
    %v434 = vld [vmem:[#allocation5 + $0xb40] sm:$0xff]
    %v435 = vld [vmem:[#allocation5 + $0xb48] sm:$0xff]
    %v436 = vld [vmem:[#allocation5 + $0xb50] sm:$0xff]
    %v437 = vld [vmem:[#allocation5 + $0xb58] sm:$0xff]
    %v438 = vld [vmem:[#allocation5 + $0xb60] sm:$0xff]
    %v439 = vld [vmem:[#allocation5 + $0xb68] sm:$0xff]
    %v440 = vld [vmem:[#allocation5 + $0xb70] sm:$0xff]
    %v441 = vld [vmem:[#allocation5 + $0xb78] sm:$0xff]
    %v442 = vld [vmem:[#allocation5 + $0xb80] sm:$0xff]
    %v443 = vld [vmem:[#allocation5 + $0xb88] sm:$0xff]
    %v444 = vld [vmem:[#allocation5 + $0xb90] sm:$0xff]
    %v445 = vld [vmem:[#allocation5 + $0xb98] sm:$0xff]
    %v446 = vld [vmem:[#allocation5 + $0xba0] sm:$0xff]
    %v447 = vld [vmem:[#allocation5 + $0xba8] sm:$0xff]
    %v448 = vld [vmem:[#allocation5 + $0xbb0] sm:$0xff]
    %v449 = vld [vmem:[#allocation5 + $0xbb8] sm:$0xff]
    %v450 = vld [vmem:[#allocation5 + $0xbc0] sm:$0xff]
    %v451 = vld [vmem:[#allocation5 + $0xbc8] sm:$0xff]
    %v452 = vld [vmem:[#allocation5 + $0xbd0] sm:$0xff]
    %v453 = vld [vmem:[#allocation5 + $0xbd8] sm:$0xff]
    %v454 = vld [vmem:[#allocation5 + $0xbe0] sm:$0xff]
    %v455 = vld [vmem:[#allocation5 + $0xbe8] sm:$0xff]
    %v456 = vld [vmem:[#allocation5 + $0xbf0] sm:$0xff]
    %v457 = vld [vmem:[#allocation5 + $0xbf8] sm:$0xff]
    %v458 = vld [vmem:[#allocation5 + $0xc00] sm:$0xff]
    %v459 = vld [vmem:[#allocation5 + $0xc08] sm:$0xff]
    %v460 = vld [vmem:[#allocation5 + $0xc10] sm:$0xff]
    %v461 = vld [vmem:[#allocation5 + $0xc18] sm:$0xff]
    %v462 = vld [vmem:[#allocation5 + $0xc20] sm:$0xff]
    %v463 = vld [vmem:[#allocation5 + $0xc28] sm:$0xff]
    %v464 = vld [vmem:[#allocation5 + $0xc30] sm:$0xff]
    %v465 = vld [vmem:[#allocation5 + $0xc38] sm:$0xff]
    %v466 = vld [vmem:[#allocation5 + $0xc40] sm:$0xff]
    %v467 = vld [vmem:[#allocation5 + $0xc48] sm:$0xff]
    %v468 = vld [vmem:[#allocation5 + $0xc50] sm:$0xff]
    %v469 = vld [vmem:[#allocation5 + $0xc58] sm:$0xff]
    %v470 = vld [vmem:[#allocation5 + $0xc60] sm:$0xff]
    %v471 = vld [vmem:[#allocation5 + $0xc68] sm:$0xff]
    %v472 = vld [vmem:[#allocation5 + $0xc70] sm:$0xff]
    %v473 = vld [vmem:[#allocation5 + $0xc78] sm:$0xff]
    %v474 = vld [vmem:[#allocation5 + $0xc80] sm:$0xff]
    %v475 = vld [vmem:[#allocation5 + $0xc88] sm:$0xff]
    %v476 = vld [vmem:[#allocation5 + $0xc90] sm:$0xff]
    %v477 = vld [vmem:[#allocation5 + $0xc98] sm:$0xff]
    %v478 = vld [vmem:[#allocation5 + $0xca0] sm:$0xff]
    %v479 = vld [vmem:[#allocation5 + $0xca8] sm:$0xff]
    %v480 = vld [vmem:[#allocation5 + $0xcb0] sm:$0xff]
    %v481 = vld [vmem:[#allocation5 + $0xcb8] sm:$0xff]
    %v482 = vld [vmem:[#allocation5 + $0xcc0] sm:$0xff]
    %v483 = vld [vmem:[#allocation5 + $0xcc8] sm:$0xff]
    %v484 = vld [vmem:[#allocation5 + $0xcd0] sm:$0xff]
    %v485 = vld [vmem:[#allocation5 + $0xcd8] sm:$0xff]
    %v486 = vld [vmem:[#allocation5 + $0xce0] sm:$0xff]
    %v487 = vld [vmem:[#allocation5 + $0xce8] sm:$0xff]
    %v488 = vld [vmem:[#allocation5 + $0xcf0] sm:$0xff]
    %v489 = vld [vmem:[#allocation5 + $0xcf8] sm:$0xff]
    %v490 = vld [vmem:[#allocation5 + $0xd00] sm:$0xff]
    %v491 = vld [vmem:[#allocation5 + $0xd08] sm:$0xff]
    %v492 = vld [vmem:[#allocation5 + $0xd10] sm:$0xff]
    %v493 = vld [vmem:[#allocation5 + $0xd18] sm:$0xff]
    %v494 = vld [vmem:[#allocation5 + $0xd20] sm:$0xff]
    %v495 = vld [vmem:[#allocation5 + $0xd28] sm:$0xff]
    %v496 = vld [vmem:[#allocation5 + $0xd30] sm:$0xff]
    %v497 = vld [vmem:[#allocation5 + $0xd38] sm:$0xff]
    %v498 = vld [vmem:[#allocation5 + $0xd40] sm:$0xff]
    %v499 = vld [vmem:[#allocation5 + $0xd48] sm:$0xff]
    %v500 = vld [vmem:[#allocation5 + $0xd50] sm:$0xff]
    %v501 = vld [vmem:[#allocation5 + $0xd58] sm:$0xff]
    %v502 = vld [vmem:[#allocation5 + $0xd60] sm:$0xff]
    %v503 = vld [vmem:[#allocation5 + $0xd68] sm:$0xff]
    %v504 = vld [vmem:[#allocation5 + $0xd70] sm:$0xff]
    %v505 = vld [vmem:[#allocation5 + $0xd78] sm:$0xff]
    %v506 = vld [vmem:[#allocation5 + $0xd80] sm:$0xff]
    %v507 = vld [vmem:[#allocation5 + $0xd88] sm:$0xff]
    %v508 = vld [vmem:[#allocation5 + $0xd90] sm:$0xff]
    %v509 = vld [vmem:[#allocation5 + $0xd98] sm:$0xff]
    %v510 = vld [vmem:[#allocation5 + $0xda0] sm:$0xff]
    %v511 = vld [vmem:[#allocation5 + $0xda8] sm:$0xff]
    %v512 = vld [vmem:[#allocation5 + $0xdb0] sm:$0xff]
    %v513 = vld [vmem:[#allocation5 + $0xdb8] sm:$0xff]
    %v514 = vld [vmem:[#allocation5 + $0xdc0] sm:$0xff]
    %v515 = vld [vmem:[#allocation5 + $0xdc8] sm:$0xff]
    %v516 = vld [vmem:[#allocation5 + $0xdd0] sm:$0xff]
    %v517 = vld [vmem:[#allocation5 + $0xdd8] sm:$0xff]
    %v518 = vld [vmem:[#allocation5 + $0xde0] sm:$0xff]
    %v519 = vld [vmem:[#allocation5 + $0xde8] sm:$0xff]
    %v520 = vld [vmem:[#allocation5 + $0xdf0] sm:$0xff]
    %v521 = vld [vmem:[#allocation5 + $0xdf8] sm:$0xff]
    %v522 = vld [vmem:[#allocation5 + $0xe00] sm:$0xff]
    %v523 = vld [vmem:[#allocation5 + $0xe08] sm:$0xff]
    %v524 = vld [vmem:[#allocation5 + $0xe10] sm:$0xff]
    %v525 = vld [vmem:[#allocation5 + $0xe18] sm:$0xff]
    %v526 = vld [vmem:[#allocation5 + $0xe20] sm:$0xff]
    %v527 = vld [vmem:[#allocation5 + $0xe28] sm:$0xff]
    %v528 = vld [vmem:[#allocation5 + $0xe30] sm:$0xff]
    %v529 = vld [vmem:[#allocation5 + $0xe38] sm:$0xff]
    %v530 = vld [vmem:[#allocation5 + $0xe40] sm:$0xff]
    %v531 = vld [vmem:[#allocation5 + $0xe48] sm:$0xff]
    %v532 = vld [vmem:[#allocation5 + $0xe50] sm:$0xff]
    %v533 = vld [vmem:[#allocation5 + $0xe58] sm:$0xff]
    %v534 = vld [vmem:[#allocation5 + $0xe60] sm:$0xff]
    %v535 = vld [vmem:[#allocation5 + $0xe68] sm:$0xff]
    %v536 = vld [vmem:[#allocation5 + $0xe70] sm:$0xff]
    %v537 = vld [vmem:[#allocation5 + $0xe78] sm:$0xff]
    %v538 = vld [vmem:[#allocation5 + $0xe80] sm:$0xff]
    %v539 = vld [vmem:[#allocation5 + $0xe88] sm:$0xff]
    %v540 = vld [vmem:[#allocation5 + $0xe90] sm:$0xff]
    %v541 = vld [vmem:[#allocation5 + $0xe98] sm:$0xff]
    %v542 = vld [vmem:[#allocation5 + $0xea0] sm:$0xff]
    %v543 = vld [vmem:[#allocation5 + $0xea8] sm:$0xff]
    %v544 = vld [vmem:[#allocation5 + $0xeb0] sm:$0xff]
    %v545 = vld [vmem:[#allocation5 + $0xeb8] sm:$0xff]
    %v546 = vld [vmem:[#allocation5 + $0xec0] sm:$0xff]
    %v547 = vld [vmem:[#allocation5 + $0xec8] sm:$0xff]
    %v548 = vld [vmem:[#allocation5 + $0xed0] sm:$0xff]
    %v549 = vld [vmem:[#allocation5 + $0xed8] sm:$0xff]
    %v550 = vld [vmem:[#allocation5 + $0xee0] sm:$0xff]
    %v551 = vld [vmem:[#allocation5 + $0xee8] sm:$0xff]
    %v552 = vld [vmem:[#allocation5 + $0xef0] sm:$0xff]
    %v553 = vld [vmem:[#allocation5 + $0xef8] sm:$0xff]
    %v554 = vld [vmem:[#allocation5 + $0xf00] sm:$0xff]
    %v555 = vld [vmem:[#allocation5 + $0xf08] sm:$0xff]
    %v556 = vld [vmem:[#allocation5 + $0xf10] sm:$0xff]
    %v557 = vld [vmem:[#allocation5 + $0xf18] sm:$0xff]
    %v558 = vld [vmem:[#allocation5 + $0xf20] sm:$0xff]
    %v559 = vld [vmem:[#allocation5 + $0xf28] sm:$0xff]
    %v560 = vld [vmem:[#allocation5 + $0xf30] sm:$0xff]
    %v561 = vld [vmem:[#allocation5 + $0xf38] sm:$0xff]
    %v562 = vld [vmem:[#allocation5 + $0xf40] sm:$0xff]
    %v563 = vld [vmem:[#allocation5 + $0xf48] sm:$0xff]
    %v564 = vld [vmem:[#allocation5 + $0xf50] sm:$0xff]
    %v565 = vld [vmem:[#allocation5 + $0xf58] sm:$0xff]
    %v566 = vld [vmem:[#allocation5 + $0xf60] sm:$0xff]
    %v567 = vld [vmem:[#allocation5 + $0xf68] sm:$0xff]
    %v568 = vld [vmem:[#allocation5 + $0xf70] sm:$0xff]
    %v569 = vld [vmem:[#allocation5 + $0xf78] sm:$0xff]
    %v570 = vld [vmem:[#allocation5 + $0xf80] sm:$0xff]
    %v571 = vld [vmem:[#allocation5 + $0xf88] sm:$0xff]
    %v572 = vld [vmem:[#allocation5 + $0xf90] sm:$0xff]
    %v573 = vld [vmem:[#allocation5 + $0xf98] sm:$0xff]
    %v574 = vld [vmem:[#allocation5 + $0xfa0] sm:$0xff]
    %v575 = vld [vmem:[#allocation5 + $0xfa8] sm:$0xff]
    %v576 = vld [vmem:[#allocation5 + $0xfb0] sm:$0xff]
    %v577 = vld [vmem:[#allocation5 + $0xfb8] sm:$0xff]
    %v578 = vld [vmem:[#allocation5 + $0xfc0] sm:$0xff]
    %v579 = vld [vmem:[#allocation5 + $0xfc8] sm:$0xff]
    %v580 = vld [vmem:[#allocation5 + $0xfd0] sm:$0xff]
    %v581 = vld [vmem:[#allocation5 + $0xfd8] sm:$0xff]
    %v582 = vld [vmem:[#allocation5 + $0xfe0] sm:$0xff]
    %v583 = vld [vmem:[#allocation5 + $0xfe8] sm:$0xff]
    %v584 = vld [vmem:[#allocation5 + $0xff0] sm:$0xff]
    %v585 = vld [vmem:[#allocation5 + $0xff8] sm:$0xff]
    %v586 = vld [vmem:[#allocation5 + $0x1000] sm:$0xff]
    %v587 = vld [vmem:[#allocation5 + $0x1008] sm:$0xff]
    %v588 = vld [vmem:[#allocation5 + $0x1010] sm:$0xff]
    %v589 = vld [vmem:[#allocation5 + $0x1018] sm:$0xff]
    %v590 = vld [vmem:[#allocation5 + $0x1020] sm:$0xff]
    %v591 = vld [vmem:[#allocation5 + $0x1028] sm:$0xff]
    %v592 = vld [vmem:[#allocation5 + $0x1030] sm:$0xff]
    %v593 = vld [vmem:[#allocation5 + $0x1038] sm:$0xff]
    %v594 = vld [vmem:[#allocation5 + $0x1040] sm:$0xff]
    %v595 = vld [vmem:[#allocation5 + $0x1048] sm:$0xff]
    %v596 = vld [vmem:[#allocation5 + $0x1050] sm:$0xff]
    %v597 = vld [vmem:[#allocation5 + $0x1058] sm:$0xff]
    %v598 = vld [vmem:[#allocation5 + $0x1060] sm:$0xff]
    %v599 = vld [vmem:[#allocation5 + $0x1068] sm:$0xff]
    %v600 = vld [vmem:[#allocation5 + $0x1070] sm:$0xff]
    %v601 = vld [vmem:[#allocation5 + $0x1078] sm:$0xff]
    %v602 = vld [vmem:[#allocation5 + $0x1080] sm:$0xff]
    %v603 = vld [vmem:[#allocation5 + $0x1088] sm:$0xff]
    %v604 = vld [vmem:[#allocation5 + $0x1090] sm:$0xff]
    %v605 = vld [vmem:[#allocation5 + $0x1098] sm:$0xff]
    %v606 = vld [vmem:[#allocation5 + $0x10a0] sm:$0xff]
    %v607 = vld [vmem:[#allocation5 + $0x10a8] sm:$0xff]
    %v608 = vld [vmem:[#allocation5 + $0x10b0] sm:$0xff]
    %v609 = vld [vmem:[#allocation5 + $0x10b8] sm:$0xff]
    %v610 = vld [vmem:[#allocation5 + $0x10c0] sm:$0xff]
    %v611 = vld [vmem:[#allocation5 + $0x10c8] sm:$0xff]
    %v612 = vld [vmem:[#allocation5 + $0x10d0] sm:$0xff]
    %v613 = vld [vmem:[#allocation5 + $0x10d8] sm:$0xff]
    %v614 = vld [vmem:[#allocation5 + $0x10e0] sm:$0xff]
    %v615 = vld [vmem:[#allocation5 + $0x10e8] sm:$0xff]
    %v616 = vld [vmem:[#allocation5 + $0x10f0] sm:$0xff]
    %v617 = vld [vmem:[#allocation5 + $0x10f8] sm:$0xff]
    %v618 = vld [vmem:[#allocation5 + $0x1100] sm:$0xff]
    %v619 = vld [vmem:[#allocation5 + $0x1108] sm:$0xff]
    %v620 = vld [vmem:[#allocation5 + $0x1110] sm:$0xff]
    %v621 = vld [vmem:[#allocation5 + $0x1118] sm:$0xff]
    %v622 = vld [vmem:[#allocation5 + $0x1120] sm:$0xff]
    %v623 = vld [vmem:[#allocation5 + $0x1128] sm:$0xff]
    %v624 = vld [vmem:[#allocation5 + $0x1130] sm:$0xff]
    %v625 = vld [vmem:[#allocation5 + $0x1138] sm:$0xff]
    %v626 = vld [vmem:[#allocation5 + $0x1140] sm:$0xff]
    %v627 = vld [vmem:[#allocation5 + $0x1148] sm:$0xff]
    %v628 = vld [vmem:[#allocation5 + $0x1150] sm:$0xff]
    %v629 = vld [vmem:[#allocation5 + $0x1158] sm:$0xff]
    %v630 = vld [vmem:[#allocation5 + $0x1160] sm:$0xff]
    %v631 = vld [vmem:[#allocation5 + $0x1168] sm:$0xff]
    %v632 = vld [vmem:[#allocation5 + $0x1170] sm:$0xff]
    %v633 = vld [vmem:[#allocation5 + $0x1178] sm:$0xff]
    %v634 = vld [vmem:[#allocation5 + $0x1180] sm:$0xff]
    %v635 = vld [vmem:[#allocation5 + $0x1188] sm:$0xff]
    %v636 = vld [vmem:[#allocation5 + $0x1190] sm:$0xff]
    %v637 = vld [vmem:[#allocation5 + $0x1198] sm:$0xff]
    %v638 = vld [vmem:[#allocation5 + $0x11a0] sm:$0xff]
    %v639 = vld [vmem:[#allocation5 + $0x11a8] sm:$0xff]
    %v640 = vld [vmem:[#allocation5 + $0x11b0] sm:$0xff]
    %v641 = vld [vmem:[#allocation5 + $0x11b8] sm:$0xff]
    %v642 = vld [vmem:[#allocation5 + $0x11c0] sm:$0xff]
    %v643 = vld [vmem:[#allocation5 + $0x11c8] sm:$0xff]
    %v644 = vld [vmem:[#allocation5 + $0x11d0] sm:$0xff]
    %v645 = vld [vmem:[#allocation5 + $0x11d8] sm:$0xff]
    %v646 = vld [vmem:[#allocation5 + $0x11e0] sm:$0xff]
    %v647 = vld [vmem:[#allocation5 + $0x11e8] sm:$0xff]
    %v648 = vld [vmem:[#allocation5 + $0x11f0] sm:$0xff]
    %v649 = vld [vmem:[#allocation5 + $0x11f8] sm:$0xff]
    %v650 = vld [vmem:[#allocation5 + $0x1200] sm:$0xff]
    %v651 = vld [vmem:[#allocation5 + $0x1208] sm:$0xff]
    %v652 = vld [vmem:[#allocation5 + $0x1210] sm:$0xff]
    %v653 = vld [vmem:[#allocation5 + $0x1218] sm:$0xff]
    %v654 = vld [vmem:[#allocation5 + $0x1220] sm:$0xff]
    %v655 = vld [vmem:[#allocation5 + $0x1228] sm:$0xff]
    %v656 = vld [vmem:[#allocation5 + $0x1230] sm:$0xff]
    %v657 = vld [vmem:[#allocation5 + $0x1238] sm:$0xff]
    %v658 = vld [vmem:[#allocation5 + $0x1240] sm:$0xff]
    %v659 = vld [vmem:[#allocation5 + $0x1248] sm:$0xff]
    %v660 = vld [vmem:[#allocation5 + $0x1250] sm:$0xff]
    %v661 = vld [vmem:[#allocation5 + $0x1258] sm:$0xff]
    %v662 = vld [vmem:[#allocation5 + $0x1260] sm:$0xff]
    %v663 = vld [vmem:[#allocation5 + $0x1268] sm:$0xff]
    %v664 = vld [vmem:[#allocation5 + $0x1270] sm:$0xff]
    %v665 = vld [vmem:[#allocation5 + $0x1278] sm:$0xff]
    %v666 = vld [vmem:[#allocation5 + $0x1280] sm:$0xff]
    %v667 = vld [vmem:[#allocation5 + $0x1288] sm:$0xff]
    %v668 = vld [vmem:[#allocation5 + $0x1290] sm:$0xff]
    %v669 = vld [vmem:[#allocation5 + $0x1298] sm:$0xff]
    %v670 = vld [vmem:[#allocation5 + $0x12a0] sm:$0xff]
    %v671 = vld [vmem:[#allocation5 + $0x12a8] sm:$0xff]
    %v672 = vld [vmem:[#allocation5 + $0x12b0] sm:$0xff]
    %v673 = vld [vmem:[#allocation5 + $0x12b8] sm:$0xff]
    %v674 = vld [vmem:[#allocation5 + $0x12c0] sm:$0xff]
    %v675 = vld [vmem:[#allocation5 + $0x12c8] sm:$0xff]
    %v676 = vld [vmem:[#allocation5 + $0x12d0] sm:$0xff]
    %v677 = vld [vmem:[#allocation5 + $0x12d8] sm:$0xff]
    %v678 = vld [vmem:[#allocation5 + $0x12e0] sm:$0xff]
    %v679 = vld [vmem:[#allocation5 + $0x12e8] sm:$0xff]
    %v680 = vld [vmem:[#allocation5 + $0x12f0] sm:$0xff]
    %v681 = vld [vmem:[#allocation5 + $0x12f8] sm:$0xff]
    %v682 = vld [vmem:[#allocation5 + $0x1300] sm:$0xff]
    %v683 = vld [vmem:[#allocation5 + $0x1308] sm:$0xff]
    %v684 = vld [vmem:[#allocation5 + $0x1310] sm:$0xff]
    %v685 = vld [vmem:[#allocation5 + $0x1318] sm:$0xff]
    %v686 = vld [vmem:[#allocation5 + $0x1320] sm:$0xff]
    %v687 = vld [vmem:[#allocation5 + $0x1328] sm:$0xff]
    %v688 = vld [vmem:[#allocation5 + $0x1330] sm:$0xff]
    %v689 = vld [vmem:[#allocation5 + $0x1338] sm:$0xff]
    %v690 = vld [vmem:[#allocation5 + $0x1340] sm:$0xff]
    %v691 = vld [vmem:[#allocation5 + $0x1348] sm:$0xff]
    %v692 = vld [vmem:[#allocation5 + $0x1350] sm:$0xff]
    %v693 = vld [vmem:[#allocation5 + $0x1358] sm:$0xff]
    %v694 = vld [vmem:[#allocation5 + $0x1360] sm:$0xff]
    %v695 = vld [vmem:[#allocation5 + $0x1368] sm:$0xff]
    %v696 = vld [vmem:[#allocation5 + $0x1370] sm:$0xff]
    %v697 = vld [vmem:[#allocation5 + $0x1378] sm:$0xff]
    %v698 = vld [vmem:[#allocation5 + $0x1380] sm:$0xff]
    %v699 = vld [vmem:[#allocation5 + $0x1388] sm:$0xff]
    %v700 = vld [vmem:[#allocation5 + $0x1390] sm:$0xff]
    %v701 = vld [vmem:[#allocation5 + $0x1398] sm:$0xff]
    %v702 = vld [vmem:[#allocation5 + $0x13a0] sm:$0xff]
    %v703 = vld [vmem:[#allocation5 + $0x13a8] sm:$0xff]
    %v704 = vld [vmem:[#allocation5 + $0x13b0] sm:$0xff]
    %v705 = vld [vmem:[#allocation5 + $0x13b8] sm:$0xff]
    %v706 = vld [vmem:[#allocation5 + $0x13c0] sm:$0xff]
    %v707 = vld [vmem:[#allocation5 + $0x13c8] sm:$0xff]
    %v708 = vld [vmem:[#allocation5 + $0x13d0] sm:$0xff]
    %v709 = vld [vmem:[#allocation5 + $0x13d8] sm:$0xff]
    %v710 = vld [vmem:[#allocation5 + $0x13e0] sm:$0xff]
    %v711 = vld [vmem:[#allocation5 + $0x13e8] sm:$0xff]
    %v712 = vld [vmem:[#allocation5 + $0x13f0] sm:$0xff]
    %v713 = vld [vmem:[#allocation5 + $0x13f8] sm:$0xff]
    %v714 = vld [vmem:[#allocation5 + $0x1400] sm:$0xff]
    %v715 = vld [vmem:[#allocation5 + $0x1408] sm:$0xff]
    %v716 = vld [vmem:[#allocation5 + $0x1410] sm:$0xff]
    %v717 = vld [vmem:[#allocation5 + $0x1418] sm:$0xff]
    %v718 = vld [vmem:[#allocation5 + $0x1420] sm:$0xff]
    %v719 = vld [vmem:[#allocation5 + $0x1428] sm:$0xff]
    %v720 = vld [vmem:[#allocation5 + $0x1430] sm:$0xff]
    %v721 = vld [vmem:[#allocation5 + $0x1438] sm:$0xff]
    %v722 = vld [vmem:[#allocation5 + $0x1440] sm:$0xff]
    %v723 = vld [vmem:[#allocation5 + $0x1448] sm:$0xff]
    %v724 = vld [vmem:[#allocation5 + $0x1450] sm:$0xff]
    %v725 = vld [vmem:[#allocation5 + $0x1458] sm:$0xff]
    %v726 = vld [vmem:[#allocation5 + $0x1460] sm:$0xff]
    %v727 = vld [vmem:[#allocation5 + $0x1468] sm:$0xff]
    %v728 = vld [vmem:[#allocation5 + $0x1470] sm:$0xff]
    %v729 = vld [vmem:[#allocation5 + $0x1478] sm:$0xff]
    %v730 = vld [vmem:[#allocation5 + $0x1480] sm:$0xff]
    %v731 = vld [vmem:[#allocation5 + $0x1488] sm:$0xff]
    %v732 = vld [vmem:[#allocation5 + $0x1490] sm:$0xff]
    %v733 = vld [vmem:[#allocation5 + $0x1498] sm:$0xff]
    %v734 = vld [vmem:[#allocation5 + $0x14a0] sm:$0xff]
    %v735 = vld [vmem:[#allocation5 + $0x14a8] sm:$0xff]
    %v736 = vld [vmem:[#allocation5 + $0x14b0] sm:$0xff]
    %v737 = vld [vmem:[#allocation5 + $0x14b8] sm:$0xff]
    %v738 = vld [vmem:[#allocation5 + $0x14c0] sm:$0xff]
    %v739 = vld [vmem:[#allocation5 + $0x14c8] sm:$0xff]
    %v740 = vld [vmem:[#allocation5 + $0x14d0] sm:$0xff]
    %v741 = vld [vmem:[#allocation5 + $0x14d8] sm:$0xff]
    %v742 = vld [vmem:[#allocation5 + $0x14e0] sm:$0xff]
    %v743 = vld [vmem:[#allocation5 + $0x14e8] sm:$0xff]
    %v744 = vld [vmem:[#allocation5 + $0x14f0] sm:$0xff]
    %v745 = vld [vmem:[#allocation5 + $0x14f8] sm:$0xff]
    %v746 = vld [vmem:[#allocation5 + $0x1500] sm:$0xff]
    %v747 = vld [vmem:[#allocation5 + $0x1508] sm:$0xff]
    %v748 = vld [vmem:[#allocation5 + $0x1510] sm:$0xff]
    %v749 = vld [vmem:[#allocation5 + $0x1518] sm:$0xff]
    %v750 = vld [vmem:[#allocation5 + $0x1520] sm:$0xff]
    %v751 = vld [vmem:[#allocation5 + $0x1528] sm:$0xff]
    %v752 = vld [vmem:[#allocation5 + $0x1530] sm:$0xff]
    %v753 = vld [vmem:[#allocation5 + $0x1538] sm:$0xff]
    %v754 = vld [vmem:[#allocation5 + $0x1540] sm:$0xff]
    %v755 = vld [vmem:[#allocation5 + $0x1548] sm:$0xff]
    %v756 = vld [vmem:[#allocation5 + $0x1550] sm:$0xff]
    %v757 = vld [vmem:[#allocation5 + $0x1558] sm:$0xff]
    %v758 = vld [vmem:[#allocation5 + $0x1560] sm:$0xff]
    %v759 = vld [vmem:[#allocation5 + $0x1568] sm:$0xff]
    %v760 = vld [vmem:[#allocation5 + $0x1570] sm:$0xff]
    %v761 = vld [vmem:[#allocation5 + $0x1578] sm:$0xff]
    %v762 = vld [vmem:[#allocation5 + $0x1580] sm:$0xff]
    %v763 = vld [vmem:[#allocation5 + $0x1588] sm:$0xff]
    %v764 = vld [vmem:[#allocation5 + $0x1590] sm:$0xff]
    %v765 = vld [vmem:[#allocation5 + $0x1598] sm:$0xff]
    %v766 = vld [vmem:[#allocation5 + $0x15a0] sm:$0xff]
    %v767 = vld [vmem:[#allocation5 + $0x15a8] sm:$0xff]
    %v768 = vld [vmem:[#allocation5 + $0x15b0] sm:$0xff]
    %v769 = vld [vmem:[#allocation5 + $0x15b8] sm:$0xff]
    %v770 = vld [vmem:[#allocation5 + $0x15c0] sm:$0xff]
    %v771 = vld [vmem:[#allocation5 + $0x15c8] sm:$0xff]
    %v772 = vld [vmem:[#allocation5 + $0x15d0] sm:$0xff]
    %v773 = vld [vmem:[#allocation5 + $0x15d8] sm:$0xff]
    %v774 = vld [vmem:[#allocation5 + $0x15e0] sm:$0xff]
    %v775 = vld [vmem:[#allocation5 + $0x15e8] sm:$0xff]
    %v776 = vld [vmem:[#allocation5 + $0x15f0] sm:$0xff]
    %v777 = vld [vmem:[#allocation5 + $0x15f8] sm:$0xff]
    %v778 = vld [vmem:[#allocation7] sm:$0x3]
    %v780 = vlaneseq
    %v781 = vshrl.u32 %v780, 7
    %v782 = vsub.s32 0, %v781
    %v783 = vrot.slane %v778, %v782
    %v784 = vlaneseq
    %v785 = vshrl.u32 %v784, 7
    %v786 = vsub.s32 1, %v785
    %v787 = vrot.slane %v778, %v786
    %v812 = vunpack.c.l.b16 %v52
    %v813 = vunpack.c.h.b16 %v52
    %v814 = vunpack.c.l.b16 %v53
    %v815 = vunpack.c.h.b16 %v53
    %v816 = vunpack.c.l.b16 %v54
    %v817 = vunpack.c.h.b16 %v54
    %v818 = vunpack.c.l.b16 %v55
    %v819 = vunpack.c.h.b16 %v55
    %v820 = vunpack.c.l.b16 %v56
    %v821 = vunpack.c.h.b16 %v56
    %v822 = vunpack.c.l.b16 %v57
    %v823 = vunpack.c.h.b16 %v57
    %v824 = vunpack.c.l.b16 %v58
    %v825 = vunpack.c.h.b16 %v58
    %v826 = vunpack.c.l.b16 %v59
    %v827 = vunpack.c.h.b16 %v59
    %v828 = vunpack.c.l.b16 %v60
    %v829 = vunpack.c.h.b16 %v60
    %v830 = vunpack.c.l.b16 %v61
    %v831 = vunpack.c.h.b16 %v61
    %v832 = vunpack.c.l.b16 %v62
    %v833 = vunpack.c.h.b16 %v62
    %v834 = vunpack.c.l.b16 %v63
    %v835 = vunpack.c.h.b16 %v63
    %v836 = vunpack.c.l.b16 %v64
    %v837 = vunpack.c.h.b16 %v64
    %v838 = vunpack.c.l.b16 %v65
    %v839 = vunpack.c.h.b16 %v65
    %v840 = vunpack.c.l.b16 %v66
    %v841 = vunpack.c.h.b16 %v66
    %v842 = vunpack.c.l.b16 %v67
    %v843 = vunpack.c.h.b16 %v67
    %v844 = vunpack.c.l.b16 %v68
    %v845 = vunpack.c.h.b16 %v68
    %v846 = vunpack.c.l.b16 %v69
    %v847 = vunpack.c.h.b16 %v69
    %v848 = vunpack.c.l.b16 %v70
    %v849 = vunpack.c.h.b16 %v70
    %v850 = vunpack.c.l.b16 %v71
    %v851 = vunpack.c.h.b16 %v71
    %v852 = vunpack.c.l.b16 %v72
    %v853 = vunpack.c.h.b16 %v72
    %v854 = vunpack.c.l.b16 %v73
    %v855 = vunpack.c.h.b16 %v73
    %v856 = vpack.c.b16 %v812, %v812
    %v857 = vpack.c.b16 %v813, %v813
    %v858 = vpack.c.b16 %v814, %v814
    %v859 = vpack.c.b16 %v815, %v815
    %v860 = vpack.c.b16 %v816, %v816
    %v861 = vpack.c.b16 %v817, %v817
    %v862 = vpack.c.b16 %v818, %v818
    %v863 = vpack.c.b16 %v819, %v819
    %v864 = vpack.c.b16 %v820, %v820
    %v865 = vpack.c.b16 %v821, %v821
    %v866 = vpack.c.b16 %v822, %v822
    %v867 = vpack.c.b16 %v823, %v823
    %v868 = vpack.c.b16 %v824, %v824
    %v869 = vpack.c.b16 %v825, %v825
    %v870 = vpack.c.b16 %v826, %v826
    %v871 = vpack.c.b16 %v827, %v827
    %v872 = vpack.c.b16 %v828, %v828
    %v873 = vpack.c.b16 %v829, %v829
    %v874 = vpack.c.b16 %v830, %v830
    %v875 = vpack.c.b16 %v831, %v831
    %v876 = vpack.c.b16 %v832, %v832
    %v877 = vpack.c.b16 %v833, %v833
    %v878 = vpack.c.b16 %v834, %v834
    %v879 = vpack.c.b16 %v835, %v835
    %v880 = vpack.c.b16 %v836, %v836
    %v881 = vpack.c.b16 %v837, %v837
    %v882 = vpack.c.b16 %v838, %v838
    %v883 = vpack.c.b16 %v839, %v839
    %v884 = vpack.c.b16 %v840, %v840
    %v885 = vpack.c.b16 %v841, %v841
    %v886 = vpack.c.b16 %v842, %v842
    %v887 = vpack.c.b16 %v843, %v843
    %v888 = vpack.c.b16 %v844, %v844
    %v889 = vpack.c.b16 %v845, %v845
    %v890 = vpack.c.b16 %v846, %v846
    %v891 = vpack.c.b16 %v847, %v847
    %v892 = vpack.c.b16 %v848, %v848
    %v893 = vpack.c.b16 %v849, %v849
    %v894 = vpack.c.b16 %v850, %v850
    %v895 = vpack.c.b16 %v851, %v851
    %v896 = vpack.c.b16 %v852, %v852
    %v897 = vpack.c.b16 %v853, %v853
    %v898 = vpack.c.b16 %v854, %v854
    %v899 = vpack.c.b16 %v855, %v855
    %v1648 = vunpack.c.l.b16 %v74
    %v1649 = vunpack.c.h.b16 %v74
    %v1650 = vunpack.c.l.b16 %v75
    %v1651 = vunpack.c.h.b16 %v75
    %v1652 = vunpack.c.l.b16 %v76
    %v1653 = vunpack.c.h.b16 %v76
    %v1654 = vunpack.c.l.b16 %v77
    %v1655 = vunpack.c.h.b16 %v77
    %v1656 = vunpack.c.l.b16 %v78
    %v1657 = vunpack.c.h.b16 %v78
    %v1658 = vunpack.c.l.b16 %v79
    %v1659 = vunpack.c.h.b16 %v79
    %v1660 = vunpack.c.l.b16 %v80
    %v1661 = vunpack.c.h.b16 %v80
    %v1662 = vunpack.c.l.b16 %v81
    %v1663 = vunpack.c.h.b16 %v81
    %v1664 = vunpack.c.l.b16 %v82
    %v1665 = vunpack.c.h.b16 %v82
    %v1666 = vunpack.c.l.b16 %v83
    %v1667 = vunpack.c.h.b16 %v83
    %v1668 = vunpack.c.l.b16 %v84
    %v1669 = vunpack.c.h.b16 %v84
    %v1670 = vunpack.c.l.b16 %v85
    %v1671 = vunpack.c.h.b16 %v85
    %v1672 = vunpack.c.l.b16 %v86
    %v1673 = vunpack.c.h.b16 %v86
    %v1674 = vunpack.c.l.b16 %v87
    %v1675 = vunpack.c.h.b16 %v87
    %v1676 = vunpack.c.l.b16 %v88
    %v1677 = vunpack.c.h.b16 %v88
    %v1678 = vunpack.c.l.b16 %v89
    %v1679 = vunpack.c.h.b16 %v89
    %v1680 = vunpack.c.l.b16 %v90
    %v1681 = vunpack.c.h.b16 %v90
    %v1682 = vunpack.c.l.b16 %v91
    %v1683 = vunpack.c.h.b16 %v91
    %v1684 = vunpack.c.l.b16 %v92
    %v1685 = vunpack.c.h.b16 %v92
    %v1686 = vunpack.c.l.b16 %v93
    %v1687 = vunpack.c.h.b16 %v93
    %v1688 = vunpack.c.l.b16 %v94
    %v1689 = vunpack.c.h.b16 %v94
    %v1690 = vunpack.c.l.b16 %v95
    %v1691 = vunpack.c.h.b16 %v95
    %v1692 = vunpack.c.l.b16 %v96
    %v1693 = vunpack.c.h.b16 %v96
    %v1694 = vunpack.c.l.b16 %v97
    %v1695 = vunpack.c.h.b16 %v97
    %v1696 = vunpack.c.l.b16 %v98
    %v1697 = vunpack.c.h.b16 %v98
    %v1698 = vunpack.c.l.b16 %v99
    %v1699 = vunpack.c.h.b16 %v99
    %v1700 = vunpack.c.l.b16 %v100
    %v1701 = vunpack.c.h.b16 %v100
    %v1702 = vunpack.c.l.b16 %v101
    %v1703 = vunpack.c.h.b16 %v101
    %v1704 = vunpack.c.l.b16 %v102
    %v1705 = vunpack.c.h.b16 %v102
    %v1706 = vunpack.c.l.b16 %v103
    %v1707 = vunpack.c.h.b16 %v103
    %v1708 = vunpack.c.l.b16 %v104
    %v1709 = vunpack.c.h.b16 %v104
    %v1710 = vunpack.c.l.b16 %v105
    %v1711 = vunpack.c.h.b16 %v105
    %v1712 = vunpack.c.l.b16 %v106
    %v1713 = vunpack.c.h.b16 %v106
    %v1714 = vunpack.c.l.b16 %v107
    %v1715 = vunpack.c.h.b16 %v107
    %v1716 = vunpack.c.l.b16 %v108
    %v1717 = vunpack.c.h.b16 %v108
    %v1718 = vunpack.c.l.b16 %v109
    %v1719 = vunpack.c.h.b16 %v109
    %v1720 = vunpack.c.l.b16 %v110
    %v1721 = vunpack.c.h.b16 %v110
    %v1722 = vunpack.c.l.b16 %v111
    %v1723 = vunpack.c.h.b16 %v111
    %v1724 = vunpack.c.l.b16 %v112
    %v1725 = vunpack.c.h.b16 %v112
    %v1726 = vunpack.c.l.b16 %v113
    %v1727 = vunpack.c.h.b16 %v113
    %v1728 = vunpack.c.l.b16 %v114
    %v1729 = vunpack.c.h.b16 %v114
    %v1730 = vunpack.c.l.b16 %v115
    %v1731 = vunpack.c.h.b16 %v115
    %v1732 = vunpack.c.l.b16 %v116
    %v1733 = vunpack.c.h.b16 %v116
    %v1734 = vunpack.c.l.b16 %v117
    %v1735 = vunpack.c.h.b16 %v117
    %v1736 = vunpack.c.l.b16 %v118
    %v1737 = vunpack.c.h.b16 %v118
    %v1738 = vunpack.c.l.b16 %v119
    %v1739 = vunpack.c.h.b16 %v119
    %v1740 = vunpack.c.l.b16 %v120
    %v1741 = vunpack.c.h.b16 %v120
    %v1742 = vunpack.c.l.b16 %v121
    %v1743 = vunpack.c.h.b16 %v121
    %v1744 = vunpack.c.l.b16 %v122
    %v1745 = vunpack.c.h.b16 %v122
    %v1746 = vunpack.c.l.b16 %v123
    %v1747 = vunpack.c.h.b16 %v123
    %v1748 = vunpack.c.l.b16 %v124
    %v1749 = vunpack.c.h.b16 %v124
    %v1750 = vunpack.c.l.b16 %v125
    %v1751 = vunpack.c.h.b16 %v125
    %v1752 = vunpack.c.l.b16 %v126
    %v1753 = vunpack.c.h.b16 %v126
    %v1754 = vunpack.c.l.b16 %v127
    %v1755 = vunpack.c.h.b16 %v127
    %v1756 = vunpack.c.l.b16 %v128
    %v1757 = vunpack.c.h.b16 %v128
    %v1758 = vunpack.c.l.b16 %v129
    %v1759 = vunpack.c.h.b16 %v129
    %v1760 = vunpack.c.l.b16 %v130
    %v1761 = vunpack.c.h.b16 %v130
    %v1762 = vunpack.c.l.b16 %v131
    %v1763 = vunpack.c.h.b16 %v131
    %v1764 = vunpack.c.l.b16 %v132
    %v1765 = vunpack.c.h.b16 %v132
    %v1766 = vunpack.c.l.b16 %v133
    %v1767 = vunpack.c.h.b16 %v133
    %v1768 = vunpack.c.l.b16 %v134
    %v1769 = vunpack.c.h.b16 %v134
    %v1770 = vunpack.c.l.b16 %v135
    %v1771 = vunpack.c.h.b16 %v135
    %v1772 = vunpack.c.l.b16 %v136
    %v1773 = vunpack.c.h.b16 %v136
    %v1774 = vunpack.c.l.b16 %v137
    %v1775 = vunpack.c.h.b16 %v137
    %v1776 = vunpack.c.l.b16 %v138
    %v1777 = vunpack.c.h.b16 %v138
    %v1778 = vunpack.c.l.b16 %v139
    %v1779 = vunpack.c.h.b16 %v139
    %v1780 = vunpack.c.l.b16 %v140
    %v1781 = vunpack.c.h.b16 %v140
    %v1782 = vunpack.c.l.b16 %v141
    %v1783 = vunpack.c.h.b16 %v141
    %v1784 = vunpack.c.l.b16 %v142
    %v1785 = vunpack.c.h.b16 %v142
    %v1786 = vunpack.c.l.b16 %v143
    %v1787 = vunpack.c.h.b16 %v143
    %v1788 = vunpack.c.l.b16 %v144
    %v1789 = vunpack.c.h.b16 %v144
    %v1790 = vunpack.c.l.b16 %v145
    %v1791 = vunpack.c.h.b16 %v145
    %v1792 = vunpack.c.l.b16 %v146
    %v1793 = vunpack.c.h.b16 %v146
    %v1794 = vunpack.c.l.b16 %v147
    %v1795 = vunpack.c.h.b16 %v147
    %v1796 = vunpack.c.l.b16 %v148
    %v1797 = vunpack.c.h.b16 %v148
    %v1798 = vunpack.c.l.b16 %v149
    %v1799 = vunpack.c.h.b16 %v149
    %v1800 = vunpack.c.l.b16 %v150
    %v1801 = vunpack.c.h.b16 %v150
    %v1802 = vunpack.c.l.b16 %v151
    %v1803 = vunpack.c.h.b16 %v151
    %v1804 = vunpack.c.l.b16 %v152
    %v1805 = vunpack.c.h.b16 %v152
    %v1806 = vunpack.c.l.b16 %v153
    %v1807 = vunpack.c.h.b16 %v153
    %v1808 = vunpack.c.l.b16 %v154
    %v1809 = vunpack.c.h.b16 %v154
    %v1810 = vunpack.c.l.b16 %v155
    %v1811 = vunpack.c.h.b16 %v155
    %v1812 = vunpack.c.l.b16 %v156
    %v1813 = vunpack.c.h.b16 %v156
    %v1814 = vunpack.c.l.b16 %v157
    %v1815 = vunpack.c.h.b16 %v157
    %v1816 = vunpack.c.l.b16 %v158
    %v1817 = vunpack.c.h.b16 %v158
    %v1818 = vunpack.c.l.b16 %v159
    %v1819 = vunpack.c.h.b16 %v159
    %v1820 = vunpack.c.l.b16 %v160
    %v1821 = vunpack.c.h.b16 %v160
    %v1822 = vunpack.c.l.b16 %v161
    %v1823 = vunpack.c.h.b16 %v161
    %v1824 = vunpack.c.l.b16 %v162
    %v1825 = vunpack.c.h.b16 %v162
    %v1826 = vunpack.c.l.b16 %v163
    %v1827 = vunpack.c.h.b16 %v163
    %v1828 = vunpack.c.l.b16 %v164
    %v1829 = vunpack.c.h.b16 %v164
    %v1830 = vunpack.c.l.b16 %v165
    %v1831 = vunpack.c.h.b16 %v165
    %v1832 = vunpack.c.l.b16 %v166
    %v1833 = vunpack.c.h.b16 %v166
    %v1834 = vunpack.c.l.b16 %v167
    %v1835 = vunpack.c.h.b16 %v167
    %v1836 = vunpack.c.l.b16 %v168
    %v1837 = vunpack.c.h.b16 %v168
    %v1838 = vunpack.c.l.b16 %v169
    %v1839 = vunpack.c.h.b16 %v169
    %v1840 = vunpack.c.l.b16 %v170
    %v1841 = vunpack.c.h.b16 %v170
    %v1842 = vunpack.c.l.b16 %v171
    %v1843 = vunpack.c.h.b16 %v171
    %v1844 = vunpack.c.l.b16 %v172
    %v1845 = vunpack.c.h.b16 %v172
    %v1846 = vunpack.c.l.b16 %v173
    %v1847 = vunpack.c.h.b16 %v173
    %v1848 = vunpack.c.l.b16 %v174
    %v1849 = vunpack.c.h.b16 %v174
    %v1850 = vunpack.c.l.b16 %v175
    %v1851 = vunpack.c.h.b16 %v175
    %v1852 = vunpack.c.l.b16 %v176
    %v1853 = vunpack.c.h.b16 %v176
    %v1854 = vunpack.c.l.b16 %v177
    %v1855 = vunpack.c.h.b16 %v177
    %v1856 = vunpack.c.l.b16 %v178
    %v1857 = vunpack.c.h.b16 %v178
    %v1858 = vunpack.c.l.b16 %v179
    %v1859 = vunpack.c.h.b16 %v179
    %v1860 = vunpack.c.l.b16 %v180
    %v1861 = vunpack.c.h.b16 %v180
    %v1862 = vunpack.c.l.b16 %v181
    %v1863 = vunpack.c.h.b16 %v181
    %v1864 = vunpack.c.l.b16 %v182
    %v1865 = vunpack.c.h.b16 %v182
    %v1866 = vunpack.c.l.b16 %v183
    %v1867 = vunpack.c.h.b16 %v183
    %v1868 = vunpack.c.l.b16 %v184
    %v1869 = vunpack.c.h.b16 %v184
    %v1870 = vunpack.c.l.b16 %v185
    %v1871 = vunpack.c.h.b16 %v185
    %v1872 = vunpack.c.l.b16 %v186
    %v1873 = vunpack.c.h.b16 %v186
    %v1874 = vunpack.c.l.b16 %v187
    %v1875 = vunpack.c.h.b16 %v187
    %v1876 = vunpack.c.l.b16 %v188
    %v1877 = vunpack.c.h.b16 %v188
    %v1878 = vunpack.c.l.b16 %v189
    %v1879 = vunpack.c.h.b16 %v189
    %v1880 = vunpack.c.l.b16 %v190
    %v1881 = vunpack.c.h.b16 %v190
    %v1882 = vunpack.c.l.b16 %v191
    %v1883 = vunpack.c.h.b16 %v191
    %v1884 = vunpack.c.l.b16 %v192
    %v1885 = vunpack.c.h.b16 %v192
    %v1886 = vunpack.c.l.b16 %v193
    %v1887 = vunpack.c.h.b16 %v193
    %v1888 = vunpack.c.l.b16 %v194
    %v1889 = vunpack.c.h.b16 %v194
    %v1890 = vunpack.c.l.b16 %v195
    %v1891 = vunpack.c.h.b16 %v195
    %v1892 = vunpack.c.l.b16 %v196
    %v1893 = vunpack.c.h.b16 %v196
    %v1894 = vunpack.c.l.b16 %v197
    %v1895 = vunpack.c.h.b16 %v197
    %v1896 = vunpack.c.l.b16 %v198
    %v1897 = vunpack.c.h.b16 %v198
    %v1898 = vunpack.c.l.b16 %v199
    %v1899 = vunpack.c.h.b16 %v199
    %v1900 = vunpack.c.l.b16 %v200
    %v1901 = vunpack.c.h.b16 %v200
    %v1902 = vunpack.c.l.b16 %v201
    %v1903 = vunpack.c.h.b16 %v201
    %v1904 = vunpack.c.l.b16 %v202
    %v1905 = vunpack.c.h.b16 %v202
    %v1906 = vunpack.c.l.b16 %v203
    %v1907 = vunpack.c.h.b16 %v203
    %v1908 = vunpack.c.l.b16 %v204
    %v1909 = vunpack.c.h.b16 %v204
    %v1910 = vunpack.c.l.b16 %v205
    %v1911 = vunpack.c.h.b16 %v205
    %v1912 = vunpack.c.l.b16 %v206
    %v1913 = vunpack.c.h.b16 %v206
    %v1914 = vunpack.c.l.b16 %v207
    %v1915 = vunpack.c.h.b16 %v207
    %v1916 = vunpack.c.l.b16 %v208
    %v1917 = vunpack.c.h.b16 %v208
    %v1918 = vunpack.c.l.b16 %v209
    %v1919 = vunpack.c.h.b16 %v209
    %v1920 = vunpack.c.l.b16 %v210
    %v1921 = vunpack.c.h.b16 %v210
    %v1922 = vunpack.c.l.b16 %v211
    %v1923 = vunpack.c.h.b16 %v211
    %v1924 = vunpack.c.l.b16 %v212
    %v1925 = vunpack.c.h.b16 %v212
    %v1926 = vunpack.c.l.b16 %v213
    %v1927 = vunpack.c.h.b16 %v213
    %v1928 = vunpack.c.l.b16 %v214
    %v1929 = vunpack.c.h.b16 %v214
    %v1930 = vunpack.c.l.b16 %v215
    %v1931 = vunpack.c.h.b16 %v215
    %v1932 = vunpack.c.l.b16 %v216
    %v1933 = vunpack.c.h.b16 %v216
    %v1934 = vunpack.c.l.b16 %v217
    %v1935 = vunpack.c.h.b16 %v217
    %v1936 = vunpack.c.l.b16 %v218
    %v1937 = vunpack.c.h.b16 %v218
    %v1938 = vunpack.c.l.b16 %v219
    %v1939 = vunpack.c.h.b16 %v219
    %v1940 = vunpack.c.l.b16 %v220
    %v1941 = vunpack.c.h.b16 %v220
    %v1942 = vunpack.c.l.b16 %v221
    %v1943 = vunpack.c.h.b16 %v221
    %v1944 = vunpack.c.l.b16 %v222
    %v1945 = vunpack.c.h.b16 %v222
    %v1946 = vunpack.c.l.b16 %v223
    %v1947 = vunpack.c.h.b16 %v223
    %v1948 = vunpack.c.l.b16 %v224
    %v1949 = vunpack.c.h.b16 %v224
    %v1950 = vunpack.c.l.b16 %v225
    %v1951 = vunpack.c.h.b16 %v225
    %v1952 = vunpack.c.l.b16 %v226
    %v1953 = vunpack.c.h.b16 %v226
    %v1954 = vunpack.c.l.b16 %v227
    %v1955 = vunpack.c.h.b16 %v227
    %v1956 = vunpack.c.l.b16 %v228
    %v1957 = vunpack.c.h.b16 %v228
    %v1958 = vunpack.c.l.b16 %v229
    %v1959 = vunpack.c.h.b16 %v229
    %v1960 = vunpack.c.l.b16 %v230
    %v1961 = vunpack.c.h.b16 %v230
    %v1962 = vunpack.c.l.b16 %v231
    %v1963 = vunpack.c.h.b16 %v231
    %v1964 = vunpack.c.l.b16 %v232
    %v1965 = vunpack.c.h.b16 %v232
    %v1966 = vunpack.c.l.b16 %v233
    %v1967 = vunpack.c.h.b16 %v233
    %v1968 = vunpack.c.l.b16 %v234
    %v1969 = vunpack.c.h.b16 %v234
    %v1970 = vunpack.c.l.b16 %v235
    %v1971 = vunpack.c.h.b16 %v235
    %v1972 = vunpack.c.l.b16 %v236
    %v1973 = vunpack.c.h.b16 %v236
    %v1974 = vunpack.c.l.b16 %v237
    %v1975 = vunpack.c.h.b16 %v237
    %v1976 = vunpack.c.l.b16 %v238
    %v1977 = vunpack.c.h.b16 %v238
    %v1978 = vunpack.c.l.b16 %v239
    %v1979 = vunpack.c.h.b16 %v239
    %v1980 = vunpack.c.l.b16 %v240
    %v1981 = vunpack.c.h.b16 %v240
    %v1982 = vunpack.c.l.b16 %v241
    %v1983 = vunpack.c.h.b16 %v241
    %v1984 = vunpack.c.l.b16 %v242
    %v1985 = vunpack.c.h.b16 %v242
    %v1986 = vunpack.c.l.b16 %v243
    %v1987 = vunpack.c.h.b16 %v243
    %v1988 = vunpack.c.l.b16 %v244
    %v1989 = vunpack.c.h.b16 %v244
    %v1990 = vunpack.c.l.b16 %v245
    %v1991 = vunpack.c.h.b16 %v245
    %v1992 = vunpack.c.l.b16 %v246
    %v1993 = vunpack.c.h.b16 %v246
    %v1994 = vunpack.c.l.b16 %v247
    %v1995 = vunpack.c.h.b16 %v247
    %v1996 = vunpack.c.l.b16 %v248
    %v1997 = vunpack.c.h.b16 %v248
    %v1998 = vunpack.c.l.b16 %v249
    %v1999 = vunpack.c.h.b16 %v249
    %v2000 = vunpack.c.l.b16 %v250
    %v2001 = vunpack.c.h.b16 %v250
    %v2002 = vunpack.c.l.b16 %v251
    %v2003 = vunpack.c.h.b16 %v251
    %v2004 = vunpack.c.l.b16 %v252
    %v2005 = vunpack.c.h.b16 %v252
    %v2006 = vunpack.c.l.b16 %v253
    %v2007 = vunpack.c.h.b16 %v253
    %v2008 = vunpack.c.l.b16 %v254
    %v2009 = vunpack.c.h.b16 %v254
    %v2010 = vunpack.c.l.b16 %v255
    %v2011 = vunpack.c.h.b16 %v255
    %v2012 = vunpack.c.l.b16 %v256
    %v2013 = vunpack.c.h.b16 %v256
    %v2014 = vunpack.c.l.b16 %v257
    %v2015 = vunpack.c.h.b16 %v257
    %v2016 = vunpack.c.l.b16 %v258
    %v2017 = vunpack.c.h.b16 %v258
    %v2018 = vunpack.c.l.b16 %v259
    %v2019 = vunpack.c.h.b16 %v259
    %v2020 = vunpack.c.l.b16 %v260
    %v2021 = vunpack.c.h.b16 %v260
    %v2022 = vunpack.c.l.b16 %v261
    %v2023 = vunpack.c.h.b16 %v261
    %v2024 = vunpack.c.l.b16 %v262
    %v2025 = vunpack.c.h.b16 %v262
    %v2026 = vunpack.c.l.b16 %v263
    %v2027 = vunpack.c.h.b16 %v263
    %v2028 = vunpack.c.l.b16 %v264
    %v2029 = vunpack.c.h.b16 %v264
    %v2030 = vunpack.c.l.b16 %v265
    %v2031 = vunpack.c.h.b16 %v265
    %v2032 = vunpack.c.l.b16 %v266
    %v2033 = vunpack.c.h.b16 %v266
    %v2034 = vunpack.c.l.b16 %v267
    %v2035 = vunpack.c.h.b16 %v267
    %v2036 = vunpack.c.l.b16 %v268
    %v2037 = vunpack.c.h.b16 %v268
    %v2038 = vunpack.c.l.b16 %v269
    %v2039 = vunpack.c.h.b16 %v269
    %v2040 = vunpack.c.l.b16 %v270
    %v2041 = vunpack.c.h.b16 %v270
    %v2042 = vunpack.c.l.b16 %v271
    %v2043 = vunpack.c.h.b16 %v271
    %v2044 = vunpack.c.l.b16 %v272
    %v2045 = vunpack.c.h.b16 %v272
    %v2046 = vunpack.c.l.b16 %v273
    %v2047 = vunpack.c.h.b16 %v273
    %v2048 = vunpack.c.l.b16 %v274
    %v2049 = vunpack.c.h.b16 %v274
    %v2050 = vunpack.c.l.b16 %v275
    %v2051 = vunpack.c.h.b16 %v275
    %v2052 = vunpack.c.l.b16 %v276
    %v2053 = vunpack.c.h.b16 %v276
    %v2054 = vunpack.c.l.b16 %v277
    %v2055 = vunpack.c.h.b16 %v277
    %v2056 = vunpack.c.l.b16 %v278
    %v2057 = vunpack.c.h.b16 %v278
    %v2058 = vunpack.c.l.b16 %v279
    %v2059 = vunpack.c.h.b16 %v279
    %v2060 = vunpack.c.l.b16 %v280
    %v2061 = vunpack.c.h.b16 %v280
    %v2062 = vunpack.c.l.b16 %v281
    %v2063 = vunpack.c.h.b16 %v281
    %v2064 = vunpack.c.l.b16 %v282
    %v2065 = vunpack.c.h.b16 %v282
    %v2066 = vunpack.c.l.b16 %v283
    %v2067 = vunpack.c.h.b16 %v283
    %v2068 = vunpack.c.l.b16 %v284
    %v2069 = vunpack.c.h.b16 %v284
    %v2070 = vunpack.c.l.b16 %v285
    %v2071 = vunpack.c.h.b16 %v285
    %v2072 = vunpack.c.l.b16 %v286
    %v2073 = vunpack.c.h.b16 %v286
    %v2074 = vunpack.c.l.b16 %v287
    %v2075 = vunpack.c.h.b16 %v287
    %v2076 = vunpack.c.l.b16 %v288
    %v2077 = vunpack.c.h.b16 %v288
    %v2078 = vunpack.c.l.b16 %v289
    %v2079 = vunpack.c.h.b16 %v289
    %v2080 = vunpack.c.l.b16 %v290
    %v2081 = vunpack.c.h.b16 %v290
    %v2082 = vunpack.c.l.b16 %v291
    %v2083 = vunpack.c.h.b16 %v291
    %v2084 = vunpack.c.l.b16 %v292
    %v2085 = vunpack.c.h.b16 %v292
    %v2086 = vunpack.c.l.b16 %v293
    %v2087 = vunpack.c.h.b16 %v293
    %v2088 = vunpack.c.l.b16 %v294
    %v2089 = vunpack.c.h.b16 %v294
    %v2090 = vunpack.c.l.b16 %v295
    %v2091 = vunpack.c.h.b16 %v295
    %v2092 = vunpack.c.l.b16 %v296
    %v2093 = vunpack.c.h.b16 %v296
    %v2094 = vunpack.c.l.b16 %v297
    %v2095 = vunpack.c.h.b16 %v297
    %v2096 = vunpack.c.l.b16 %v298
    %v2097 = vunpack.c.h.b16 %v298
    %v2098 = vunpack.c.l.b16 %v299
    %v2099 = vunpack.c.h.b16 %v299
    %v2100 = vunpack.c.l.b16 %v300
    %v2101 = vunpack.c.h.b16 %v300
    %v2102 = vunpack.c.l.b16 %v301
    %v2103 = vunpack.c.h.b16 %v301
    %v2104 = vunpack.c.l.b16 %v302
    %v2105 = vunpack.c.h.b16 %v302
    %v2106 = vunpack.c.l.b16 %v303
    %v2107 = vunpack.c.h.b16 %v303
    %v2108 = vunpack.c.l.b16 %v304
    %v2109 = vunpack.c.h.b16 %v304
    %v2110 = vunpack.c.l.b16 %v305
    %v2111 = vunpack.c.h.b16 %v305
    %v2112 = vunpack.c.l.b16 %v306
    %v2113 = vunpack.c.h.b16 %v306
    %v2114 = vunpack.c.l.b16 %v307
    %v2115 = vunpack.c.h.b16 %v307
    %v2116 = vunpack.c.l.b16 %v308
    %v2117 = vunpack.c.h.b16 %v308
    %v2118 = vunpack.c.l.b16 %v309
    %v2119 = vunpack.c.h.b16 %v309
    %v2120 = vunpack.c.l.b16 %v310
    %v2121 = vunpack.c.h.b16 %v310
    %v2122 = vunpack.c.l.b16 %v311
    %v2123 = vunpack.c.h.b16 %v311
    %v2124 = vunpack.c.l.b16 %v312
    %v2125 = vunpack.c.h.b16 %v312
    %v2126 = vunpack.c.l.b16 %v313
    %v2127 = vunpack.c.h.b16 %v313
    %v2128 = vunpack.c.l.b16 %v314
    %v2129 = vunpack.c.h.b16 %v314
    %v2130 = vunpack.c.l.b16 %v315
    %v2131 = vunpack.c.h.b16 %v315
    %v2132 = vunpack.c.l.b16 %v316
    %v2133 = vunpack.c.h.b16 %v316
    %v2134 = vunpack.c.l.b16 %v317
    %v2135 = vunpack.c.h.b16 %v317
    %v2136 = vunpack.c.l.b16 %v318
    %v2137 = vunpack.c.h.b16 %v318
    %v2138 = vunpack.c.l.b16 %v319
    %v2139 = vunpack.c.h.b16 %v319
    %v2140 = vunpack.c.l.b16 %v320
    %v2141 = vunpack.c.h.b16 %v320
    %v2142 = vunpack.c.l.b16 %v321
    %v2143 = vunpack.c.h.b16 %v321
    %v2144 = vunpack.c.l.b16 %v322
    %v2145 = vunpack.c.h.b16 %v322
    %v2146 = vunpack.c.l.b16 %v323
    %v2147 = vunpack.c.h.b16 %v323
    %v2148 = vunpack.c.l.b16 %v324
    %v2149 = vunpack.c.h.b16 %v324
    %v2150 = vunpack.c.l.b16 %v325
    %v2151 = vunpack.c.h.b16 %v325
    %v2152 = vunpack.c.l.b16 %v326
    %v2153 = vunpack.c.h.b16 %v326
    %v2154 = vunpack.c.l.b16 %v327
    %v2155 = vunpack.c.h.b16 %v327
    %v2156 = vunpack.c.l.b16 %v328
    %v2157 = vunpack.c.h.b16 %v328
    %v2158 = vunpack.c.l.b16 %v329
    %v2159 = vunpack.c.h.b16 %v329
    %v2160 = vunpack.c.l.b16 %v330
    %v2161 = vunpack.c.h.b16 %v330
    %v2162 = vunpack.c.l.b16 %v331
    %v2163 = vunpack.c.h.b16 %v331
    %v2164 = vunpack.c.l.b16 %v332
    %v2165 = vunpack.c.h.b16 %v332
    %v2166 = vunpack.c.l.b16 %v333
    %v2167 = vunpack.c.h.b16 %v333
    %v2168 = vunpack.c.l.b16 %v334
    %v2169 = vunpack.c.h.b16 %v334
    %v2170 = vunpack.c.l.b16 %v335
    %v2171 = vunpack.c.h.b16 %v335
    %v2172 = vunpack.c.l.b16 %v336
    %v2173 = vunpack.c.h.b16 %v336
    %v2174 = vunpack.c.l.b16 %v337
    %v2175 = vunpack.c.h.b16 %v337
    %v2176 = vunpack.c.l.b16 %v338
    %v2177 = vunpack.c.h.b16 %v338
    %v2178 = vunpack.c.l.b16 %v339
    %v2179 = vunpack.c.h.b16 %v339
    %v2180 = vunpack.c.l.b16 %v340
    %v2181 = vunpack.c.h.b16 %v340
    %v2182 = vunpack.c.l.b16 %v341
    %v2183 = vunpack.c.h.b16 %v341
    %v2184 = vunpack.c.l.b16 %v342
    %v2185 = vunpack.c.h.b16 %v342
    %v2186 = vunpack.c.l.b16 %v343
    %v2187 = vunpack.c.h.b16 %v343
    %v2188 = vunpack.c.l.b16 %v344
    %v2189 = vunpack.c.h.b16 %v344
    %v2190 = vunpack.c.l.b16 %v345
    %v2191 = vunpack.c.h.b16 %v345
    %v2192 = vunpack.c.l.b16 %v346
    %v2193 = vunpack.c.h.b16 %v346
    %v2194 = vunpack.c.l.b16 %v347
    %v2195 = vunpack.c.h.b16 %v347
    %v2196 = vunpack.c.l.b16 %v348
    %v2197 = vunpack.c.h.b16 %v348
    %v2198 = vunpack.c.l.b16 %v349
    %v2199 = vunpack.c.h.b16 %v349
    %v2200 = vunpack.c.l.b16 %v350
    %v2201 = vunpack.c.h.b16 %v350
    %v2202 = vunpack.c.l.b16 %v351
    %v2203 = vunpack.c.h.b16 %v351
    %v2204 = vunpack.c.l.b16 %v352
    %v2205 = vunpack.c.h.b16 %v352
    %v2206 = vunpack.c.l.b16 %v353
    %v2207 = vunpack.c.h.b16 %v353
    %v2208 = vunpack.c.l.b16 %v354
    %v2209 = vunpack.c.h.b16 %v354
    %v2210 = vunpack.c.l.b16 %v355
    %v2211 = vunpack.c.h.b16 %v355
    %v2212 = vunpack.c.l.b16 %v356
    %v2213 = vunpack.c.h.b16 %v356
    %v2214 = vunpack.c.l.b16 %v357
    %v2215 = vunpack.c.h.b16 %v357
    %v2216 = vunpack.c.l.b16 %v358
    %v2217 = vunpack.c.h.b16 %v358
    %v2218 = vunpack.c.l.b16 %v359
    %v2219 = vunpack.c.h.b16 %v359
    %v2220 = vunpack.c.l.b16 %v360
    %v2221 = vunpack.c.h.b16 %v360
    %v2222 = vunpack.c.l.b16 %v361
    %v2223 = vunpack.c.h.b16 %v361
    %v2224 = vunpack.c.l.b16 %v362
    %v2225 = vunpack.c.h.b16 %v362
    %v2226 = vunpack.c.l.b16 %v363
    %v2227 = vunpack.c.h.b16 %v363
    %v2228 = vunpack.c.l.b16 %v364
    %v2229 = vunpack.c.h.b16 %v364
    %v2230 = vunpack.c.l.b16 %v365
    %v2231 = vunpack.c.h.b16 %v365
    %v2232 = vunpack.c.l.b16 %v366
    %v2233 = vunpack.c.h.b16 %v366
    %v2234 = vunpack.c.l.b16 %v367
    %v2235 = vunpack.c.h.b16 %v367
    %v2236 = vunpack.c.l.b16 %v368
    %v2237 = vunpack.c.h.b16 %v368
    %v2238 = vunpack.c.l.b16 %v369
    %v2239 = vunpack.c.h.b16 %v369
    %v2240 = vunpack.c.l.b16 %v370
    %v2241 = vunpack.c.h.b16 %v370
    %v2242 = vunpack.c.l.b16 %v371
    %v2243 = vunpack.c.h.b16 %v371
    %v2244 = vunpack.c.l.b16 %v372
    %v2245 = vunpack.c.h.b16 %v372
    %v2246 = vunpack.c.l.b16 %v373
    %v2247 = vunpack.c.h.b16 %v373
    %v2248 = vunpack.c.l.b16 %v374
    %v2249 = vunpack.c.h.b16 %v374
    %v2250 = vunpack.c.l.b16 %v375
    %v2251 = vunpack.c.h.b16 %v375
    %v2252 = vunpack.c.l.b16 %v376
    %v2253 = vunpack.c.h.b16 %v376
    %v2254 = vunpack.c.l.b16 %v377
    %v2255 = vunpack.c.h.b16 %v377
    %v2256 = vunpack.c.l.b16 %v378
    %v2257 = vunpack.c.h.b16 %v378
    %v2258 = vunpack.c.l.b16 %v379
    %v2259 = vunpack.c.h.b16 %v379
    %v2260 = vunpack.c.l.b16 %v380
    %v2261 = vunpack.c.h.b16 %v380
    %v2262 = vunpack.c.l.b16 %v381
    %v2263 = vunpack.c.h.b16 %v381
    %v2264 = vunpack.c.l.b16 %v382
    %v2265 = vunpack.c.h.b16 %v382
    %v2266 = vunpack.c.l.b16 %v383
    %v2267 = vunpack.c.h.b16 %v383
    %v2268 = vunpack.c.l.b16 %v384
    %v2269 = vunpack.c.h.b16 %v384
    %v2270 = vunpack.c.l.b16 %v385
    %v2271 = vunpack.c.h.b16 %v385
    %v2272 = vunpack.c.l.b16 %v386
    %v2273 = vunpack.c.h.b16 %v386
    %v2274 = vunpack.c.l.b16 %v387
    %v2275 = vunpack.c.h.b16 %v387
    %v2276 = vunpack.c.l.b16 %v388
    %v2277 = vunpack.c.h.b16 %v388
    %v2278 = vunpack.c.l.b16 %v389
    %v2279 = vunpack.c.h.b16 %v389
    %v2280 = vunpack.c.l.b16 %v390
    %v2281 = vunpack.c.h.b16 %v390
    %v2282 = vunpack.c.l.b16 %v391
    %v2283 = vunpack.c.h.b16 %v391
    %v2284 = vunpack.c.l.b16 %v392
    %v2285 = vunpack.c.h.b16 %v392
    %v2286 = vunpack.c.l.b16 %v393
    %v2287 = vunpack.c.h.b16 %v393
    %v2288 = vunpack.c.l.b16 %v394
    %v2289 = vunpack.c.h.b16 %v394
    %v2290 = vunpack.c.l.b16 %v395
    %v2291 = vunpack.c.h.b16 %v395
    %v2292 = vunpack.c.l.b16 %v396
    %v2293 = vunpack.c.h.b16 %v396
    %v2294 = vunpack.c.l.b16 %v397
    %v2295 = vunpack.c.h.b16 %v397
    %v2296 = vunpack.c.l.b16 %v398
    %v2297 = vunpack.c.h.b16 %v398
    %v2298 = vunpack.c.l.b16 %v399
    %v2299 = vunpack.c.h.b16 %v399
    %v2300 = vunpack.c.l.b16 %v400
    %v2301 = vunpack.c.h.b16 %v400
    %v2302 = vunpack.c.l.b16 %v401
    %v2303 = vunpack.c.h.b16 %v401
    %v2304 = vunpack.c.l.b16 %v402
    %v2305 = vunpack.c.h.b16 %v402
    %v2306 = vunpack.c.l.b16 %v403
    %v2307 = vunpack.c.h.b16 %v403
    %v2308 = vunpack.c.l.b16 %v404
    %v2309 = vunpack.c.h.b16 %v404
    %v2310 = vunpack.c.l.b16 %v405
    %v2311 = vunpack.c.h.b16 %v405
    %v2312 = vunpack.c.l.b16 %v406
    %v2313 = vunpack.c.h.b16 %v406
    %v2314 = vunpack.c.l.b16 %v407
    %v2315 = vunpack.c.h.b16 %v407
    %v2316 = vunpack.c.l.b16 %v408
    %v2317 = vunpack.c.h.b16 %v408
    %v2318 = vunpack.c.l.b16 %v409
    %v2319 = vunpack.c.h.b16 %v409
    %v2320 = vunpack.c.l.b16 %v410
    %v2321 = vunpack.c.h.b16 %v410
    %v2322 = vunpack.c.l.b16 %v411
    %v2323 = vunpack.c.h.b16 %v411
    %v2324 = vunpack.c.l.b16 %v412
    %v2325 = vunpack.c.h.b16 %v412
    %v2326 = vunpack.c.l.b16 %v413
    %v2327 = vunpack.c.h.b16 %v413
    %v2328 = vunpack.c.l.b16 %v414
    %v2329 = vunpack.c.h.b16 %v414
    %v2330 = vunpack.c.l.b16 %v415
    %v2331 = vunpack.c.h.b16 %v415
    %v2332 = vunpack.c.l.b16 %v416
    %v2333 = vunpack.c.h.b16 %v416
    %v2334 = vunpack.c.l.b16 %v417
    %v2335 = vunpack.c.h.b16 %v417
    %v2336 = vunpack.c.l.b16 %v418
    %v2337 = vunpack.c.h.b16 %v418
    %v2338 = vunpack.c.l.b16 %v419
    %v2339 = vunpack.c.h.b16 %v419
    %v2340 = vunpack.c.l.b16 %v420
    %v2341 = vunpack.c.h.b16 %v420
    %v2342 = vunpack.c.l.b16 %v421
    %v2343 = vunpack.c.h.b16 %v421
    %v2344 = vunpack.c.l.b16 %v422
    %v2345 = vunpack.c.h.b16 %v422
    %v2346 = vunpack.c.l.b16 %v423
    %v2347 = vunpack.c.h.b16 %v423
    %v2348 = vunpack.c.l.b16 %v424
    %v2349 = vunpack.c.h.b16 %v424
    %v2350 = vunpack.c.l.b16 %v425
    %v2351 = vunpack.c.h.b16 %v425
    %v2352 = vunpack.c.l.b16 %v426
    %v2353 = vunpack.c.h.b16 %v426
    %v2354 = vunpack.c.l.b16 %v427
    %v2355 = vunpack.c.h.b16 %v427
    %v2356 = vunpack.c.l.b16 %v428
    %v2357 = vunpack.c.h.b16 %v428
    %v2358 = vunpack.c.l.b16 %v429
    %v2359 = vunpack.c.h.b16 %v429
    %v2360 = vunpack.c.l.b16 %v430
    %v2361 = vunpack.c.h.b16 %v430
    %v2362 = vunpack.c.l.b16 %v431
    %v2363 = vunpack.c.h.b16 %v431
    %v2364 = vunpack.c.l.b16 %v432
    %v2365 = vunpack.c.h.b16 %v432
    %v2366 = vunpack.c.l.b16 %v433
    %v2367 = vunpack.c.h.b16 %v433
    %v2368 = vunpack.c.l.b16 %v434
    %v2369 = vunpack.c.h.b16 %v434
    %v2370 = vunpack.c.l.b16 %v435
    %v2371 = vunpack.c.h.b16 %v435
    %v2372 = vunpack.c.l.b16 %v436
    %v2373 = vunpack.c.h.b16 %v436
    %v2374 = vunpack.c.l.b16 %v437
    %v2375 = vunpack.c.h.b16 %v437
    %v2376 = vunpack.c.l.b16 %v438
    %v2377 = vunpack.c.h.b16 %v438
    %v2378 = vunpack.c.l.b16 %v439
    %v2379 = vunpack.c.h.b16 %v439
    %v2380 = vunpack.c.l.b16 %v440
    %v2381 = vunpack.c.h.b16 %v440
    %v2382 = vunpack.c.l.b16 %v441
    %v2383 = vunpack.c.h.b16 %v441
    %v2384 = vunpack.c.l.b16 %v442
    %v2385 = vunpack.c.h.b16 %v442
    %v2386 = vunpack.c.l.b16 %v443
    %v2387 = vunpack.c.h.b16 %v443
    %v2388 = vunpack.c.l.b16 %v444
    %v2389 = vunpack.c.h.b16 %v444
    %v2390 = vunpack.c.l.b16 %v445
    %v2391 = vunpack.c.h.b16 %v445
    %v2392 = vunpack.c.l.b16 %v446
    %v2393 = vunpack.c.h.b16 %v446
    %v2394 = vunpack.c.l.b16 %v447
    %v2395 = vunpack.c.h.b16 %v447
    %v2396 = vunpack.c.l.b16 %v448
    %v2397 = vunpack.c.h.b16 %v448
    %v2398 = vunpack.c.l.b16 %v449
    %v2399 = vunpack.c.h.b16 %v449
    %v2400 = vunpack.c.l.b16 %v450
    %v2401 = vunpack.c.h.b16 %v450
    %v2402 = vunpack.c.l.b16 %v451
    %v2403 = vunpack.c.h.b16 %v451
    %v2404 = vunpack.c.l.b16 %v452
    %v2405 = vunpack.c.h.b16 %v452
    %v2406 = vunpack.c.l.b16 %v453
    %v2407 = vunpack.c.h.b16 %v453
    %v2408 = vunpack.c.l.b16 %v454
    %v2409 = vunpack.c.h.b16 %v454
    %v2410 = vunpack.c.l.b16 %v455
    %v2411 = vunpack.c.h.b16 %v455
    %v2412 = vunpack.c.l.b16 %v456
    %v2413 = vunpack.c.h.b16 %v456
    %v2414 = vunpack.c.l.b16 %v457
    %v2415 = vunpack.c.h.b16 %v457
    %v2416 = vunpack.c.l.b16 %v458
    %v2417 = vunpack.c.h.b16 %v458
    %v2418 = vunpack.c.l.b16 %v459
    %v2419 = vunpack.c.h.b16 %v459
    %v2420 = vunpack.c.l.b16 %v460
    %v2421 = vunpack.c.h.b16 %v460
    %v2422 = vunpack.c.l.b16 %v461
    %v2423 = vunpack.c.h.b16 %v461
    %v2424 = vunpack.c.l.b16 %v462
    %v2425 = vunpack.c.h.b16 %v462
    %v2426 = vunpack.c.l.b16 %v463
    %v2427 = vunpack.c.h.b16 %v463
    %v2428 = vunpack.c.l.b16 %v464
    %v2429 = vunpack.c.h.b16 %v464
    %v2430 = vunpack.c.l.b16 %v465
    %v2431 = vunpack.c.h.b16 %v465
    %v2432 = vunpack.c.l.b16 %v466
    %v2433 = vunpack.c.h.b16 %v466
    %v2434 = vunpack.c.l.b16 %v467
    %v2435 = vunpack.c.h.b16 %v467
    %v2436 = vunpack.c.l.b16 %v468
    %v2437 = vunpack.c.h.b16 %v468
    %v2438 = vunpack.c.l.b16 %v469
    %v2439 = vunpack.c.h.b16 %v469
    %v2440 = vunpack.c.l.b16 %v470
    %v2441 = vunpack.c.h.b16 %v470
    %v2442 = vunpack.c.l.b16 %v471
    %v2443 = vunpack.c.h.b16 %v471
    %v2444 = vunpack.c.l.b16 %v472
    %v2445 = vunpack.c.h.b16 %v472
    %v2446 = vunpack.c.l.b16 %v473
    %v2447 = vunpack.c.h.b16 %v473
    %v2448 = vunpack.c.l.b16 %v474
    %v2449 = vunpack.c.h.b16 %v474
    %v2450 = vunpack.c.l.b16 %v475
    %v2451 = vunpack.c.h.b16 %v475
    %v2452 = vunpack.c.l.b16 %v476
    %v2453 = vunpack.c.h.b16 %v476
    %v2454 = vunpack.c.l.b16 %v477
    %v2455 = vunpack.c.h.b16 %v477
    %v2456 = vunpack.c.l.b16 %v478
    %v2457 = vunpack.c.h.b16 %v478
    %v2458 = vunpack.c.l.b16 %v479
    %v2459 = vunpack.c.h.b16 %v479
    %v2460 = vunpack.c.l.b16 %v480
    %v2461 = vunpack.c.h.b16 %v480
    %v2462 = vunpack.c.l.b16 %v481
    %v2463 = vunpack.c.h.b16 %v481
    %v2464 = vunpack.c.l.b16 %v482
    %v2465 = vunpack.c.h.b16 %v482
    %v2466 = vunpack.c.l.b16 %v483
    %v2467 = vunpack.c.h.b16 %v483
    %v2468 = vunpack.c.l.b16 %v484
    %v2469 = vunpack.c.h.b16 %v484
    %v2470 = vunpack.c.l.b16 %v485
    %v2471 = vunpack.c.h.b16 %v485
    %v2472 = vunpack.c.l.b16 %v486
    %v2473 = vunpack.c.h.b16 %v486
    %v2474 = vunpack.c.l.b16 %v487
    %v2475 = vunpack.c.h.b16 %v487
    %v2476 = vunpack.c.l.b16 %v488
    %v2477 = vunpack.c.h.b16 %v488
    %v2478 = vunpack.c.l.b16 %v489
    %v2479 = vunpack.c.h.b16 %v489
    %v2480 = vunpack.c.l.b16 %v490
    %v2481 = vunpack.c.h.b16 %v490
    %v2482 = vunpack.c.l.b16 %v491
    %v2483 = vunpack.c.h.b16 %v491
    %v2484 = vunpack.c.l.b16 %v492
    %v2485 = vunpack.c.h.b16 %v492
    %v2486 = vunpack.c.l.b16 %v493
    %v2487 = vunpack.c.h.b16 %v493
    %v2488 = vunpack.c.l.b16 %v494
    %v2489 = vunpack.c.h.b16 %v494
    %v2490 = vunpack.c.l.b16 %v495
    %v2491 = vunpack.c.h.b16 %v495
    %v2492 = vunpack.c.l.b16 %v496
    %v2493 = vunpack.c.h.b16 %v496
    %v2494 = vunpack.c.l.b16 %v497
    %v2495 = vunpack.c.h.b16 %v497
    %v2496 = vunpack.c.l.b16 %v498
    %v2497 = vunpack.c.h.b16 %v498
    %v2498 = vunpack.c.l.b16 %v499
    %v2499 = vunpack.c.h.b16 %v499
    %v2500 = vunpack.c.l.b16 %v500
    %v2501 = vunpack.c.h.b16 %v500
    %v2502 = vunpack.c.l.b16 %v501
    %v2503 = vunpack.c.h.b16 %v501
    %v2504 = vunpack.c.l.b16 %v502
    %v2505 = vunpack.c.h.b16 %v502
    %v2506 = vunpack.c.l.b16 %v503
    %v2507 = vunpack.c.h.b16 %v503
    %v2508 = vunpack.c.l.b16 %v504
    %v2509 = vunpack.c.h.b16 %v504
    %v2510 = vunpack.c.l.b16 %v505
    %v2511 = vunpack.c.h.b16 %v505
    %v2512 = vunpack.c.l.b16 %v506
    %v2513 = vunpack.c.h.b16 %v506
    %v2514 = vunpack.c.l.b16 %v507
    %v2515 = vunpack.c.h.b16 %v507
    %v2516 = vunpack.c.l.b16 %v508
    %v2517 = vunpack.c.h.b16 %v508
    %v2518 = vunpack.c.l.b16 %v509
    %v2519 = vunpack.c.h.b16 %v509
    %v2520 = vunpack.c.l.b16 %v510
    %v2521 = vunpack.c.h.b16 %v510
    %v2522 = vunpack.c.l.b16 %v511
    %v2523 = vunpack.c.h.b16 %v511
    %v2524 = vunpack.c.l.b16 %v512
    %v2525 = vunpack.c.h.b16 %v512
    %v2526 = vunpack.c.l.b16 %v513
    %v2527 = vunpack.c.h.b16 %v513
    %v2528 = vunpack.c.l.b16 %v514
    %v2529 = vunpack.c.h.b16 %v514
    %v2530 = vunpack.c.l.b16 %v515
    %v2531 = vunpack.c.h.b16 %v515
    %v2532 = vunpack.c.l.b16 %v516
    %v2533 = vunpack.c.h.b16 %v516
    %v2534 = vunpack.c.l.b16 %v517
    %v2535 = vunpack.c.h.b16 %v517
    %v2536 = vunpack.c.l.b16 %v518
    %v2537 = vunpack.c.h.b16 %v518
    %v2538 = vunpack.c.l.b16 %v519
    %v2539 = vunpack.c.h.b16 %v519
    %v2540 = vunpack.c.l.b16 %v520
    %v2541 = vunpack.c.h.b16 %v520
    %v2542 = vunpack.c.l.b16 %v521
    %v2543 = vunpack.c.h.b16 %v521
    %v2544 = vunpack.c.l.b16 %v522
    %v2545 = vunpack.c.h.b16 %v522
    %v2546 = vunpack.c.l.b16 %v523
    %v2547 = vunpack.c.h.b16 %v523
    %v2548 = vunpack.c.l.b16 %v524
    %v2549 = vunpack.c.h.b16 %v524
    %v2550 = vunpack.c.l.b16 %v525
    %v2551 = vunpack.c.h.b16 %v525
    %v2552 = vunpack.c.l.b16 %v526
    %v2553 = vunpack.c.h.b16 %v526
    %v2554 = vunpack.c.l.b16 %v527
    %v2555 = vunpack.c.h.b16 %v527
    %v2556 = vunpack.c.l.b16 %v528
    %v2557 = vunpack.c.h.b16 %v528
    %v2558 = vunpack.c.l.b16 %v529
    %v2559 = vunpack.c.h.b16 %v529
    %v2560 = vunpack.c.l.b16 %v530
    %v2561 = vunpack.c.h.b16 %v530
    %v2562 = vunpack.c.l.b16 %v531
    %v2563 = vunpack.c.h.b16 %v531
    %v2564 = vunpack.c.l.b16 %v532
    %v2565 = vunpack.c.h.b16 %v532
    %v2566 = vunpack.c.l.b16 %v533
    %v2567 = vunpack.c.h.b16 %v533
    %v2568 = vunpack.c.l.b16 %v534
    %v2569 = vunpack.c.h.b16 %v534
    %v2570 = vunpack.c.l.b16 %v535
    %v2571 = vunpack.c.h.b16 %v535
    %v2572 = vunpack.c.l.b16 %v536
    %v2573 = vunpack.c.h.b16 %v536
    %v2574 = vunpack.c.l.b16 %v537
    %v2575 = vunpack.c.h.b16 %v537
    %v2576 = vunpack.c.l.b16 %v538
    %v2577 = vunpack.c.h.b16 %v538
    %v2578 = vunpack.c.l.b16 %v539
    %v2579 = vunpack.c.h.b16 %v539
    %v2580 = vunpack.c.l.b16 %v540
    %v2581 = vunpack.c.h.b16 %v540
    %v2582 = vunpack.c.l.b16 %v541
    %v2583 = vunpack.c.h.b16 %v541
    %v2584 = vunpack.c.l.b16 %v542
    %v2585 = vunpack.c.h.b16 %v542
    %v2586 = vunpack.c.l.b16 %v543
    %v2587 = vunpack.c.h.b16 %v543
    %v2588 = vunpack.c.l.b16 %v544
    %v2589 = vunpack.c.h.b16 %v544
    %v2590 = vunpack.c.l.b16 %v545
    %v2591 = vunpack.c.h.b16 %v545
    %v2592 = vunpack.c.l.b16 %v546
    %v2593 = vunpack.c.h.b16 %v546
    %v2594 = vunpack.c.l.b16 %v547
    %v2595 = vunpack.c.h.b16 %v547
    %v2596 = vunpack.c.l.b16 %v548
    %v2597 = vunpack.c.h.b16 %v548
    %v2598 = vunpack.c.l.b16 %v549
    %v2599 = vunpack.c.h.b16 %v549
    %v2600 = vunpack.c.l.b16 %v550
    %v2601 = vunpack.c.h.b16 %v550
    %v2602 = vunpack.c.l.b16 %v551
    %v2603 = vunpack.c.h.b16 %v551
    %v2604 = vunpack.c.l.b16 %v552
    %v2605 = vunpack.c.h.b16 %v552
    %v2606 = vunpack.c.l.b16 %v553
    %v2607 = vunpack.c.h.b16 %v553
    %v2608 = vunpack.c.l.b16 %v554
    %v2609 = vunpack.c.h.b16 %v554
    %v2610 = vunpack.c.l.b16 %v555
    %v2611 = vunpack.c.h.b16 %v555
    %v2612 = vunpack.c.l.b16 %v556
    %v2613 = vunpack.c.h.b16 %v556
    %v2614 = vunpack.c.l.b16 %v557
    %v2615 = vunpack.c.h.b16 %v557
    %v2616 = vunpack.c.l.b16 %v558
    %v2617 = vunpack.c.h.b16 %v558
    %v2618 = vunpack.c.l.b16 %v559
    %v2619 = vunpack.c.h.b16 %v559
    %v2620 = vunpack.c.l.b16 %v560
    %v2621 = vunpack.c.h.b16 %v560
    %v2622 = vunpack.c.l.b16 %v561
    %v2623 = vunpack.c.h.b16 %v561
    %v2624 = vunpack.c.l.b16 %v562
    %v2625 = vunpack.c.h.b16 %v562
    %v2626 = vunpack.c.l.b16 %v563
    %v2627 = vunpack.c.h.b16 %v563
    %v2628 = vunpack.c.l.b16 %v564
    %v2629 = vunpack.c.h.b16 %v564
    %v2630 = vunpack.c.l.b16 %v565
    %v2631 = vunpack.c.h.b16 %v565
    %v2632 = vunpack.c.l.b16 %v566
    %v2633 = vunpack.c.h.b16 %v566
    %v2634 = vunpack.c.l.b16 %v567
    %v2635 = vunpack.c.h.b16 %v567
    %v2636 = vunpack.c.l.b16 %v568
    %v2637 = vunpack.c.h.b16 %v568
    %v2638 = vunpack.c.l.b16 %v569
    %v2639 = vunpack.c.h.b16 %v569
    %v2640 = vunpack.c.l.b16 %v570
    %v2641 = vunpack.c.h.b16 %v570
    %v2642 = vunpack.c.l.b16 %v571
    %v2643 = vunpack.c.h.b16 %v571
    %v2644 = vunpack.c.l.b16 %v572
    %v2645 = vunpack.c.h.b16 %v572
    %v2646 = vunpack.c.l.b16 %v573
    %v2647 = vunpack.c.h.b16 %v573
    %v2648 = vunpack.c.l.b16 %v574
    %v2649 = vunpack.c.h.b16 %v574
    %v2650 = vunpack.c.l.b16 %v575
    %v2651 = vunpack.c.h.b16 %v575
    %v2652 = vunpack.c.l.b16 %v576
    %v2653 = vunpack.c.h.b16 %v576
    %v2654 = vunpack.c.l.b16 %v577
    %v2655 = vunpack.c.h.b16 %v577
    %v2656 = vunpack.c.l.b16 %v578
    %v2657 = vunpack.c.h.b16 %v578
    %v2658 = vunpack.c.l.b16 %v579
    %v2659 = vunpack.c.h.b16 %v579
    %v2660 = vunpack.c.l.b16 %v580
    %v2661 = vunpack.c.h.b16 %v580
    %v2662 = vunpack.c.l.b16 %v581
    %v2663 = vunpack.c.h.b16 %v581
    %v2664 = vunpack.c.l.b16 %v582
    %v2665 = vunpack.c.h.b16 %v582
    %v2666 = vunpack.c.l.b16 %v583
    %v2667 = vunpack.c.h.b16 %v583
    %v2668 = vunpack.c.l.b16 %v584
    %v2669 = vunpack.c.h.b16 %v584
    %v2670 = vunpack.c.l.b16 %v585
    %v2671 = vunpack.c.h.b16 %v585
    %v2672 = vunpack.c.l.b16 %v586
    %v2673 = vunpack.c.h.b16 %v586
    %v2674 = vunpack.c.l.b16 %v587
    %v2675 = vunpack.c.h.b16 %v587
    %v2676 = vunpack.c.l.b16 %v588
    %v2677 = vunpack.c.h.b16 %v588
    %v2678 = vunpack.c.l.b16 %v589
    %v2679 = vunpack.c.h.b16 %v589
    %v2680 = vunpack.c.l.b16 %v590
    %v2681 = vunpack.c.h.b16 %v590
    %v2682 = vunpack.c.l.b16 %v591
    %v2683 = vunpack.c.h.b16 %v591
    %v2684 = vunpack.c.l.b16 %v592
    %v2685 = vunpack.c.h.b16 %v592
    %v2686 = vunpack.c.l.b16 %v593
    %v2687 = vunpack.c.h.b16 %v593
    %v2688 = vunpack.c.l.b16 %v594
    %v2689 = vunpack.c.h.b16 %v594
    %v2690 = vunpack.c.l.b16 %v595
    %v2691 = vunpack.c.h.b16 %v595
    %v2692 = vunpack.c.l.b16 %v596
    %v2693 = vunpack.c.h.b16 %v596
    %v2694 = vunpack.c.l.b16 %v597
    %v2695 = vunpack.c.h.b16 %v597
    %v2696 = vunpack.c.l.b16 %v598
    %v2697 = vunpack.c.h.b16 %v598
    %v2698 = vunpack.c.l.b16 %v599
    %v2699 = vunpack.c.h.b16 %v599
    %v2700 = vunpack.c.l.b16 %v600
    %v2701 = vunpack.c.h.b16 %v600
    %v2702 = vunpack.c.l.b16 %v601
    %v2703 = vunpack.c.h.b16 %v601
    %v2704 = vunpack.c.l.b16 %v602
    %v2705 = vunpack.c.h.b16 %v602
    %v2706 = vunpack.c.l.b16 %v603
    %v2707 = vunpack.c.h.b16 %v603
    %v2708 = vunpack.c.l.b16 %v604
    %v2709 = vunpack.c.h.b16 %v604
    %v2710 = vunpack.c.l.b16 %v605
    %v2711 = vunpack.c.h.b16 %v605
    %v2712 = vunpack.c.l.b16 %v606
    %v2713 = vunpack.c.h.b16 %v606
    %v2714 = vunpack.c.l.b16 %v607
    %v2715 = vunpack.c.h.b16 %v607
    %v2716 = vunpack.c.l.b16 %v608
    %v2717 = vunpack.c.h.b16 %v608
    %v2718 = vunpack.c.l.b16 %v609
    %v2719 = vunpack.c.h.b16 %v609
    %v2720 = vunpack.c.l.b16 %v610
    %v2721 = vunpack.c.h.b16 %v610
    %v2722 = vunpack.c.l.b16 %v611
    %v2723 = vunpack.c.h.b16 %v611
    %v2724 = vunpack.c.l.b16 %v612
    %v2725 = vunpack.c.h.b16 %v612
    %v2726 = vunpack.c.l.b16 %v613
    %v2727 = vunpack.c.h.b16 %v613
    %v2728 = vunpack.c.l.b16 %v614
    %v2729 = vunpack.c.h.b16 %v614
    %v2730 = vunpack.c.l.b16 %v615
    %v2731 = vunpack.c.h.b16 %v615
    %v2732 = vunpack.c.l.b16 %v616
    %v2733 = vunpack.c.h.b16 %v616
    %v2734 = vunpack.c.l.b16 %v617
    %v2735 = vunpack.c.h.b16 %v617
    %v2736 = vunpack.c.l.b16 %v618
    %v2737 = vunpack.c.h.b16 %v618
    %v2738 = vunpack.c.l.b16 %v619
    %v2739 = vunpack.c.h.b16 %v619
    %v2740 = vunpack.c.l.b16 %v620
    %v2741 = vunpack.c.h.b16 %v620
    %v2742 = vunpack.c.l.b16 %v621
    %v2743 = vunpack.c.h.b16 %v621
    %v2744 = vunpack.c.l.b16 %v622
    %v2745 = vunpack.c.h.b16 %v622
    %v2746 = vunpack.c.l.b16 %v623
    %v2747 = vunpack.c.h.b16 %v623
    %v2748 = vunpack.c.l.b16 %v624
    %v2749 = vunpack.c.h.b16 %v624
    %v2750 = vunpack.c.l.b16 %v625
    %v2751 = vunpack.c.h.b16 %v625
    %v2752 = vunpack.c.l.b16 %v626
    %v2753 = vunpack.c.h.b16 %v626
    %v2754 = vunpack.c.l.b16 %v627
    %v2755 = vunpack.c.h.b16 %v627
    %v2756 = vunpack.c.l.b16 %v628
    %v2757 = vunpack.c.h.b16 %v628
    %v2758 = vunpack.c.l.b16 %v629
    %v2759 = vunpack.c.h.b16 %v629
    %v2760 = vunpack.c.l.b16 %v630
    %v2761 = vunpack.c.h.b16 %v630
    %v2762 = vunpack.c.l.b16 %v631
    %v2763 = vunpack.c.h.b16 %v631
    %v2764 = vunpack.c.l.b16 %v632
    %v2765 = vunpack.c.h.b16 %v632
    %v2766 = vunpack.c.l.b16 %v633
    %v2767 = vunpack.c.h.b16 %v633
    %v2768 = vunpack.c.l.b16 %v634
    %v2769 = vunpack.c.h.b16 %v634
    %v2770 = vunpack.c.l.b16 %v635
    %v2771 = vunpack.c.h.b16 %v635
    %v2772 = vunpack.c.l.b16 %v636
    %v2773 = vunpack.c.h.b16 %v636
    %v2774 = vunpack.c.l.b16 %v637
    %v2775 = vunpack.c.h.b16 %v637
    %v2776 = vunpack.c.l.b16 %v638
    %v2777 = vunpack.c.h.b16 %v638
    %v2778 = vunpack.c.l.b16 %v639
    %v2779 = vunpack.c.h.b16 %v639
    %v2780 = vunpack.c.l.b16 %v640
    %v2781 = vunpack.c.h.b16 %v640
    %v2782 = vunpack.c.l.b16 %v641
    %v2783 = vunpack.c.h.b16 %v641
    %v2784 = vunpack.c.l.b16 %v642
    %v2785 = vunpack.c.h.b16 %v642
    %v2786 = vunpack.c.l.b16 %v643
    %v2787 = vunpack.c.h.b16 %v643
    %v2788 = vunpack.c.l.b16 %v644
    %v2789 = vunpack.c.h.b16 %v644
    %v2790 = vunpack.c.l.b16 %v645
    %v2791 = vunpack.c.h.b16 %v645
    %v2792 = vunpack.c.l.b16 %v646
    %v2793 = vunpack.c.h.b16 %v646
    %v2794 = vunpack.c.l.b16 %v647
    %v2795 = vunpack.c.h.b16 %v647
    %v2796 = vunpack.c.l.b16 %v648
    %v2797 = vunpack.c.h.b16 %v648
    %v2798 = vunpack.c.l.b16 %v649
    %v2799 = vunpack.c.h.b16 %v649
    %v2800 = vunpack.c.l.b16 %v650
    %v2801 = vunpack.c.h.b16 %v650
    %v2802 = vunpack.c.l.b16 %v651
    %v2803 = vunpack.c.h.b16 %v651
    %v2804 = vunpack.c.l.b16 %v652
    %v2805 = vunpack.c.h.b16 %v652
    %v2806 = vunpack.c.l.b16 %v653
    %v2807 = vunpack.c.h.b16 %v653
    %v2808 = vunpack.c.l.b16 %v654
    %v2809 = vunpack.c.h.b16 %v654
    %v2810 = vunpack.c.l.b16 %v655
    %v2811 = vunpack.c.h.b16 %v655
    %v2812 = vunpack.c.l.b16 %v656
    %v2813 = vunpack.c.h.b16 %v656
    %v2814 = vunpack.c.l.b16 %v657
    %v2815 = vunpack.c.h.b16 %v657
    %v2816 = vunpack.c.l.b16 %v658
    %v2817 = vunpack.c.h.b16 %v658
    %v2818 = vunpack.c.l.b16 %v659
    %v2819 = vunpack.c.h.b16 %v659
    %v2820 = vunpack.c.l.b16 %v660
    %v2821 = vunpack.c.h.b16 %v660
    %v2822 = vunpack.c.l.b16 %v661
    %v2823 = vunpack.c.h.b16 %v661
    %v2824 = vunpack.c.l.b16 %v662
    %v2825 = vunpack.c.h.b16 %v662
    %v2826 = vunpack.c.l.b16 %v663
    %v2827 = vunpack.c.h.b16 %v663
    %v2828 = vunpack.c.l.b16 %v664
    %v2829 = vunpack.c.h.b16 %v664
    %v2830 = vunpack.c.l.b16 %v665
    %v2831 = vunpack.c.h.b16 %v665
    %v2832 = vunpack.c.l.b16 %v666
    %v2833 = vunpack.c.h.b16 %v666
    %v2834 = vunpack.c.l.b16 %v667
    %v2835 = vunpack.c.h.b16 %v667
    %v2836 = vunpack.c.l.b16 %v668
    %v2837 = vunpack.c.h.b16 %v668
    %v2838 = vunpack.c.l.b16 %v669
    %v2839 = vunpack.c.h.b16 %v669
    %v2840 = vunpack.c.l.b16 %v670
    %v2841 = vunpack.c.h.b16 %v670
    %v2842 = vunpack.c.l.b16 %v671
    %v2843 = vunpack.c.h.b16 %v671
    %v2844 = vunpack.c.l.b16 %v672
    %v2845 = vunpack.c.h.b16 %v672
    %v2846 = vunpack.c.l.b16 %v673
    %v2847 = vunpack.c.h.b16 %v673
    %v2848 = vunpack.c.l.b16 %v674
    %v2849 = vunpack.c.h.b16 %v674
    %v2850 = vunpack.c.l.b16 %v675
    %v2851 = vunpack.c.h.b16 %v675
    %v2852 = vunpack.c.l.b16 %v676
    %v2853 = vunpack.c.h.b16 %v676
    %v2854 = vunpack.c.l.b16 %v677
    %v2855 = vunpack.c.h.b16 %v677
    %v2856 = vunpack.c.l.b16 %v678
    %v2857 = vunpack.c.h.b16 %v678
    %v2858 = vunpack.c.l.b16 %v679
    %v2859 = vunpack.c.h.b16 %v679
    %v2860 = vunpack.c.l.b16 %v680
    %v2861 = vunpack.c.h.b16 %v680
    %v2862 = vunpack.c.l.b16 %v681
    %v2863 = vunpack.c.h.b16 %v681
    %v2864 = vunpack.c.l.b16 %v682
    %v2865 = vunpack.c.h.b16 %v682
    %v2866 = vunpack.c.l.b16 %v683
    %v2867 = vunpack.c.h.b16 %v683
    %v2868 = vunpack.c.l.b16 %v684
    %v2869 = vunpack.c.h.b16 %v684
    %v2870 = vunpack.c.l.b16 %v685
    %v2871 = vunpack.c.h.b16 %v685
    %v2872 = vunpack.c.l.b16 %v686
    %v2873 = vunpack.c.h.b16 %v686
    %v2874 = vunpack.c.l.b16 %v687
    %v2875 = vunpack.c.h.b16 %v687
    %v2876 = vunpack.c.l.b16 %v688
    %v2877 = vunpack.c.h.b16 %v688
    %v2878 = vunpack.c.l.b16 %v689
    %v2879 = vunpack.c.h.b16 %v689
    %v2880 = vunpack.c.l.b16 %v690
    %v2881 = vunpack.c.h.b16 %v690
    %v2882 = vunpack.c.l.b16 %v691
    %v2883 = vunpack.c.h.b16 %v691
    %v2884 = vunpack.c.l.b16 %v692
    %v2885 = vunpack.c.h.b16 %v692
    %v2886 = vunpack.c.l.b16 %v693
    %v2887 = vunpack.c.h.b16 %v693
    %v2888 = vunpack.c.l.b16 %v694
    %v2889 = vunpack.c.h.b16 %v694
    %v2890 = vunpack.c.l.b16 %v695
    %v2891 = vunpack.c.h.b16 %v695
    %v2892 = vunpack.c.l.b16 %v696
    %v2893 = vunpack.c.h.b16 %v696
    %v2894 = vunpack.c.l.b16 %v697
    %v2895 = vunpack.c.h.b16 %v697
    %v2896 = vunpack.c.l.b16 %v698
    %v2897 = vunpack.c.h.b16 %v698
    %v2898 = vunpack.c.l.b16 %v699
    %v2899 = vunpack.c.h.b16 %v699
    %v2900 = vunpack.c.l.b16 %v700
    %v2901 = vunpack.c.h.b16 %v700
    %v2902 = vunpack.c.l.b16 %v701
    %v2903 = vunpack.c.h.b16 %v701
    %v2904 = vunpack.c.l.b16 %v702
    %v2905 = vunpack.c.h.b16 %v702
    %v2906 = vunpack.c.l.b16 %v703
    %v2907 = vunpack.c.h.b16 %v703
    %v2908 = vunpack.c.l.b16 %v704
    %v2909 = vunpack.c.h.b16 %v704
    %v2910 = vunpack.c.l.b16 %v705
    %v2911 = vunpack.c.h.b16 %v705
    %v2912 = vunpack.c.l.b16 %v706
    %v2913 = vunpack.c.h.b16 %v706
    %v2914 = vunpack.c.l.b16 %v707
    %v2915 = vunpack.c.h.b16 %v707
    %v2916 = vunpack.c.l.b16 %v708
    %v2917 = vunpack.c.h.b16 %v708
    %v2918 = vunpack.c.l.b16 %v709
    %v2919 = vunpack.c.h.b16 %v709
    %v2920 = vunpack.c.l.b16 %v710
    %v2921 = vunpack.c.h.b16 %v710
    %v2922 = vunpack.c.l.b16 %v711
    %v2923 = vunpack.c.h.b16 %v711
    %v2924 = vunpack.c.l.b16 %v712
    %v2925 = vunpack.c.h.b16 %v712
    %v2926 = vunpack.c.l.b16 %v713
    %v2927 = vunpack.c.h.b16 %v713
    %v2928 = vunpack.c.l.b16 %v714
    %v2929 = vunpack.c.h.b16 %v714
    %v2930 = vunpack.c.l.b16 %v715
    %v2931 = vunpack.c.h.b16 %v715
    %v2932 = vunpack.c.l.b16 %v716
    %v2933 = vunpack.c.h.b16 %v716
    %v2934 = vunpack.c.l.b16 %v717
    %v2935 = vunpack.c.h.b16 %v717
    %v2936 = vunpack.c.l.b16 %v718
    %v2937 = vunpack.c.h.b16 %v718
    %v2938 = vunpack.c.l.b16 %v719
    %v2939 = vunpack.c.h.b16 %v719
    %v2940 = vunpack.c.l.b16 %v720
    %v2941 = vunpack.c.h.b16 %v720
    %v2942 = vunpack.c.l.b16 %v721
    %v2943 = vunpack.c.h.b16 %v721
    %v2944 = vunpack.c.l.b16 %v722
    %v2945 = vunpack.c.h.b16 %v722
    %v2946 = vunpack.c.l.b16 %v723
    %v2947 = vunpack.c.h.b16 %v723
    %v2948 = vunpack.c.l.b16 %v724
    %v2949 = vunpack.c.h.b16 %v724
    %v2950 = vunpack.c.l.b16 %v725
    %v2951 = vunpack.c.h.b16 %v725
    %v2952 = vunpack.c.l.b16 %v726
    %v2953 = vunpack.c.h.b16 %v726
    %v2954 = vunpack.c.l.b16 %v727
    %v2955 = vunpack.c.h.b16 %v727
    %v2956 = vunpack.c.l.b16 %v728
    %v2957 = vunpack.c.h.b16 %v728
    %v2958 = vunpack.c.l.b16 %v729
    %v2959 = vunpack.c.h.b16 %v729
    %v2960 = vunpack.c.l.b16 %v730
    %v2961 = vunpack.c.h.b16 %v730
    %v2962 = vunpack.c.l.b16 %v731
    %v2963 = vunpack.c.h.b16 %v731
    %v2964 = vunpack.c.l.b16 %v732
    %v2965 = vunpack.c.h.b16 %v732
    %v2966 = vunpack.c.l.b16 %v733
    %v2967 = vunpack.c.h.b16 %v733
    %v2968 = vunpack.c.l.b16 %v734
    %v2969 = vunpack.c.h.b16 %v734
    %v2970 = vunpack.c.l.b16 %v735
    %v2971 = vunpack.c.h.b16 %v735
    %v2972 = vunpack.c.l.b16 %v736
    %v2973 = vunpack.c.h.b16 %v736
    %v2974 = vunpack.c.l.b16 %v737
    %v2975 = vunpack.c.h.b16 %v737
    %v2976 = vunpack.c.l.b16 %v738
    %v2977 = vunpack.c.h.b16 %v738
    %v2978 = vunpack.c.l.b16 %v739
    %v2979 = vunpack.c.h.b16 %v739
    %v2980 = vunpack.c.l.b16 %v740
    %v2981 = vunpack.c.h.b16 %v740
    %v2982 = vunpack.c.l.b16 %v741
    %v2983 = vunpack.c.h.b16 %v741
    %v2984 = vunpack.c.l.b16 %v742
    %v2985 = vunpack.c.h.b16 %v742
    %v2986 = vunpack.c.l.b16 %v743
    %v2987 = vunpack.c.h.b16 %v743
    %v2988 = vunpack.c.l.b16 %v744
    %v2989 = vunpack.c.h.b16 %v744
    %v2990 = vunpack.c.l.b16 %v745
    %v2991 = vunpack.c.h.b16 %v745
    %v2992 = vunpack.c.l.b16 %v746
    %v2993 = vunpack.c.h.b16 %v746
    %v2994 = vunpack.c.l.b16 %v747
    %v2995 = vunpack.c.h.b16 %v747
    %v2996 = vunpack.c.l.b16 %v748
    %v2997 = vunpack.c.h.b16 %v748
    %v2998 = vunpack.c.l.b16 %v749
    %v2999 = vunpack.c.h.b16 %v749
    %v3000 = vunpack.c.l.b16 %v750
    %v3001 = vunpack.c.h.b16 %v750
    %v3002 = vunpack.c.l.b16 %v751
    %v3003 = vunpack.c.h.b16 %v751
    %v3004 = vunpack.c.l.b16 %v752
    %v3005 = vunpack.c.h.b16 %v752
    %v3006 = vunpack.c.l.b16 %v753
    %v3007 = vunpack.c.h.b16 %v753
    %v3008 = vunpack.c.l.b16 %v754
    %v3009 = vunpack.c.h.b16 %v754
    %v3010 = vunpack.c.l.b16 %v755
    %v3011 = vunpack.c.h.b16 %v755
    %v3012 = vunpack.c.l.b16 %v756
    %v3013 = vunpack.c.h.b16 %v756
    %v3014 = vunpack.c.l.b16 %v757
    %v3015 = vunpack.c.h.b16 %v757
    %v3016 = vunpack.c.l.b16 %v758
    %v3017 = vunpack.c.h.b16 %v758
    %v3018 = vunpack.c.l.b16 %v759
    %v3019 = vunpack.c.h.b16 %v759
    %v3020 = vunpack.c.l.b16 %v760
    %v3021 = vunpack.c.h.b16 %v760
    %v3022 = vunpack.c.l.b16 %v761
    %v3023 = vunpack.c.h.b16 %v761
    %v3024 = vunpack.c.l.b16 %v762
    %v3025 = vunpack.c.h.b16 %v762
    %v3026 = vunpack.c.l.b16 %v763
    %v3027 = vunpack.c.h.b16 %v763
    %v3028 = vunpack.c.l.b16 %v764
    %v3029 = vunpack.c.h.b16 %v764
    %v3030 = vunpack.c.l.b16 %v765
    %v3031 = vunpack.c.h.b16 %v765
    %v3032 = vunpack.c.l.b16 %v766
    %v3033 = vunpack.c.h.b16 %v766
    %v3034 = vunpack.c.l.b16 %v767
    %v3035 = vunpack.c.h.b16 %v767
    %v3036 = vunpack.c.l.b16 %v768
    %v3037 = vunpack.c.h.b16 %v768
    %v3038 = vunpack.c.l.b16 %v769
    %v3039 = vunpack.c.h.b16 %v769
    %v3040 = vunpack.c.l.b16 %v770
    %v3041 = vunpack.c.h.b16 %v770
    %v3042 = vunpack.c.l.b16 %v771
    %v3043 = vunpack.c.h.b16 %v771
    %v3044 = vunpack.c.l.b16 %v772
    %v3045 = vunpack.c.h.b16 %v772
    %v3046 = vunpack.c.l.b16 %v773
    %v3047 = vunpack.c.h.b16 %v773
    %v3048 = vunpack.c.l.b16 %v774
    %v3049 = vunpack.c.h.b16 %v774
    %v3050 = vunpack.c.l.b16 %v775
    %v3051 = vunpack.c.h.b16 %v775
    %v3052 = vunpack.c.l.b16 %v776
    %v3053 = vunpack.c.h.b16 %v776
    %v3054 = vunpack.c.l.b16 %v777
    %v3055 = vunpack.c.h.b16 %v777
    %v3056 = vpack.c.b16 %v1650, %v1648
    %v3057 = vpack.c.b16 %v1651, %v1649
    %v3058 = vpack.c.b16 %v1654, %v1652
    %v3059 = vpack.c.b16 %v1655, %v1653
    %v3060 = vpack.c.b16 %v1658, %v1656
    %v3061 = vpack.c.b16 %v1659, %v1657
    %v3062 = vpack.c.b16 %v1662, %v1660
    %v3063 = vpack.c.b16 %v1663, %v1661
    %v3064 = vpack.c.b16 %v1666, %v1664
    %v3065 = vpack.c.b16 %v1667, %v1665
    %v3066 = vpack.c.b16 %v1670, %v1668
    %v3067 = vpack.c.b16 %v1671, %v1669
    %v3068 = vpack.c.b16 %v1674, %v1672
    %v3069 = vpack.c.b16 %v1675, %v1673
    %v3070 = vpack.c.b16 %v1678, %v1676
    %v3071 = vpack.c.b16 %v1679, %v1677
    %v3072 = vpack.c.b16 %v1682, %v1680
    %v3073 = vpack.c.b16 %v1683, %v1681
    %v3074 = vpack.c.b16 %v1686, %v1684
    %v3075 = vpack.c.b16 %v1687, %v1685
    %v3076 = vpack.c.b16 %v1690, %v1688
    %v3077 = vpack.c.b16 %v1691, %v1689
    %v3078 = vpack.c.b16 %v1694, %v1692
    %v3079 = vpack.c.b16 %v1695, %v1693
    %v3080 = vpack.c.b16 %v1698, %v1696
    %v3081 = vpack.c.b16 %v1699, %v1697
    %v3082 = vpack.c.b16 %v1702, %v1700
    %v3083 = vpack.c.b16 %v1703, %v1701
    %v3084 = vpack.c.b16 %v1706, %v1704
    %v3085 = vpack.c.b16 %v1707, %v1705
    %v3086 = vpack.c.b16 %v1710, %v1708
    %v3087 = vpack.c.b16 %v1711, %v1709
    %v3088 = vpack.c.b16 %v1714, %v1712
    %v3089 = vpack.c.b16 %v1715, %v1713
    %v3090 = vpack.c.b16 %v1718, %v1716
    %v3091 = vpack.c.b16 %v1719, %v1717
    %v3092 = vpack.c.b16 %v1722, %v1720
    %v3093 = vpack.c.b16 %v1723, %v1721
    %v3094 = vpack.c.b16 %v1726, %v1724
    %v3095 = vpack.c.b16 %v1727, %v1725
    %v3096 = vpack.c.b16 %v1730, %v1728
    %v3097 = vpack.c.b16 %v1731, %v1729
    %v3098 = vpack.c.b16 %v1734, %v1732
    %v3099 = vpack.c.b16 %v1735, %v1733
    %v3100 = vpack.c.b16 %v1738, %v1736
    %v3101 = vpack.c.b16 %v1739, %v1737
    %v3102 = vpack.c.b16 %v1742, %v1740
    %v3103 = vpack.c.b16 %v1743, %v1741
    %v3104 = vpack.c.b16 %v1746, %v1744
    %v3105 = vpack.c.b16 %v1747, %v1745
    %v3106 = vpack.c.b16 %v1750, %v1748
    %v3107 = vpack.c.b16 %v1751, %v1749
    %v3108 = vpack.c.b16 %v1754, %v1752
    %v3109 = vpack.c.b16 %v1755, %v1753
    %v3110 = vpack.c.b16 %v1758, %v1756
    %v3111 = vpack.c.b16 %v1759, %v1757
    %v3112 = vpack.c.b16 %v1762, %v1760
    %v3113 = vpack.c.b16 %v1763, %v1761
    %v3114 = vpack.c.b16 %v1766, %v1764
    %v3115 = vpack.c.b16 %v1767, %v1765
    %v3116 = vpack.c.b16 %v1770, %v1768
    %v3117 = vpack.c.b16 %v1771, %v1769
    %v3118 = vpack.c.b16 %v1774, %v1772
    %v3119 = vpack.c.b16 %v1775, %v1773
    %v3120 = vpack.c.b16 %v1778, %v1776
    %v3121 = vpack.c.b16 %v1779, %v1777
    %v3122 = vpack.c.b16 %v1782, %v1780
    %v3123 = vpack.c.b16 %v1783, %v1781
    %v3124 = vpack.c.b16 %v1786, %v1784
    %v3125 = vpack.c.b16 %v1787, %v1785
    %v3126 = vpack.c.b16 %v1790, %v1788
    %v3127 = vpack.c.b16 %v1791, %v1789
    %v3128 = vpack.c.b16 %v1794, %v1792
    %v3129 = vpack.c.b16 %v1795, %v1793
    %v3130 = vpack.c.b16 %v1798, %v1796
    %v3131 = vpack.c.b16 %v1799, %v1797
    %v3132 = vpack.c.b16 %v1802, %v1800
    %v3133 = vpack.c.b16 %v1803, %v1801
    %v3134 = vpack.c.b16 %v1806, %v1804
    %v3135 = vpack.c.b16 %v1807, %v1805
    %v3136 = vpack.c.b16 %v1810, %v1808
    %v3137 = vpack.c.b16 %v1811, %v1809
    %v3138 = vpack.c.b16 %v1814, %v1812
    %v3139 = vpack.c.b16 %v1815, %v1813
    %v3140 = vpack.c.b16 %v1818, %v1816
    %v3141 = vpack.c.b16 %v1819, %v1817
    %v3142 = vpack.c.b16 %v1822, %v1820
    %v3143 = vpack.c.b16 %v1823, %v1821
    %v3144 = vpack.c.b16 %v1826, %v1824
    %v3145 = vpack.c.b16 %v1827, %v1825
    %v3146 = vpack.c.b16 %v1830, %v1828
    %v3147 = vpack.c.b16 %v1831, %v1829
    %v3148 = vpack.c.b16 %v1834, %v1832
    %v3149 = vpack.c.b16 %v1835, %v1833
    %v3150 = vpack.c.b16 %v1838, %v1836
    %v3151 = vpack.c.b16 %v1839, %v1837
    %v3152 = vpack.c.b16 %v1842, %v1840
    %v3153 = vpack.c.b16 %v1843, %v1841
    %v3154 = vpack.c.b16 %v1846, %v1844
    %v3155 = vpack.c.b16 %v1847, %v1845
    %v3156 = vpack.c.b16 %v1850, %v1848
    %v3157 = vpack.c.b16 %v1851, %v1849
    %v3158 = vpack.c.b16 %v1854, %v1852
    %v3159 = vpack.c.b16 %v1855, %v1853
    %v3160 = vpack.c.b16 %v1858, %v1856
    %v3161 = vpack.c.b16 %v1859, %v1857
    %v3162 = vpack.c.b16 %v1862, %v1860
    %v3163 = vpack.c.b16 %v1863, %v1861
    %v3164 = vpack.c.b16 %v1866, %v1864
    %v3165 = vpack.c.b16 %v1867, %v1865
    %v3166 = vpack.c.b16 %v1870, %v1868
    %v3167 = vpack.c.b16 %v1871, %v1869
    %v3168 = vpack.c.b16 %v1874, %v1872
    %v3169 = vpack.c.b16 %v1875, %v1873
    %v3170 = vpack.c.b16 %v1878, %v1876
    %v3171 = vpack.c.b16 %v1879, %v1877
    %v3172 = vpack.c.b16 %v1882, %v1880
    %v3173 = vpack.c.b16 %v1883, %v1881
    %v3174 = vpack.c.b16 %v1886, %v1884
    %v3175 = vpack.c.b16 %v1887, %v1885
    %v3176 = vpack.c.b16 %v1890, %v1888
    %v3177 = vpack.c.b16 %v1891, %v1889
    %v3178 = vpack.c.b16 %v1894, %v1892
    %v3179 = vpack.c.b16 %v1895, %v1893
    %v3180 = vpack.c.b16 %v1898, %v1896
    %v3181 = vpack.c.b16 %v1899, %v1897
    %v3182 = vpack.c.b16 %v1902, %v1900
    %v3183 = vpack.c.b16 %v1903, %v1901
    %v3184 = vpack.c.b16 %v1906, %v1904
    %v3185 = vpack.c.b16 %v1907, %v1905
    %v3186 = vpack.c.b16 %v1910, %v1908
    %v3187 = vpack.c.b16 %v1911, %v1909
    %v3188 = vpack.c.b16 %v1914, %v1912
    %v3189 = vpack.c.b16 %v1915, %v1913
    %v3190 = vpack.c.b16 %v1918, %v1916
    %v3191 = vpack.c.b16 %v1919, %v1917
    %v3192 = vpack.c.b16 %v1922, %v1920
    %v3193 = vpack.c.b16 %v1923, %v1921
    %v3194 = vpack.c.b16 %v1926, %v1924
    %v3195 = vpack.c.b16 %v1927, %v1925
    %v3196 = vpack.c.b16 %v1930, %v1928
    %v3197 = vpack.c.b16 %v1931, %v1929
    %v3198 = vpack.c.b16 %v1934, %v1932
    %v3199 = vpack.c.b16 %v1935, %v1933
    %v3200 = vpack.c.b16 %v1938, %v1936
    %v3201 = vpack.c.b16 %v1939, %v1937
    %v3202 = vpack.c.b16 %v1942, %v1940
    %v3203 = vpack.c.b16 %v1943, %v1941
    %v3204 = vpack.c.b16 %v1946, %v1944
    %v3205 = vpack.c.b16 %v1947, %v1945
    %v3206 = vpack.c.b16 %v1950, %v1948
    %v3207 = vpack.c.b16 %v1951, %v1949
    %v3208 = vpack.c.b16 %v1954, %v1952
    %v3209 = vpack.c.b16 %v1955, %v1953
    %v3210 = vpack.c.b16 %v1958, %v1956
    %v3211 = vpack.c.b16 %v1959, %v1957
    %v3212 = vpack.c.b16 %v1962, %v1960
    %v3213 = vpack.c.b16 %v1963, %v1961
    %v3214 = vpack.c.b16 %v1966, %v1964
    %v3215 = vpack.c.b16 %v1967, %v1965
    %v3216 = vpack.c.b16 %v1970, %v1968
    %v3217 = vpack.c.b16 %v1971, %v1969
    %v3218 = vpack.c.b16 %v1974, %v1972
    %v3219 = vpack.c.b16 %v1975, %v1973
    %v3220 = vpack.c.b16 %v1978, %v1976
    %v3221 = vpack.c.b16 %v1979, %v1977
    %v3222 = vpack.c.b16 %v1982, %v1980
    %v3223 = vpack.c.b16 %v1983, %v1981
    %v3224 = vpack.c.b16 %v1986, %v1984
    %v3225 = vpack.c.b16 %v1987, %v1985
    %v3226 = vpack.c.b16 %v1990, %v1988
    %v3227 = vpack.c.b16 %v1991, %v1989
    %v3228 = vpack.c.b16 %v1994, %v1992
    %v3229 = vpack.c.b16 %v1995, %v1993
    %v3230 = vpack.c.b16 %v1998, %v1996
    %v3231 = vpack.c.b16 %v1999, %v1997
    %v3232 = vpack.c.b16 %v2002, %v2000
    %v3233 = vpack.c.b16 %v2003, %v2001
    %v3234 = vpack.c.b16 %v2006, %v2004
    %v3235 = vpack.c.b16 %v2007, %v2005
    %v3236 = vpack.c.b16 %v2010, %v2008
    %v3237 = vpack.c.b16 %v2011, %v2009
    %v3238 = vpack.c.b16 %v2014, %v2012
    %v3239 = vpack.c.b16 %v2015, %v2013
    %v3240 = vpack.c.b16 %v2018, %v2016
    %v3241 = vpack.c.b16 %v2019, %v2017
    %v3242 = vpack.c.b16 %v2022, %v2020
    %v3243 = vpack.c.b16 %v2023, %v2021
    %v3244 = vpack.c.b16 %v2026, %v2024
    %v3245 = vpack.c.b16 %v2027, %v2025
    %v3246 = vpack.c.b16 %v2030, %v2028
    %v3247 = vpack.c.b16 %v2031, %v2029
    %v3248 = vpack.c.b16 %v2034, %v2032
    %v3249 = vpack.c.b16 %v2035, %v2033
    %v3250 = vpack.c.b16 %v2038, %v2036
    %v3251 = vpack.c.b16 %v2039, %v2037
    %v3252 = vpack.c.b16 %v2042, %v2040
    %v3253 = vpack.c.b16 %v2043, %v2041
    %v3254 = vpack.c.b16 %v2046, %v2044
    %v3255 = vpack.c.b16 %v2047, %v2045
    %v3256 = vpack.c.b16 %v2050, %v2048
    %v3257 = vpack.c.b16 %v2051, %v2049
    %v3258 = vpack.c.b16 %v2054, %v2052
    %v3259 = vpack.c.b16 %v2055, %v2053
    %v3260 = vpack.c.b16 %v2058, %v2056
    %v3261 = vpack.c.b16 %v2059, %v2057
    %v3262 = vpack.c.b16 %v2062, %v2060
    %v3263 = vpack.c.b16 %v2063, %v2061
    %v3264 = vpack.c.b16 %v2066, %v2064
    %v3265 = vpack.c.b16 %v2067, %v2065
    %v3266 = vpack.c.b16 %v2070, %v2068
    %v3267 = vpack.c.b16 %v2071, %v2069
    %v3268 = vpack.c.b16 %v2074, %v2072
    %v3269 = vpack.c.b16 %v2075, %v2073
    %v3270 = vpack.c.b16 %v2078, %v2076
    %v3271 = vpack.c.b16 %v2079, %v2077
    %v3272 = vpack.c.b16 %v2082, %v2080
    %v3273 = vpack.c.b16 %v2083, %v2081
    %v3274 = vpack.c.b16 %v2086, %v2084
    %v3275 = vpack.c.b16 %v2087, %v2085
    %v3276 = vpack.c.b16 %v2090, %v2088
    %v3277 = vpack.c.b16 %v2091, %v2089
    %v3278 = vpack.c.b16 %v2094, %v2092
    %v3279 = vpack.c.b16 %v2095, %v2093
    %v3280 = vpack.c.b16 %v2098, %v2096
    %v3281 = vpack.c.b16 %v2099, %v2097
    %v3282 = vpack.c.b16 %v2102, %v2100
    %v3283 = vpack.c.b16 %v2103, %v2101
    %v3284 = vpack.c.b16 %v2106, %v2104
    %v3285 = vpack.c.b16 %v2107, %v2105
    %v3286 = vpack.c.b16 %v2110, %v2108
    %v3287 = vpack.c.b16 %v2111, %v2109
    %v3288 = vpack.c.b16 %v2114, %v2112
    %v3289 = vpack.c.b16 %v2115, %v2113
    %v3290 = vpack.c.b16 %v2118, %v2116
    %v3291 = vpack.c.b16 %v2119, %v2117
    %v3292 = vpack.c.b16 %v2122, %v2120
    %v3293 = vpack.c.b16 %v2123, %v2121
    %v3294 = vpack.c.b16 %v2126, %v2124
    %v3295 = vpack.c.b16 %v2127, %v2125
    %v3296 = vpack.c.b16 %v2130, %v2128
    %v3297 = vpack.c.b16 %v2131, %v2129
    %v3298 = vpack.c.b16 %v2134, %v2132
    %v3299 = vpack.c.b16 %v2135, %v2133
    %v3300 = vpack.c.b16 %v2138, %v2136
    %v3301 = vpack.c.b16 %v2139, %v2137
    %v3302 = vpack.c.b16 %v2142, %v2140
    %v3303 = vpack.c.b16 %v2143, %v2141
    %v3304 = vpack.c.b16 %v2146, %v2144
    %v3305 = vpack.c.b16 %v2147, %v2145
    %v3306 = vpack.c.b16 %v2150, %v2148
    %v3307 = vpack.c.b16 %v2151, %v2149
    %v3308 = vpack.c.b16 %v2154, %v2152
    %v3309 = vpack.c.b16 %v2155, %v2153
    %v3310 = vpack.c.b16 %v2158, %v2156
    %v3311 = vpack.c.b16 %v2159, %v2157
    %v3312 = vpack.c.b16 %v2162, %v2160
    %v3313 = vpack.c.b16 %v2163, %v2161
    %v3314 = vpack.c.b16 %v2166, %v2164
    %v3315 = vpack.c.b16 %v2167, %v2165
    %v3316 = vpack.c.b16 %v2170, %v2168
    %v3317 = vpack.c.b16 %v2171, %v2169
    %v3318 = vpack.c.b16 %v2174, %v2172
    %v3319 = vpack.c.b16 %v2175, %v2173
    %v3320 = vpack.c.b16 %v2178, %v2176
    %v3321 = vpack.c.b16 %v2179, %v2177
    %v3322 = vpack.c.b16 %v2182, %v2180
    %v3323 = vpack.c.b16 %v2183, %v2181
    %v3324 = vpack.c.b16 %v2186, %v2184
    %v3325 = vpack.c.b16 %v2187, %v2185
    %v3326 = vpack.c.b16 %v2190, %v2188
    %v3327 = vpack.c.b16 %v2191, %v2189
    %v3328 = vpack.c.b16 %v2194, %v2192
    %v3329 = vpack.c.b16 %v2195, %v2193
    %v3330 = vpack.c.b16 %v2198, %v2196
    %v3331 = vpack.c.b16 %v2199, %v2197
    %v3332 = vpack.c.b16 %v2202, %v2200
    %v3333 = vpack.c.b16 %v2203, %v2201
    %v3334 = vpack.c.b16 %v2206, %v2204
    %v3335 = vpack.c.b16 %v2207, %v2205
    %v3336 = vpack.c.b16 %v2210, %v2208
    %v3337 = vpack.c.b16 %v2211, %v2209
    %v3338 = vpack.c.b16 %v2214, %v2212
    %v3339 = vpack.c.b16 %v2215, %v2213
    %v3340 = vpack.c.b16 %v2218, %v2216
    %v3341 = vpack.c.b16 %v2219, %v2217
    %v3342 = vpack.c.b16 %v2222, %v2220
    %v3343 = vpack.c.b16 %v2223, %v2221
    %v3344 = vpack.c.b16 %v2226, %v2224
    %v3345 = vpack.c.b16 %v2227, %v2225
    %v3346 = vpack.c.b16 %v2230, %v2228
    %v3347 = vpack.c.b16 %v2231, %v2229
    %v3348 = vpack.c.b16 %v2234, %v2232
    %v3349 = vpack.c.b16 %v2235, %v2233
    %v3350 = vpack.c.b16 %v2238, %v2236
    %v3351 = vpack.c.b16 %v2239, %v2237
    %v3352 = vpack.c.b16 %v2242, %v2240
    %v3353 = vpack.c.b16 %v2243, %v2241
    %v3354 = vpack.c.b16 %v2246, %v2244
    %v3355 = vpack.c.b16 %v2247, %v2245
    %v3356 = vpack.c.b16 %v2250, %v2248
    %v3357 = vpack.c.b16 %v2251, %v2249
    %v3358 = vpack.c.b16 %v2254, %v2252
    %v3359 = vpack.c.b16 %v2255, %v2253
    %v3360 = vpack.c.b16 %v2258, %v2256
    %v3361 = vpack.c.b16 %v2259, %v2257
    %v3362 = vpack.c.b16 %v2262, %v2260
    %v3363 = vpack.c.b16 %v2263, %v2261
    %v3364 = vpack.c.b16 %v2266, %v2264
    %v3365 = vpack.c.b16 %v2267, %v2265
    %v3366 = vpack.c.b16 %v2270, %v2268
    %v3367 = vpack.c.b16 %v2271, %v2269
    %v3368 = vpack.c.b16 %v2274, %v2272
    %v3369 = vpack.c.b16 %v2275, %v2273
    %v3370 = vpack.c.b16 %v2278, %v2276
    %v3371 = vpack.c.b16 %v2279, %v2277
    %v3372 = vpack.c.b16 %v2282, %v2280
    %v3373 = vpack.c.b16 %v2283, %v2281
    %v3374 = vpack.c.b16 %v2286, %v2284
    %v3375 = vpack.c.b16 %v2287, %v2285
    %v3376 = vpack.c.b16 %v2290, %v2288
    %v3377 = vpack.c.b16 %v2291, %v2289
    %v3378 = vpack.c.b16 %v2294, %v2292
    %v3379 = vpack.c.b16 %v2295, %v2293
    %v3380 = vpack.c.b16 %v2298, %v2296
    %v3381 = vpack.c.b16 %v2299, %v2297
    %v3382 = vpack.c.b16 %v2302, %v2300
    %v3383 = vpack.c.b16 %v2303, %v2301
    %v3384 = vpack.c.b16 %v2306, %v2304
    %v3385 = vpack.c.b16 %v2307, %v2305
    %v3386 = vpack.c.b16 %v2310, %v2308
    %v3387 = vpack.c.b16 %v2311, %v2309
    %v3388 = vpack.c.b16 %v2314, %v2312
    %v3389 = vpack.c.b16 %v2315, %v2313
    %v3390 = vpack.c.b16 %v2318, %v2316
    %v3391 = vpack.c.b16 %v2319, %v2317
    %v3392 = vpack.c.b16 %v2322, %v2320
    %v3393 = vpack.c.b16 %v2323, %v2321
    %v3394 = vpack.c.b16 %v2326, %v2324
    %v3395 = vpack.c.b16 %v2327, %v2325
    %v3396 = vpack.c.b16 %v2330, %v2328
    %v3397 = vpack.c.b16 %v2331, %v2329
    %v3398 = vpack.c.b16 %v2334, %v2332
    %v3399 = vpack.c.b16 %v2335, %v2333
    %v3400 = vpack.c.b16 %v2338, %v2336
    %v3401 = vpack.c.b16 %v2339, %v2337
    %v3402 = vpack.c.b16 %v2342, %v2340
    %v3403 = vpack.c.b16 %v2343, %v2341
    %v3404 = vpack.c.b16 %v2346, %v2344
    %v3405 = vpack.c.b16 %v2347, %v2345
    %v3406 = vpack.c.b16 %v2350, %v2348
    %v3407 = vpack.c.b16 %v2351, %v2349
    %v3408 = vpack.c.b16 %v2354, %v2352
    %v3409 = vpack.c.b16 %v2355, %v2353
    %v3410 = vpack.c.b16 %v2358, %v2356
    %v3411 = vpack.c.b16 %v2359, %v2357
    %v3412 = vpack.c.b16 %v2362, %v2360
    %v3413 = vpack.c.b16 %v2363, %v2361
    %v3414 = vpack.c.b16 %v2366, %v2364
    %v3415 = vpack.c.b16 %v2367, %v2365
    %v3416 = vpack.c.b16 %v2370, %v2368
    %v3417 = vpack.c.b16 %v2371, %v2369
    %v3418 = vpack.c.b16 %v2374, %v2372
    %v3419 = vpack.c.b16 %v2375, %v2373
    %v3420 = vpack.c.b16 %v2378, %v2376
    %v3421 = vpack.c.b16 %v2379, %v2377
    %v3422 = vpack.c.b16 %v2382, %v2380
    %v3423 = vpack.c.b16 %v2383, %v2381
    %v3424 = vpack.c.b16 %v2386, %v2384
    %v3425 = vpack.c.b16 %v2387, %v2385
    %v3426 = vpack.c.b16 %v2390, %v2388
    %v3427 = vpack.c.b16 %v2391, %v2389
    %v3428 = vpack.c.b16 %v2394, %v2392
    %v3429 = vpack.c.b16 %v2395, %v2393
    %v3430 = vpack.c.b16 %v2398, %v2396
    %v3431 = vpack.c.b16 %v2399, %v2397
    %v3432 = vpack.c.b16 %v2402, %v2400
    %v3433 = vpack.c.b16 %v2403, %v2401
    %v3434 = vpack.c.b16 %v2406, %v2404
    %v3435 = vpack.c.b16 %v2407, %v2405
    %v3436 = vpack.c.b16 %v2410, %v2408
    %v3437 = vpack.c.b16 %v2411, %v2409
    %v3438 = vpack.c.b16 %v2414, %v2412
    %v3439 = vpack.c.b16 %v2415, %v2413
    %v3440 = vpack.c.b16 %v2418, %v2416
    %v3441 = vpack.c.b16 %v2419, %v2417
    %v3442 = vpack.c.b16 %v2422, %v2420
    %v3443 = vpack.c.b16 %v2423, %v2421
    %v3444 = vpack.c.b16 %v2426, %v2424
    %v3445 = vpack.c.b16 %v2427, %v2425
    %v3446 = vpack.c.b16 %v2430, %v2428
    %v3447 = vpack.c.b16 %v2431, %v2429
    %v3448 = vpack.c.b16 %v2434, %v2432
    %v3449 = vpack.c.b16 %v2435, %v2433
    %v3450 = vpack.c.b16 %v2438, %v2436
    %v3451 = vpack.c.b16 %v2439, %v2437
    %v3452 = vpack.c.b16 %v2442, %v2440
    %v3453 = vpack.c.b16 %v2443, %v2441
    %v3454 = vpack.c.b16 %v2446, %v2444
    %v3455 = vpack.c.b16 %v2447, %v2445
    %v3456 = vpack.c.b16 %v2450, %v2448
    %v3457 = vpack.c.b16 %v2451, %v2449
    %v3458 = vpack.c.b16 %v2454, %v2452
    %v3459 = vpack.c.b16 %v2455, %v2453
    %v3460 = vpack.c.b16 %v2458, %v2456
    %v3461 = vpack.c.b16 %v2459, %v2457
    %v3462 = vpack.c.b16 %v2462, %v2460
    %v3463 = vpack.c.b16 %v2463, %v2461
    %v3464 = vpack.c.b16 %v2466, %v2464
    %v3465 = vpack.c.b16 %v2467, %v2465
    %v3466 = vpack.c.b16 %v2470, %v2468
    %v3467 = vpack.c.b16 %v2471, %v2469
    %v3468 = vpack.c.b16 %v2474, %v2472
    %v3469 = vpack.c.b16 %v2475, %v2473
    %v3470 = vpack.c.b16 %v2478, %v2476
    %v3471 = vpack.c.b16 %v2479, %v2477
    %v3472 = vpack.c.b16 %v2482, %v2480
    %v3473 = vpack.c.b16 %v2483, %v2481
    %v3474 = vpack.c.b16 %v2486, %v2484
    %v3475 = vpack.c.b16 %v2487, %v2485
    %v3476 = vpack.c.b16 %v2490, %v2488
    %v3477 = vpack.c.b16 %v2491, %v2489
    %v3478 = vpack.c.b16 %v2494, %v2492
    %v3479 = vpack.c.b16 %v2495, %v2493
    %v3480 = vpack.c.b16 %v2498, %v2496
    %v3481 = vpack.c.b16 %v2499, %v2497
    %v3482 = vpack.c.b16 %v2502, %v2500
    %v3483 = vpack.c.b16 %v2503, %v2501
    %v3484 = vpack.c.b16 %v2506, %v2504
    %v3485 = vpack.c.b16 %v2507, %v2505
    %v3486 = vpack.c.b16 %v2510, %v2508
    %v3487 = vpack.c.b16 %v2511, %v2509
    %v3488 = vpack.c.b16 %v2514, %v2512
    %v3489 = vpack.c.b16 %v2515, %v2513
    %v3490 = vpack.c.b16 %v2518, %v2516
    %v3491 = vpack.c.b16 %v2519, %v2517
    %v3492 = vpack.c.b16 %v2522, %v2520
    %v3493 = vpack.c.b16 %v2523, %v2521
    %v3494 = vpack.c.b16 %v2526, %v2524
    %v3495 = vpack.c.b16 %v2527, %v2525
    %v3496 = vpack.c.b16 %v2530, %v2528
    %v3497 = vpack.c.b16 %v2531, %v2529
    %v3498 = vpack.c.b16 %v2534, %v2532
    %v3499 = vpack.c.b16 %v2535, %v2533
    %v3500 = vpack.c.b16 %v2538, %v2536
    %v3501 = vpack.c.b16 %v2539, %v2537
    %v3502 = vpack.c.b16 %v2542, %v2540
    %v3503 = vpack.c.b16 %v2543, %v2541
    %v3504 = vpack.c.b16 %v2546, %v2544
    %v3505 = vpack.c.b16 %v2547, %v2545
    %v3506 = vpack.c.b16 %v2550, %v2548
    %v3507 = vpack.c.b16 %v2551, %v2549
    %v3508 = vpack.c.b16 %v2554, %v2552
    %v3509 = vpack.c.b16 %v2555, %v2553
    %v3510 = vpack.c.b16 %v2558, %v2556
    %v3511 = vpack.c.b16 %v2559, %v2557
    %v3512 = vpack.c.b16 %v2562, %v2560
    %v3513 = vpack.c.b16 %v2563, %v2561
    %v3514 = vpack.c.b16 %v2566, %v2564
    %v3515 = vpack.c.b16 %v2567, %v2565
    %v3516 = vpack.c.b16 %v2570, %v2568
    %v3517 = vpack.c.b16 %v2571, %v2569
    %v3518 = vpack.c.b16 %v2574, %v2572
    %v3519 = vpack.c.b16 %v2575, %v2573
    %v3520 = vpack.c.b16 %v2578, %v2576
    %v3521 = vpack.c.b16 %v2579, %v2577
    %v3522 = vpack.c.b16 %v2582, %v2580
    %v3523 = vpack.c.b16 %v2583, %v2581
    %v3524 = vpack.c.b16 %v2586, %v2584
    %v3525 = vpack.c.b16 %v2587, %v2585
    %v3526 = vpack.c.b16 %v2590, %v2588
    %v3527 = vpack.c.b16 %v2591, %v2589
    %v3528 = vpack.c.b16 %v2594, %v2592
    %v3529 = vpack.c.b16 %v2595, %v2593
    %v3530 = vpack.c.b16 %v2598, %v2596
    %v3531 = vpack.c.b16 %v2599, %v2597
    %v3532 = vpack.c.b16 %v2602, %v2600
    %v3533 = vpack.c.b16 %v2603, %v2601
    %v3534 = vpack.c.b16 %v2606, %v2604
    %v3535 = vpack.c.b16 %v2607, %v2605
    %v3536 = vpack.c.b16 %v2610, %v2608
    %v3537 = vpack.c.b16 %v2611, %v2609
    %v3538 = vpack.c.b16 %v2614, %v2612
    %v3539 = vpack.c.b16 %v2615, %v2613
    %v3540 = vpack.c.b16 %v2618, %v2616
    %v3541 = vpack.c.b16 %v2619, %v2617
    %v3542 = vpack.c.b16 %v2622, %v2620
    %v3543 = vpack.c.b16 %v2623, %v2621
    %v3544 = vpack.c.b16 %v2626, %v2624
    %v3545 = vpack.c.b16 %v2627, %v2625
    %v3546 = vpack.c.b16 %v2630, %v2628
    %v3547 = vpack.c.b16 %v2631, %v2629
    %v3548 = vpack.c.b16 %v2634, %v2632
    %v3549 = vpack.c.b16 %v2635, %v2633
    %v3550 = vpack.c.b16 %v2638, %v2636
    %v3551 = vpack.c.b16 %v2639, %v2637
    %v3552 = vpack.c.b16 %v2642, %v2640
    %v3553 = vpack.c.b16 %v2643, %v2641
    %v3554 = vpack.c.b16 %v2646, %v2644
    %v3555 = vpack.c.b16 %v2647, %v2645
    %v3556 = vpack.c.b16 %v2650, %v2648
    %v3557 = vpack.c.b16 %v2651, %v2649
    %v3558 = vpack.c.b16 %v2654, %v2652
    %v3559 = vpack.c.b16 %v2655, %v2653
    %v3560 = vpack.c.b16 %v2658, %v2656
    %v3561 = vpack.c.b16 %v2659, %v2657
    %v3562 = vpack.c.b16 %v2662, %v2660
    %v3563 = vpack.c.b16 %v2663, %v2661
    %v3564 = vpack.c.b16 %v2666, %v2664
    %v3565 = vpack.c.b16 %v2667, %v2665
    %v3566 = vpack.c.b16 %v2670, %v2668
    %v3567 = vpack.c.b16 %v2671, %v2669
    %v3568 = vpack.c.b16 %v2674, %v2672
    %v3569 = vpack.c.b16 %v2675, %v2673
    %v3570 = vpack.c.b16 %v2678, %v2676
    %v3571 = vpack.c.b16 %v2679, %v2677
    %v3572 = vpack.c.b16 %v2682, %v2680
    %v3573 = vpack.c.b16 %v2683, %v2681
    %v3574 = vpack.c.b16 %v2686, %v2684
    %v3575 = vpack.c.b16 %v2687, %v2685
    %v3576 = vpack.c.b16 %v2690, %v2688
    %v3577 = vpack.c.b16 %v2691, %v2689
    %v3578 = vpack.c.b16 %v2694, %v2692
    %v3579 = vpack.c.b16 %v2695, %v2693
    %v3580 = vpack.c.b16 %v2698, %v2696
    %v3581 = vpack.c.b16 %v2699, %v2697
    %v3582 = vpack.c.b16 %v2702, %v2700
    %v3583 = vpack.c.b16 %v2703, %v2701
    %v3584 = vpack.c.b16 %v2706, %v2704
    %v3585 = vpack.c.b16 %v2707, %v2705
    %v3586 = vpack.c.b16 %v2710, %v2708
    %v3587 = vpack.c.b16 %v2711, %v2709
    %v3588 = vpack.c.b16 %v2714, %v2712
    %v3589 = vpack.c.b16 %v2715, %v2713
    %v3590 = vpack.c.b16 %v2718, %v2716
    %v3591 = vpack.c.b16 %v2719, %v2717
    %v3592 = vpack.c.b16 %v2722, %v2720
    %v3593 = vpack.c.b16 %v2723, %v2721
    %v3594 = vpack.c.b16 %v2726, %v2724
    %v3595 = vpack.c.b16 %v2727, %v2725
    %v3596 = vpack.c.b16 %v2730, %v2728
    %v3597 = vpack.c.b16 %v2731, %v2729
    %v3598 = vpack.c.b16 %v2734, %v2732
    %v3599 = vpack.c.b16 %v2735, %v2733
    %v3600 = vpack.c.b16 %v2738, %v2736
    %v3601 = vpack.c.b16 %v2739, %v2737
    %v3602 = vpack.c.b16 %v2742, %v2740
    %v3603 = vpack.c.b16 %v2743, %v2741
    %v3604 = vpack.c.b16 %v2746, %v2744
    %v3605 = vpack.c.b16 %v2747, %v2745
    %v3606 = vpack.c.b16 %v2750, %v2748
    %v3607 = vpack.c.b16 %v2751, %v2749
    %v3608 = vpack.c.b16 %v2754, %v2752
    %v3609 = vpack.c.b16 %v2755, %v2753
    %v3610 = vpack.c.b16 %v2758, %v2756
    %v3611 = vpack.c.b16 %v2759, %v2757
    %v3612 = vpack.c.b16 %v2762, %v2760
    %v3613 = vpack.c.b16 %v2763, %v2761
    %v3614 = vpack.c.b16 %v2766, %v2764
    %v3615 = vpack.c.b16 %v2767, %v2765
    %v3616 = vpack.c.b16 %v2770, %v2768
    %v3617 = vpack.c.b16 %v2771, %v2769
    %v3618 = vpack.c.b16 %v2774, %v2772
    %v3619 = vpack.c.b16 %v2775, %v2773
    %v3620 = vpack.c.b16 %v2778, %v2776
    %v3621 = vpack.c.b16 %v2779, %v2777
    %v3622 = vpack.c.b16 %v2782, %v2780
    %v3623 = vpack.c.b16 %v2783, %v2781
    %v3624 = vpack.c.b16 %v2786, %v2784
    %v3625 = vpack.c.b16 %v2787, %v2785
    %v3626 = vpack.c.b16 %v2790, %v2788
    %v3627 = vpack.c.b16 %v2791, %v2789
    %v3628 = vpack.c.b16 %v2794, %v2792
    %v3629 = vpack.c.b16 %v2795, %v2793
    %v3630 = vpack.c.b16 %v2798, %v2796
    %v3631 = vpack.c.b16 %v2799, %v2797
    %v3632 = vpack.c.b16 %v2802, %v2800
    %v3633 = vpack.c.b16 %v2803, %v2801
    %v3634 = vpack.c.b16 %v2806, %v2804
    %v3635 = vpack.c.b16 %v2807, %v2805
    %v3636 = vpack.c.b16 %v2810, %v2808
    %v3637 = vpack.c.b16 %v2811, %v2809
    %v3638 = vpack.c.b16 %v2814, %v2812
    %v3639 = vpack.c.b16 %v2815, %v2813
    %v3640 = vpack.c.b16 %v2818, %v2816
    %v3641 = vpack.c.b16 %v2819, %v2817
    %v3642 = vpack.c.b16 %v2822, %v2820
    %v3643 = vpack.c.b16 %v2823, %v2821
    %v3644 = vpack.c.b16 %v2826, %v2824
    %v3645 = vpack.c.b16 %v2827, %v2825
    %v3646 = vpack.c.b16 %v2830, %v2828
    %v3647 = vpack.c.b16 %v2831, %v2829
    %v3648 = vpack.c.b16 %v2834, %v2832
    %v3649 = vpack.c.b16 %v2835, %v2833
    %v3650 = vpack.c.b16 %v2838, %v2836
    %v3651 = vpack.c.b16 %v2839, %v2837
    %v3652 = vpack.c.b16 %v2842, %v2840
    %v3653 = vpack.c.b16 %v2843, %v2841
    %v3654 = vpack.c.b16 %v2846, %v2844
    %v3655 = vpack.c.b16 %v2847, %v2845
    %v3656 = vpack.c.b16 %v2850, %v2848
    %v3657 = vpack.c.b16 %v2851, %v2849
    %v3658 = vpack.c.b16 %v2854, %v2852
    %v3659 = vpack.c.b16 %v2855, %v2853
    %v3660 = vpack.c.b16 %v2858, %v2856
    %v3661 = vpack.c.b16 %v2859, %v2857
    %v3662 = vpack.c.b16 %v2862, %v2860
    %v3663 = vpack.c.b16 %v2863, %v2861
    %v3664 = vpack.c.b16 %v2866, %v2864
    %v3665 = vpack.c.b16 %v2867, %v2865
    %v3666 = vpack.c.b16 %v2870, %v2868
    %v3667 = vpack.c.b16 %v2871, %v2869
    %v3668 = vpack.c.b16 %v2874, %v2872
    %v3669 = vpack.c.b16 %v2875, %v2873
    %v3670 = vpack.c.b16 %v2878, %v2876
    %v3671 = vpack.c.b16 %v2879, %v2877
    %v3672 = vpack.c.b16 %v2882, %v2880
    %v3673 = vpack.c.b16 %v2883, %v2881
    %v3674 = vpack.c.b16 %v2886, %v2884
    %v3675 = vpack.c.b16 %v2887, %v2885
    %v3676 = vpack.c.b16 %v2890, %v2888
    %v3677 = vpack.c.b16 %v2891, %v2889
    %v3678 = vpack.c.b16 %v2894, %v2892
    %v3679 = vpack.c.b16 %v2895, %v2893
    %v3680 = vpack.c.b16 %v2898, %v2896
    %v3681 = vpack.c.b16 %v2899, %v2897
    %v3682 = vpack.c.b16 %v2902, %v2900
    %v3683 = vpack.c.b16 %v2903, %v2901
    %v3684 = vpack.c.b16 %v2906, %v2904
    %v3685 = vpack.c.b16 %v2907, %v2905
    %v3686 = vpack.c.b16 %v2910, %v2908
    %v3687 = vpack.c.b16 %v2911, %v2909
    %v3688 = vpack.c.b16 %v2914, %v2912
    %v3689 = vpack.c.b16 %v2915, %v2913
    %v3690 = vpack.c.b16 %v2918, %v2916
    %v3691 = vpack.c.b16 %v2919, %v2917
    %v3692 = vpack.c.b16 %v2922, %v2920
    %v3693 = vpack.c.b16 %v2923, %v2921
    %v3694 = vpack.c.b16 %v2926, %v2924
    %v3695 = vpack.c.b16 %v2927, %v2925
    %v3696 = vpack.c.b16 %v2930, %v2928
    %v3697 = vpack.c.b16 %v2931, %v2929
    %v3698 = vpack.c.b16 %v2934, %v2932
    %v3699 = vpack.c.b16 %v2935, %v2933
    %v3700 = vpack.c.b16 %v2938, %v2936
    %v3701 = vpack.c.b16 %v2939, %v2937
    %v3702 = vpack.c.b16 %v2942, %v2940
    %v3703 = vpack.c.b16 %v2943, %v2941
    %v3704 = vpack.c.b16 %v2946, %v2944
    %v3705 = vpack.c.b16 %v2947, %v2945
    %v3706 = vpack.c.b16 %v2950, %v2948
    %v3707 = vpack.c.b16 %v2951, %v2949
    %v3708 = vpack.c.b16 %v2954, %v2952
    %v3709 = vpack.c.b16 %v2955, %v2953
    %v3710 = vpack.c.b16 %v2958, %v2956
    %v3711 = vpack.c.b16 %v2959, %v2957
    %v3712 = vpack.c.b16 %v2962, %v2960
    %v3713 = vpack.c.b16 %v2963, %v2961
    %v3714 = vpack.c.b16 %v2966, %v2964
    %v3715 = vpack.c.b16 %v2967, %v2965
    %v3716 = vpack.c.b16 %v2970, %v2968
    %v3717 = vpack.c.b16 %v2971, %v2969
    %v3718 = vpack.c.b16 %v2974, %v2972
    %v3719 = vpack.c.b16 %v2975, %v2973
    %v3720 = vpack.c.b16 %v2978, %v2976
    %v3721 = vpack.c.b16 %v2979, %v2977
    %v3722 = vpack.c.b16 %v2982, %v2980
    %v3723 = vpack.c.b16 %v2983, %v2981
    %v3724 = vpack.c.b16 %v2986, %v2984
    %v3725 = vpack.c.b16 %v2987, %v2985
    %v3726 = vpack.c.b16 %v2990, %v2988
    %v3727 = vpack.c.b16 %v2991, %v2989
    %v3728 = vpack.c.b16 %v2994, %v2992
    %v3729 = vpack.c.b16 %v2995, %v2993
    %v3730 = vpack.c.b16 %v2998, %v2996
    %v3731 = vpack.c.b16 %v2999, %v2997
    %v3732 = vpack.c.b16 %v3002, %v3000
    %v3733 = vpack.c.b16 %v3003, %v3001
    %v3734 = vpack.c.b16 %v3006, %v3004
    %v3735 = vpack.c.b16 %v3007, %v3005
    %v3736 = vpack.c.b16 %v3010, %v3008
    %v3737 = vpack.c.b16 %v3011, %v3009
    %v3738 = vpack.c.b16 %v3014, %v3012
    %v3739 = vpack.c.b16 %v3015, %v3013
    %v3740 = vpack.c.b16 %v3018, %v3016
    %v3741 = vpack.c.b16 %v3019, %v3017
    %v3742 = vpack.c.b16 %v3022, %v3020
    %v3743 = vpack.c.b16 %v3023, %v3021
    %v3744 = vpack.c.b16 %v3026, %v3024
    %v3745 = vpack.c.b16 %v3027, %v3025
    %v3746 = vpack.c.b16 %v3030, %v3028
    %v3747 = vpack.c.b16 %v3031, %v3029
    %v3748 = vpack.c.b16 %v3034, %v3032
    %v3749 = vpack.c.b16 %v3035, %v3033
    %v3750 = vpack.c.b16 %v3038, %v3036
    %v3751 = vpack.c.b16 %v3039, %v3037
    %v3752 = vpack.c.b16 %v3042, %v3040
    %v3753 = vpack.c.b16 %v3043, %v3041
    %v3754 = vpack.c.b16 %v3046, %v3044
    %v3755 = vpack.c.b16 %v3047, %v3045
    %v3756 = vpack.c.b16 %v3050, %v3048
    %v3757 = vpack.c.b16 %v3051, %v3049
    %v3758 = vpack.c.b16 %v3054, %v3052
    %v3759 = vpack.c.b16 %v3055, %v3053
    %4464 = vmatprep.subr.bf16.mxu0 %v3057
    %4465 = vmatpush1.bf16.msra.mxu0 %v3056
    %4466 = vmatprep.subr.bf16.mxu0 %v3059
    %4467 = vmatpush1.bf16.msra.mxu0 %v3058
    %4468 = vmatprep.subr.bf16.mxu0 %v3061
    %4469 = vmatpush1.bf16.msra.mxu0 %v3060
    %4470 = vmatprep.subr.bf16.mxu0 %v3063
    %4471 = vmatpush1.bf16.msra.mxu0 %v3062
    %4472 = vmatprep.subr.bf16.mxu0 %v3065
    %4473 = vmatpush1.bf16.msra.mxu0 %v3064
    %4474 = vmatprep.subr.bf16.mxu0 %v3067
    %4475 = vmatpush1.bf16.msra.mxu0 %v3066
    %4476 = vmatprep.subr.bf16.mxu0 %v3069
    %4477 = vmatpush1.bf16.msra.mxu0 %v3068
    %4478 = vmatprep.subr.bf16.mxu0 %v3071
    %4479 = vmatpush1.bf16.msra.mxu0 %v3070
    %4480 = vmatprep.subr.bf16.mxu0 %v3073
    %4481 = vmatpush1.bf16.msra.mxu0 %v3072
    %4482 = vmatprep.subr.bf16.mxu0 %v3075
    %4483 = vmatpush1.bf16.msra.mxu0 %v3074
    %4484 = vmatprep.subr.bf16.mxu0 %v3077
    %4485 = vmatpush1.bf16.msra.mxu0 %v3076
    %4486 = vmatprep.subr.bf16.mxu0 %v3079
    %4487 = vmatpush1.bf16.msra.mxu0 %v3078
    %4488 = vmatprep.subr.bf16.mxu0 %v3081
    %4489 = vmatpush1.bf16.msra.mxu0 %v3080
    %4490 = vmatprep.subr.bf16.mxu0 %v3083
    %4491 = vmatpush1.bf16.msra.mxu0 %v3082
    %4492 = vmatprep.subr.bf16.mxu0 %v3085
    %4493 = vmatpush1.bf16.msra.mxu0 %v3084
    %4494 = vmatprep.subr.bf16.mxu0 %v3087
    %4495 = vmatpush1.bf16.msra.mxu0 %v3086
    %4496 = vmatprep.mubr.bf16.mxu0 %v857
    %4497 = vmatmul.mubr.bf16.gmra.mrb[0].mxu0 %v856
    %v4498 = vpop.f32.mrb[0].mxu0
    %v4499 = vadd.f32 %v783, %v4498
    %v4500 = vpop.f32.mrb[0].mxu0
    %v4501 = vadd.f32 %v787, %v4500
    %v4502 = vpop.f32.mrb[0].mxu0
    %v4503 = vpop.f32.mrb[0].mxu0
    %4504 = vdwg.mxu0
    %4505 = vmatprep.subr.bf16.mxu0 %v3089
    %4506 = vmatpush1.bf16.msra.mxu0 %v3088
    %4507 = vmatprep.subr.bf16.mxu0 %v3091
    %4508 = vmatpush1.bf16.msra.mxu0 %v3090
    %4509 = vmatprep.subr.bf16.mxu0 %v3093
    %4510 = vmatpush1.bf16.msra.mxu0 %v3092
    %4511 = vmatprep.subr.bf16.mxu0 %v3095
    %4512 = vmatpush1.bf16.msra.mxu0 %v3094
    %4513 = vmatprep.subr.bf16.mxu0 %v3097
    %4514 = vmatpush1.bf16.msra.mxu0 %v3096
    %4515 = vmatprep.subr.bf16.mxu0 %v3099
    %4516 = vmatpush1.bf16.msra.mxu0 %v3098
    %4517 = vmatprep.subr.bf16.mxu0 %v3101
    %4518 = vmatpush1.bf16.msra.mxu0 %v3100
    %4519 = vmatprep.subr.bf16.mxu0 %v3103
    %4520 = vmatpush1.bf16.msra.mxu0 %v3102
    %4521 = vmatprep.subr.bf16.mxu0 %v3105
    %4522 = vmatpush1.bf16.msra.mxu0 %v3104
    %4523 = vmatprep.subr.bf16.mxu0 %v3107
    %4524 = vmatpush1.bf16.msra.mxu0 %v3106
    %4525 = vmatprep.subr.bf16.mxu0 %v3109
    %4526 = vmatpush1.bf16.msra.mxu0 %v3108
    %4527 = vmatprep.subr.bf16.mxu0 %v3111
    %4528 = vmatpush1.bf16.msra.mxu0 %v3110
    %4529 = vmatprep.subr.bf16.mxu0 %v3113
    %4530 = vmatpush1.bf16.msra.mxu0 %v3112
    %4531 = vmatprep.subr.bf16.mxu0 %v3115
    %4532 = vmatpush1.bf16.msra.mxu0 %v3114
    %4533 = vmatprep.subr.bf16.mxu0 %v3117
    %4534 = vmatpush1.bf16.msra.mxu0 %v3116
    %4535 = vmatprep.subr.bf16.mxu0 %v3119
    %4536 = vmatpush1.bf16.msra.mxu0 %v3118
    %4537 = vmatprep.mubr.bf16.mxu0 %v859
    %4538 = vmatmul.mubr.bf16.gmra.mrb[0].mxu0 %v858
    %v4539 = vpop.f32.mrb[0].mxu0
    %v4540 = vadd.f32 %v4499, %v4539
    %v4541 = vpop.f32.mrb[0].mxu0
    %v4542 = vadd.f32 %v4501, %v4541
    %v4543 = vpop.f32.mrb[0].mxu0
    %v4544 = vpop.f32.mrb[0].mxu0
    %4545 = vdwg.mxu0
    %4546 = vmatprep.subr.bf16.mxu0 %v3121
    %4547 = vmatpush1.bf16.msra.mxu0 %v3120
    %4548 = vmatprep.subr.bf16.mxu0 %v3123
    %4549 = vmatpush1.bf16.msra.mxu0 %v3122
    %4550 = vmatprep.subr.bf16.mxu0 %v3125
    %4551 = vmatpush1.bf16.msra.mxu0 %v3124
    %4552 = vmatprep.subr.bf16.mxu0 %v3127
    %4553 = vmatpush1.bf16.msra.mxu0 %v3126
    %4554 = vmatprep.subr.bf16.mxu0 %v3129
    %4555 = vmatpush1.bf16.msra.mxu0 %v3128
    %4556 = vmatprep.subr.bf16.mxu0 %v3131
    %4557 = vmatpush1.bf16.msra.mxu0 %v3130
    %4558 = vmatprep.subr.bf16.mxu0 %v3133
    %4559 = vmatpush1.bf16.msra.mxu0 %v3132
    %4560 = vmatprep.subr.bf16.mxu0 %v3135
    %4561 = vmatpush1.bf16.msra.mxu0 %v3134
    %4562 = vmatprep.subr.bf16.mxu0 %v3137
    %4563 = vmatpush1.bf16.msra.mxu0 %v3136
    %4564 = vmatprep.subr.bf16.mxu0 %v3139
    %4565 = vmatpush1.bf16.msra.mxu0 %v3138
    %4566 = vmatprep.subr.bf16.mxu0 %v3141
    %4567 = vmatpush1.bf16.msra.mxu0 %v3140
    %4568 = vmatprep.subr.bf16.mxu0 %v3143
    %4569 = vmatpush1.bf16.msra.mxu0 %v3142
    %4570 = vmatprep.subr.bf16.mxu0 %v3145
    %4571 = vmatpush1.bf16.msra.mxu0 %v3144
    %4572 = vmatprep.subr.bf16.mxu0 %v3147
    %4573 = vmatpush1.bf16.msra.mxu0 %v3146
    %4574 = vmatprep.subr.bf16.mxu0 %v3149
    %4575 = vmatpush1.bf16.msra.mxu0 %v3148
    %4576 = vmatprep.subr.bf16.mxu0 %v3151
    %4577 = vmatpush1.bf16.msra.mxu0 %v3150
    %4578 = vmatprep.mubr.bf16.mxu0 %v861
    %4579 = vmatmul.mubr.bf16.gmra.mrb[0].mxu0 %v860
    %v4580 = vpop.f32.mrb[0].mxu0
    %v4581 = vadd.f32 %v4540, %v4580
    %v4582 = vpop.f32.mrb[0].mxu0
    %v4583 = vadd.f32 %v4542, %v4582
    %v4584 = vpop.f32.mrb[0].mxu0
    %v4585 = vpop.f32.mrb[0].mxu0
    %4586 = vdwg.mxu0
    %4587 = vmatprep.subr.bf16.mxu0 %v3153
    %4588 = vmatpush1.bf16.msra.mxu0 %v3152
    %4589 = vmatprep.subr.bf16.mxu0 %v3155
    %4590 = vmatpush1.bf16.msra.mxu0 %v3154
    %4591 = vmatprep.subr.bf16.mxu0 %v3157
    %4592 = vmatpush1.bf16.msra.mxu0 %v3156
    %4593 = vmatprep.subr.bf16.mxu0 %v3159
    %4594 = vmatpush1.bf16.msra.mxu0 %v3158
    %4595 = vmatprep.subr.bf16.mxu0 %v3161
    %4596 = vmatpush1.bf16.msra.mxu0 %v3160
    %4597 = vmatprep.subr.bf16.mxu0 %v3163
    %4598 = vmatpush1.bf16.msra.mxu0 %v3162
    %4599 = vmatprep.subr.bf16.mxu0 %v3165
    %4600 = vmatpush1.bf16.msra.mxu0 %v3164
    %4601 = vmatprep.subr.bf16.mxu0 %v3167
    %4602 = vmatpush1.bf16.msra.mxu0 %v3166
    %4603 = vmatprep.subr.bf16.mxu0 %v3169
    %4604 = vmatpush1.bf16.msra.mxu0 %v3168
    %4605 = vmatprep.subr.bf16.mxu0 %v3171
    %4606 = vmatpush1.bf16.msra.mxu0 %v3170
    %4607 = vmatprep.subr.bf16.mxu0 %v3173
    %4608 = vmatpush1.bf16.msra.mxu0 %v3172
    %4609 = vmatprep.subr.bf16.mxu0 %v3175
    %4610 = vmatpush1.bf16.msra.mxu0 %v3174
    %4611 = vmatprep.subr.bf16.mxu0 %v3177
    %4612 = vmatpush1.bf16.msra.mxu0 %v3176
    %4613 = vmatprep.subr.bf16.mxu0 %v3179
    %4614 = vmatpush1.bf16.msra.mxu0 %v3178
    %4615 = vmatprep.subr.bf16.mxu0 %v3181
    %4616 = vmatpush1.bf16.msra.mxu0 %v3180
    %4617 = vmatprep.subr.bf16.mxu0 %v3183
    %4618 = vmatpush1.bf16.msra.mxu0 %v3182
    %4619 = vmatprep.mubr.bf16.mxu0 %v863
    %4620 = vmatmul.mubr.bf16.gmra.mrb[0].mxu0 %v862
    %v4621 = vpop.f32.mrb[0].mxu0
    %v4622 = vadd.f32 %v4581, %v4621
    %v4623 = vpop.f32.mrb[0].mxu0
    %v4624 = vadd.f32 %v4583, %v4623
    %v4625 = vpop.f32.mrb[0].mxu0
    %v4626 = vpop.f32.mrb[0].mxu0
    %4627 = vdwg.mxu0
    %4628 = vmatprep.subr.bf16.mxu0 %v3185
    %4629 = vmatpush1.bf16.msra.mxu0 %v3184
    %4630 = vmatprep.subr.bf16.mxu0 %v3187
    %4631 = vmatpush1.bf16.msra.mxu0 %v3186
    %4632 = vmatprep.subr.bf16.mxu0 %v3189
    %4633 = vmatpush1.bf16.msra.mxu0 %v3188
    %4634 = vmatprep.subr.bf16.mxu0 %v3191
    %4635 = vmatpush1.bf16.msra.mxu0 %v3190
    %4636 = vmatprep.subr.bf16.mxu0 %v3193
    %4637 = vmatpush1.bf16.msra.mxu0 %v3192
    %4638 = vmatprep.subr.bf16.mxu0 %v3195
    %4639 = vmatpush1.bf16.msra.mxu0 %v3194
    %4640 = vmatprep.subr.bf16.mxu0 %v3197
    %4641 = vmatpush1.bf16.msra.mxu0 %v3196
    %4642 = vmatprep.subr.bf16.mxu0 %v3199
    %4643 = vmatpush1.bf16.msra.mxu0 %v3198
    %4644 = vmatprep.subr.bf16.mxu0 %v3201
    %4645 = vmatpush1.bf16.msra.mxu0 %v3200
    %4646 = vmatprep.subr.bf16.mxu0 %v3203
    %4647 = vmatpush1.bf16.msra.mxu0 %v3202
    %4648 = vmatprep.subr.bf16.mxu0 %v3205
    %4649 = vmatpush1.bf16.msra.mxu0 %v3204
    %4650 = vmatprep.subr.bf16.mxu0 %v3207
    %4651 = vmatpush1.bf16.msra.mxu0 %v3206
    %4652 = vmatprep.subr.bf16.mxu0 %v3209
    %4653 = vmatpush1.bf16.msra.mxu0 %v3208
    %4654 = vmatprep.subr.bf16.mxu0 %v3211
    %4655 = vmatpush1.bf16.msra.mxu0 %v3210
    %4656 = vmatprep.subr.bf16.mxu0 %v3213
    %4657 = vmatpush1.bf16.msra.mxu0 %v3212
    %4658 = vmatprep.subr.bf16.mxu0 %v3215
    %4659 = vmatpush1.bf16.msra.mxu0 %v3214
    %4660 = vmatprep.mubr.bf16.mxu0 %v865
    %4661 = vmatmul.mubr.bf16.gmra.mrb[0].mxu0 %v864
    %v4662 = vpop.f32.mrb[0].mxu0
    %v4663 = vadd.f32 %v4622, %v4662
    %v4664 = vpop.f32.mrb[0].mxu0
    %v4665 = vadd.f32 %v4624, %v4664
    %v4666 = vpop.f32.mrb[0].mxu0
    %v4667 = vpop.f32.mrb[0].mxu0
    %4668 = vdwg.mxu0
    %4669 = vmatprep.subr.bf16.mxu0 %v3217
    %4670 = vmatpush1.bf16.msra.mxu0 %v3216
    %4671 = vmatprep.subr.bf16.mxu0 %v3219
    %4672 = vmatpush1.bf16.msra.mxu0 %v3218
    %4673 = vmatprep.subr.bf16.mxu0 %v3221
    %4674 = vmatpush1.bf16.msra.mxu0 %v3220
    %4675 = vmatprep.subr.bf16.mxu0 %v3223
    %4676 = vmatpush1.bf16.msra.mxu0 %v3222
    %4677 = vmatprep.subr.bf16.mxu0 %v3225
    %4678 = vmatpush1.bf16.msra.mxu0 %v3224
    %4679 = vmatprep.subr.bf16.mxu0 %v3227
    %4680 = vmatpush1.bf16.msra.mxu0 %v3226
    %4681 = vmatprep.subr.bf16.mxu0 %v3229
    %4682 = vmatpush1.bf16.msra.mxu0 %v3228
    %4683 = vmatprep.subr.bf16.mxu0 %v3231
    %4684 = vmatpush1.bf16.msra.mxu0 %v3230
    %4685 = vmatprep.subr.bf16.mxu0 %v3233
    %4686 = vmatpush1.bf16.msra.mxu0 %v3232
    %4687 = vmatprep.subr.bf16.mxu0 %v3235
    %4688 = vmatpush1.bf16.msra.mxu0 %v3234
    %4689 = vmatprep.subr.bf16.mxu0 %v3237
    %4690 = vmatpush1.bf16.msra.mxu0 %v3236
    %4691 = vmatprep.subr.bf16.mxu0 %v3239
    %4692 = vmatpush1.bf16.msra.mxu0 %v3238
    %4693 = vmatprep.subr.bf16.mxu0 %v3241
    %4694 = vmatpush1.bf16.msra.mxu0 %v3240
    %4695 = vmatprep.subr.bf16.mxu0 %v3243
    %4696 = vmatpush1.bf16.msra.mxu0 %v3242
    %4697 = vmatprep.subr.bf16.mxu0 %v3245
    %4698 = vmatpush1.bf16.msra.mxu0 %v3244
    %4699 = vmatprep.subr.bf16.mxu0 %v3247
    %4700 = vmatpush1.bf16.msra.mxu0 %v3246
    %4701 = vmatprep.mubr.bf16.mxu0 %v867
    %4702 = vmatmul.mubr.bf16.gmra.mrb[0].mxu0 %v866
    %v4703 = vpop.f32.mrb[0].mxu0
    %v4704 = vadd.f32 %v4663, %v4703
    %v4705 = vpop.f32.mrb[0].mxu0
    %v4706 = vadd.f32 %v4665, %v4705
    %v4707 = vpop.f32.mrb[0].mxu0
    %v4708 = vpop.f32.mrb[0].mxu0
    %4709 = vdwg.mxu0
    %4710 = vmatprep.subr.bf16.mxu0 %v3249
    %4711 = vmatpush1.bf16.msra.mxu0 %v3248
    %4712 = vmatprep.subr.bf16.mxu0 %v3251
    %4713 = vmatpush1.bf16.msra.mxu0 %v3250
    %4714 = vmatprep.subr.bf16.mxu0 %v3253
    %4715 = vmatpush1.bf16.msra.mxu0 %v3252
    %4716 = vmatprep.subr.bf16.mxu0 %v3255
    %4717 = vmatpush1.bf16.msra.mxu0 %v3254
    %4718 = vmatprep.subr.bf16.mxu0 %v3257
    %4719 = vmatpush1.bf16.msra.mxu0 %v3256
    %4720 = vmatprep.subr.bf16.mxu0 %v3259
    %4721 = vmatpush1.bf16.msra.mxu0 %v3258
    %4722 = vmatprep.subr.bf16.mxu0 %v3261
    %4723 = vmatpush1.bf16.msra.mxu0 %v3260
    %4724 = vmatprep.subr.bf16.mxu0 %v3263
    %4725 = vmatpush1.bf16.msra.mxu0 %v3262
    %4726 = vmatprep.subr.bf16.mxu0 %v3265
    %4727 = vmatpush1.bf16.msra.mxu0 %v3264
    %4728 = vmatprep.subr.bf16.mxu0 %v3267
    %4729 = vmatpush1.bf16.msra.mxu0 %v3266
    %4730 = vmatprep.subr.bf16.mxu0 %v3269
    %4731 = vmatpush1.bf16.msra.mxu0 %v3268
    %4732 = vmatprep.subr.bf16.mxu0 %v3271
    %4733 = vmatpush1.bf16.msra.mxu0 %v3270
    %4734 = vmatprep.subr.bf16.mxu0 %v3273
    %4735 = vmatpush1.bf16.msra.mxu0 %v3272
    %4736 = vmatprep.subr.bf16.mxu0 %v3275
    %4737 = vmatpush1.bf16.msra.mxu0 %v3274
    %4738 = vmatprep.subr.bf16.mxu0 %v3277
    %4739 = vmatpush1.bf16.msra.mxu0 %v3276
    %4740 = vmatprep.subr.bf16.mxu0 %v3279
    %4741 = vmatpush1.bf16.msra.mxu0 %v3278
    %4742 = vmatprep.mubr.bf16.mxu0 %v869
    %4743 = vmatmul.mubr.bf16.gmra.mrb[0].mxu0 %v868
    %v4744 = vpop.f32.mrb[0].mxu0
    %v4745 = vadd.f32 %v4704, %v4744
    %v4746 = vpop.f32.mrb[0].mxu0
    %v4747 = vadd.f32 %v4706, %v4746
    %v4748 = vpop.f32.mrb[0].mxu0
    %v4749 = vpop.f32.mrb[0].mxu0
    %4750 = vdwg.mxu0
    %4751 = vmatprep.subr.bf16.mxu0 %v3281
    %4752 = vmatpush1.bf16.msra.mxu0 %v3280
    %4753 = vmatprep.subr.bf16.mxu0 %v3283
    %4754 = vmatpush1.bf16.msra.mxu0 %v3282
    %4755 = vmatprep.subr.bf16.mxu0 %v3285
    %4756 = vmatpush1.bf16.msra.mxu0 %v3284
    %4757 = vmatprep.subr.bf16.mxu0 %v3287
    %4758 = vmatpush1.bf16.msra.mxu0 %v3286
    %4759 = vmatprep.subr.bf16.mxu0 %v3289
    %4760 = vmatpush1.bf16.msra.mxu0 %v3288
    %4761 = vmatprep.subr.bf16.mxu0 %v3291
    %4762 = vmatpush1.bf16.msra.mxu0 %v3290
    %4763 = vmatprep.subr.bf16.mxu0 %v3293
    %4764 = vmatpush1.bf16.msra.mxu0 %v3292
    %4765 = vmatprep.subr.bf16.mxu0 %v3295
    %4766 = vmatpush1.bf16.msra.mxu0 %v3294
    %4767 = vmatprep.subr.bf16.mxu0 %v3297
    %4768 = vmatpush1.bf16.msra.mxu0 %v3296
    %4769 = vmatprep.subr.bf16.mxu0 %v3299
    %4770 = vmatpush1.bf16.msra.mxu0 %v3298
    %4771 = vmatprep.subr.bf16.mxu0 %v3301
    %4772 = vmatpush1.bf16.msra.mxu0 %v3300
    %4773 = vmatprep.subr.bf16.mxu0 %v3303
    %4774 = vmatpush1.bf16.msra.mxu0 %v3302
    %4775 = vmatprep.subr.bf16.mxu0 %v3305
    %4776 = vmatpush1.bf16.msra.mxu0 %v3304
    %4777 = vmatprep.subr.bf16.mxu0 %v3307
    %4778 = vmatpush1.bf16.msra.mxu0 %v3306
    %4779 = vmatprep.subr.bf16.mxu0 %v3309
    %4780 = vmatpush1.bf16.msra.mxu0 %v3308
    %4781 = vmatprep.subr.bf16.mxu0 %v3311
    %4782 = vmatpush1.bf16.msra.mxu0 %v3310
    %4783 = vmatprep.mubr.bf16.mxu0 %v871
    %4784 = vmatmul.mubr.bf16.gmra.mrb[0].mxu0 %v870
    %v4785 = vpop.f32.mrb[0].mxu0
    %v4786 = vadd.f32 %v4745, %v4785
    %v4787 = vpop.f32.mrb[0].mxu0
    %v4788 = vadd.f32 %v4747, %v4787
    %v4789 = vpop.f32.mrb[0].mxu0
    %v4790 = vpop.f32.mrb[0].mxu0
    %4791 = vdwg.mxu0
    %4792 = vmatprep.subr.bf16.mxu0 %v3313
    %4793 = vmatpush1.bf16.msra.mxu0 %v3312
    %4794 = vmatprep.subr.bf16.mxu0 %v3315
    %4795 = vmatpush1.bf16.msra.mxu0 %v3314
    %4796 = vmatprep.subr.bf16.mxu0 %v3317
    %4797 = vmatpush1.bf16.msra.mxu0 %v3316
    %4798 = vmatprep.subr.bf16.mxu0 %v3319
    %4799 = vmatpush1.bf16.msra.mxu0 %v3318
    %4800 = vmatprep.subr.bf16.mxu0 %v3321
    %4801 = vmatpush1.bf16.msra.mxu0 %v3320
    %4802 = vmatprep.subr.bf16.mxu0 %v3323
    %4803 = vmatpush1.bf16.msra.mxu0 %v3322
    %4804 = vmatprep.subr.bf16.mxu0 %v3325
    %4805 = vmatpush1.bf16.msra.mxu0 %v3324
    %4806 = vmatprep.subr.bf16.mxu0 %v3327
    %4807 = vmatpush1.bf16.msra.mxu0 %v3326
    %4808 = vmatprep.subr.bf16.mxu0 %v3329
    %4809 = vmatpush1.bf16.msra.mxu0 %v3328
    %4810 = vmatprep.subr.bf16.mxu0 %v3331
    %4811 = vmatpush1.bf16.msra.mxu0 %v3330
    %4812 = vmatprep.subr.bf16.mxu0 %v3333
    %4813 = vmatpush1.bf16.msra.mxu0 %v3332
    %4814 = vmatprep.subr.bf16.mxu0 %v3335
    %4815 = vmatpush1.bf16.msra.mxu0 %v3334
    %4816 = vmatprep.subr.bf16.mxu0 %v3337
    %4817 = vmatpush1.bf16.msra.mxu0 %v3336
    %4818 = vmatprep.subr.bf16.mxu0 %v3339
    %4819 = vmatpush1.bf16.msra.mxu0 %v3338
    %4820 = vmatprep.subr.bf16.mxu0 %v3341
    %4821 = vmatpush1.bf16.msra.mxu0 %v3340
    %4822 = vmatprep.subr.bf16.mxu0 %v3343
    %4823 = vmatpush1.bf16.msra.mxu0 %v3342
    %4824 = vmatprep.mubr.bf16.mxu0 %v873
    %4825 = vmatmul.mubr.bf16.gmra.mrb[0].mxu0 %v872
    %v4826 = vpop.f32.mrb[0].mxu0
    %v4827 = vadd.f32 %v4786, %v4826
    %v4828 = vpop.f32.mrb[0].mxu0
    %v4829 = vadd.f32 %v4788, %v4828
    %v4830 = vpop.f32.mrb[0].mxu0
    %v4831 = vpop.f32.mrb[0].mxu0
    %4832 = vdwg.mxu0
    %4833 = vmatprep.subr.bf16.mxu0 %v3345
    %4834 = vmatpush1.bf16.msra.mxu0 %v3344
    %4835 = vmatprep.subr.bf16.mxu0 %v3347
    %4836 = vmatpush1.bf16.msra.mxu0 %v3346
    %4837 = vmatprep.subr.bf16.mxu0 %v3349
    %4838 = vmatpush1.bf16.msra.mxu0 %v3348
    %4839 = vmatprep.subr.bf16.mxu0 %v3351
    %4840 = vmatpush1.bf16.msra.mxu0 %v3350
    %4841 = vmatprep.subr.bf16.mxu0 %v3353
    %4842 = vmatpush1.bf16.msra.mxu0 %v3352
    %4843 = vmatprep.subr.bf16.mxu0 %v3355
    %4844 = vmatpush1.bf16.msra.mxu0 %v3354
    %4845 = vmatprep.subr.bf16.mxu0 %v3357
    %4846 = vmatpush1.bf16.msra.mxu0 %v3356
    %4847 = vmatprep.subr.bf16.mxu0 %v3359
    %4848 = vmatpush1.bf16.msra.mxu0 %v3358
    %4849 = vmatprep.subr.bf16.mxu0 %v3361
    %4850 = vmatpush1.bf16.msra.mxu0 %v3360
    %4851 = vmatprep.subr.bf16.mxu0 %v3363
    %4852 = vmatpush1.bf16.msra.mxu0 %v3362
    %4853 = vmatprep.subr.bf16.mxu0 %v3365
    %4854 = vmatpush1.bf16.msra.mxu0 %v3364
    %4855 = vmatprep.subr.bf16.mxu0 %v3367
    %4856 = vmatpush1.bf16.msra.mxu0 %v3366
    %4857 = vmatprep.subr.bf16.mxu0 %v3369
    %4858 = vmatpush1.bf16.msra.mxu0 %v3368
    %4859 = vmatprep.subr.bf16.mxu0 %v3371
    %4860 = vmatpush1.bf16.msra.mxu0 %v3370
    %4861 = vmatprep.subr.bf16.mxu0 %v3373
    %4862 = vmatpush1.bf16.msra.mxu0 %v3372
    %4863 = vmatprep.subr.bf16.mxu0 %v3375
    %4864 = vmatpush1.bf16.msra.mxu0 %v3374
    %4865 = vmatprep.mubr.bf16.mxu0 %v875
    %4866 = vmatmul.mubr.bf16.gmra.mrb[0].mxu0 %v874
    %v4867 = vpop.f32.mrb[0].mxu0
    %v4868 = vadd.f32 %v4827, %v4867
    %v4869 = vpop.f32.mrb[0].mxu0
    %v4870 = vadd.f32 %v4829, %v4869
    %v4871 = vpop.f32.mrb[0].mxu0
    %v4872 = vpop.f32.mrb[0].mxu0
    %4873 = vdwg.mxu0
    %4874 = vmatprep.subr.bf16.mxu0 %v3377
    %4875 = vmatpush1.bf16.msra.mxu0 %v3376
    %4876 = vmatprep.subr.bf16.mxu0 %v3379
    %4877 = vmatpush1.bf16.msra.mxu0 %v3378
    %4878 = vmatprep.subr.bf16.mxu0 %v3381
    %4879 = vmatpush1.bf16.msra.mxu0 %v3380
    %4880 = vmatprep.subr.bf16.mxu0 %v3383
    %4881 = vmatpush1.bf16.msra.mxu0 %v3382
    %4882 = vmatprep.subr.bf16.mxu0 %v3385
    %4883 = vmatpush1.bf16.msra.mxu0 %v3384
    %4884 = vmatprep.subr.bf16.mxu0 %v3387
    %4885 = vmatpush1.bf16.msra.mxu0 %v3386
    %4886 = vmatprep.subr.bf16.mxu0 %v3389
    %4887 = vmatpush1.bf16.msra.mxu0 %v3388
    %4888 = vmatprep.subr.bf16.mxu0 %v3391
    %4889 = vmatpush1.bf16.msra.mxu0 %v3390
    %4890 = vmatprep.subr.bf16.mxu0 %v3393
    %4891 = vmatpush1.bf16.msra.mxu0 %v3392
    %4892 = vmatprep.subr.bf16.mxu0 %v3395
    %4893 = vmatpush1.bf16.msra.mxu0 %v3394
    %4894 = vmatprep.subr.bf16.mxu0 %v3397
    %4895 = vmatpush1.bf16.msra.mxu0 %v3396
    %4896 = vmatprep.subr.bf16.mxu0 %v3399
    %4897 = vmatpush1.bf16.msra.mxu0 %v3398
    %4898 = vmatprep.subr.bf16.mxu0 %v3401
    %4899 = vmatpush1.bf16.msra.mxu0 %v3400
    %4900 = vmatprep.subr.bf16.mxu0 %v3403
    %4901 = vmatpush1.bf16.msra.mxu0 %v3402
    %4902 = vmatprep.subr.bf16.mxu0 %v3405
    %4903 = vmatpush1.bf16.msra.mxu0 %v3404
    %4904 = vmatprep.subr.bf16.mxu0 %v3407
    %4905 = vmatpush1.bf16.msra.mxu0 %v3406
    %4906 = vmatprep.mubr.bf16.mxu0 %v877
    %4907 = vmatmul.mubr.bf16.gmra.mrb[0].mxu0 %v876
    %v4908 = vpop.f32.mrb[0].mxu0
    %v4909 = vadd.f32 %v4868, %v4908
    %v4910 = vpop.f32.mrb[0].mxu0
    %v4911 = vadd.f32 %v4870, %v4910
    %v4912 = vpop.f32.mrb[0].mxu0
    %v4913 = vpop.f32.mrb[0].mxu0
    %4914 = vdwg.mxu0
    %4915 = vmatprep.subr.bf16.mxu0 %v3409
    %4916 = vmatpush1.bf16.msra.mxu0 %v3408
    %4917 = vmatprep.subr.bf16.mxu0 %v3411
    %4918 = vmatpush1.bf16.msra.mxu0 %v3410
    %4919 = vmatprep.subr.bf16.mxu0 %v3413
    %4920 = vmatpush1.bf16.msra.mxu0 %v3412
    %4921 = vmatprep.subr.bf16.mxu0 %v3415
    %4922 = vmatpush1.bf16.msra.mxu0 %v3414
    %4923 = vmatprep.subr.bf16.mxu0 %v3417
    %4924 = vmatpush1.bf16.msra.mxu0 %v3416
    %4925 = vmatprep.subr.bf16.mxu0 %v3419
    %4926 = vmatpush1.bf16.msra.mxu0 %v3418
    %4927 = vmatprep.subr.bf16.mxu0 %v3421
    %4928 = vmatpush1.bf16.msra.mxu0 %v3420
    %4929 = vmatprep.subr.bf16.mxu0 %v3423
    %4930 = vmatpush1.bf16.msra.mxu0 %v3422
    %4931 = vmatprep.subr.bf16.mxu0 %v3425
    %4932 = vmatpush1.bf16.msra.mxu0 %v3424
    %4933 = vmatprep.subr.bf16.mxu0 %v3427
    %4934 = vmatpush1.bf16.msra.mxu0 %v3426
    %4935 = vmatprep.subr.bf16.mxu0 %v3429
    %4936 = vmatpush1.bf16.msra.mxu0 %v3428
    %4937 = vmatprep.subr.bf16.mxu0 %v3431
    %4938 = vmatpush1.bf16.msra.mxu0 %v3430
    %4939 = vmatprep.subr.bf16.mxu0 %v3433
    %4940 = vmatpush1.bf16.msra.mxu0 %v3432
    %4941 = vmatprep.subr.bf16.mxu0 %v3435
    %4942 = vmatpush1.bf16.msra.mxu0 %v3434
    %4943 = vmatprep.subr.bf16.mxu0 %v3437
    %4944 = vmatpush1.bf16.msra.mxu0 %v3436
    %4945 = vmatprep.subr.bf16.mxu0 %v3439
    %4946 = vmatpush1.bf16.msra.mxu0 %v3438
    %4947 = vmatprep.mubr.bf16.mxu0 %v879
    %4948 = vmatmul.mubr.bf16.gmra.mrb[0].mxu0 %v878
    %v4949 = vpop.f32.mrb[0].mxu0
    %v4950 = vadd.f32 %v4909, %v4949
    %v4951 = vpop.f32.mrb[0].mxu0
    %v4952 = vadd.f32 %v4911, %v4951
    %v4953 = vpop.f32.mrb[0].mxu0
    %v4954 = vpop.f32.mrb[0].mxu0
    %4955 = vdwg.mxu0
    %4956 = vmatprep.subr.bf16.mxu0 %v3441
    %4957 = vmatpush1.bf16.msra.mxu0 %v3440
    %4958 = vmatprep.subr.bf16.mxu0 %v3443
    %4959 = vmatpush1.bf16.msra.mxu0 %v3442
    %4960 = vmatprep.subr.bf16.mxu0 %v3445
    %4961 = vmatpush1.bf16.msra.mxu0 %v3444
    %4962 = vmatprep.subr.bf16.mxu0 %v3447
    %4963 = vmatpush1.bf16.msra.mxu0 %v3446
    %4964 = vmatprep.subr.bf16.mxu0 %v3449
    %4965 = vmatpush1.bf16.msra.mxu0 %v3448
    %4966 = vmatprep.subr.bf16.mxu0 %v3451
    %4967 = vmatpush1.bf16.msra.mxu0 %v3450
    %4968 = vmatprep.subr.bf16.mxu0 %v3453
    %4969 = vmatpush1.bf16.msra.mxu0 %v3452
    %4970 = vmatprep.subr.bf16.mxu0 %v3455
    %4971 = vmatpush1.bf16.msra.mxu0 %v3454
    %4972 = vmatprep.subr.bf16.mxu0 %v3457
    %4973 = vmatpush1.bf16.msra.mxu0 %v3456
    %4974 = vmatprep.subr.bf16.mxu0 %v3459
    %4975 = vmatpush1.bf16.msra.mxu0 %v3458
    %4976 = vmatprep.subr.bf16.mxu0 %v3461
    %4977 = vmatpush1.bf16.msra.mxu0 %v3460
    %4978 = vmatprep.subr.bf16.mxu0 %v3463
    %4979 = vmatpush1.bf16.msra.mxu0 %v3462
    %4980 = vmatprep.subr.bf16.mxu0 %v3465
    %4981 = vmatpush1.bf16.msra.mxu0 %v3464
    %4982 = vmatprep.subr.bf16.mxu0 %v3467
    %4983 = vmatpush1.bf16.msra.mxu0 %v3466
    %4984 = vmatprep.subr.bf16.mxu0 %v3469
    %4985 = vmatpush1.bf16.msra.mxu0 %v3468
    %4986 = vmatprep.subr.bf16.mxu0 %v3471
    %4987 = vmatpush1.bf16.msra.mxu0 %v3470
    %4988 = vmatprep.mubr.bf16.mxu0 %v881
    %4989 = vmatmul.mubr.bf16.gmra.mrb[0].mxu0 %v880
    %v4990 = vpop.f32.mrb[0].mxu0
    %v4991 = vadd.f32 %v4950, %v4990
    %v4992 = vpop.f32.mrb[0].mxu0
    %v4993 = vadd.f32 %v4952, %v4992
    %v4994 = vpop.f32.mrb[0].mxu0
    %v4995 = vpop.f32.mrb[0].mxu0
    %4996 = vdwg.mxu0
    %4997 = vmatprep.subr.bf16.mxu0 %v3473
    %4998 = vmatpush1.bf16.msra.mxu0 %v3472
    %4999 = vmatprep.subr.bf16.mxu0 %v3475
    %5000 = vmatpush1.bf16.msra.mxu0 %v3474
    %5001 = vmatprep.subr.bf16.mxu0 %v3477
    %5002 = vmatpush1.bf16.msra.mxu0 %v3476
    %5003 = vmatprep.subr.bf16.mxu0 %v3479
    %5004 = vmatpush1.bf16.msra.mxu0 %v3478
    %5005 = vmatprep.subr.bf16.mxu0 %v3481
    %5006 = vmatpush1.bf16.msra.mxu0 %v3480
    %5007 = vmatprep.subr.bf16.mxu0 %v3483
    %5008 = vmatpush1.bf16.msra.mxu0 %v3482
    %5009 = vmatprep.subr.bf16.mxu0 %v3485
    %5010 = vmatpush1.bf16.msra.mxu0 %v3484
    %5011 = vmatprep.subr.bf16.mxu0 %v3487
    %5012 = vmatpush1.bf16.msra.mxu0 %v3486
    %5013 = vmatprep.subr.bf16.mxu0 %v3489
    %5014 = vmatpush1.bf16.msra.mxu0 %v3488
    %5015 = vmatprep.subr.bf16.mxu0 %v3491
    %5016 = vmatpush1.bf16.msra.mxu0 %v3490
    %5017 = vmatprep.subr.bf16.mxu0 %v3493
    %5018 = vmatpush1.bf16.msra.mxu0 %v3492
    %5019 = vmatprep.subr.bf16.mxu0 %v3495
    %5020 = vmatpush1.bf16.msra.mxu0 %v3494
    %5021 = vmatprep.subr.bf16.mxu0 %v3497
    %5022 = vmatpush1.bf16.msra.mxu0 %v3496
    %5023 = vmatprep.subr.bf16.mxu0 %v3499
    %5024 = vmatpush1.bf16.msra.mxu0 %v3498
    %5025 = vmatprep.subr.bf16.mxu0 %v3501
    %5026 = vmatpush1.bf16.msra.mxu0 %v3500
    %5027 = vmatprep.subr.bf16.mxu0 %v3503
    %5028 = vmatpush1.bf16.msra.mxu0 %v3502
    %5029 = vmatprep.mubr.bf16.mxu0 %v883
    %5030 = vmatmul.mubr.bf16.gmra.mrb[0].mxu0 %v882
    %v5031 = vpop.f32.mrb[0].mxu0
    %v5032 = vadd.f32 %v4991, %v5031
    %v5033 = vpop.f32.mrb[0].mxu0
    %v5034 = vadd.f32 %v4993, %v5033
    %v5035 = vpop.f32.mrb[0].mxu0
    %v5036 = vpop.f32.mrb[0].mxu0
    %5037 = vdwg.mxu0
    %5038 = vmatprep.subr.bf16.mxu0 %v3505
    %5039 = vmatpush1.bf16.msra.mxu0 %v3504
    %5040 = vmatprep.subr.bf16.mxu0 %v3507
    %5041 = vmatpush1.bf16.msra.mxu0 %v3506
    %5042 = vmatprep.subr.bf16.mxu0 %v3509
    %5043 = vmatpush1.bf16.msra.mxu0 %v3508
    %5044 = vmatprep.subr.bf16.mxu0 %v3511
    %5045 = vmatpush1.bf16.msra.mxu0 %v3510
    %5046 = vmatprep.subr.bf16.mxu0 %v3513
    %5047 = vmatpush1.bf16.msra.mxu0 %v3512
    %5048 = vmatprep.subr.bf16.mxu0 %v3515
    %5049 = vmatpush1.bf16.msra.mxu0 %v3514
    %5050 = vmatprep.subr.bf16.mxu0 %v3517
    %5051 = vmatpush1.bf16.msra.mxu0 %v3516
    %5052 = vmatprep.subr.bf16.mxu0 %v3519
    %5053 = vmatpush1.bf16.msra.mxu0 %v3518
    %5054 = vmatprep.subr.bf16.mxu0 %v3521
    %5055 = vmatpush1.bf16.msra.mxu0 %v3520
    %5056 = vmatprep.subr.bf16.mxu0 %v3523
    %5057 = vmatpush1.bf16.msra.mxu0 %v3522
    %5058 = vmatprep.subr.bf16.mxu0 %v3525
    %5059 = vmatpush1.bf16.msra.mxu0 %v3524
    %5060 = vmatprep.subr.bf16.mxu0 %v3527
    %5061 = vmatpush1.bf16.msra.mxu0 %v3526
    %5062 = vmatprep.subr.bf16.mxu0 %v3529
    %5063 = vmatpush1.bf16.msra.mxu0 %v3528
    %5064 = vmatprep.subr.bf16.mxu0 %v3531
    %5065 = vmatpush1.bf16.msra.mxu0 %v3530
    %5066 = vmatprep.subr.bf16.mxu0 %v3533
    %5067 = vmatpush1.bf16.msra.mxu0 %v3532
    %5068 = vmatprep.subr.bf16.mxu0 %v3535
    %5069 = vmatpush1.bf16.msra.mxu0 %v3534
    %5070 = vmatprep.mubr.bf16.mxu0 %v885
    %5071 = vmatmul.mubr.bf16.gmra.mrb[0].mxu0 %v884
    %v5072 = vpop.f32.mrb[0].mxu0
    %v5073 = vadd.f32 %v5032, %v5072
    %v5074 = vpop.f32.mrb[0].mxu0
    %v5075 = vadd.f32 %v5034, %v5074
    %v5076 = vpop.f32.mrb[0].mxu0
    %v5077 = vpop.f32.mrb[0].mxu0
    %5078 = vdwg.mxu0
    %5079 = vmatprep.subr.bf16.mxu0 %v3537
    %5080 = vmatpush1.bf16.msra.mxu0 %v3536
    %5081 = vmatprep.subr.bf16.mxu0 %v3539
    %5082 = vmatpush1.bf16.msra.mxu0 %v3538
    %5083 = vmatprep.subr.bf16.mxu0 %v3541
    %5084 = vmatpush1.bf16.msra.mxu0 %v3540
    %5085 = vmatprep.subr.bf16.mxu0 %v3543
    %5086 = vmatpush1.bf16.msra.mxu0 %v3542
    %5087 = vmatprep.subr.bf16.mxu0 %v3545
    %5088 = vmatpush1.bf16.msra.mxu0 %v3544
    %5089 = vmatprep.subr.bf16.mxu0 %v3547
    %5090 = vmatpush1.bf16.msra.mxu0 %v3546
    %5091 = vmatprep.subr.bf16.mxu0 %v3549
    %5092 = vmatpush1.bf16.msra.mxu0 %v3548
    %5093 = vmatprep.subr.bf16.mxu0 %v3551
    %5094 = vmatpush1.bf16.msra.mxu0 %v3550
    %5095 = vmatprep.subr.bf16.mxu0 %v3553
    %5096 = vmatpush1.bf16.msra.mxu0 %v3552
    %5097 = vmatprep.subr.bf16.mxu0 %v3555
    %5098 = vmatpush1.bf16.msra.mxu0 %v3554
    %5099 = vmatprep.subr.bf16.mxu0 %v3557
    %5100 = vmatpush1.bf16.msra.mxu0 %v3556
    %5101 = vmatprep.subr.bf16.mxu0 %v3559
    %5102 = vmatpush1.bf16.msra.mxu0 %v3558
    %5103 = vmatprep.subr.bf16.mxu0 %v3561
    %5104 = vmatpush1.bf16.msra.mxu0 %v3560
    %5105 = vmatprep.subr.bf16.mxu0 %v3563
    %5106 = vmatpush1.bf16.msra.mxu0 %v3562
    %5107 = vmatprep.subr.bf16.mxu0 %v3565
    %5108 = vmatpush1.bf16.msra.mxu0 %v3564
    %5109 = vmatprep.subr.bf16.mxu0 %v3567
    %5110 = vmatpush1.bf16.msra.mxu0 %v3566
    %5111 = vmatprep.mubr.bf16.mxu0 %v887
    %5112 = vmatmul.mubr.bf16.gmra.mrb[0].mxu0 %v886
    %v5113 = vpop.f32.mrb[0].mxu0
    %v5114 = vadd.f32 %v5073, %v5113
    %v5115 = vpop.f32.mrb[0].mxu0
    %v5116 = vadd.f32 %v5075, %v5115
    %v5117 = vpop.f32.mrb[0].mxu0
    %v5118 = vpop.f32.mrb[0].mxu0
    %5119 = vdwg.mxu0
    %5120 = vmatprep.subr.bf16.mxu0 %v3569
    %5121 = vmatpush1.bf16.msra.mxu0 %v3568
    %5122 = vmatprep.subr.bf16.mxu0 %v3571
    %5123 = vmatpush1.bf16.msra.mxu0 %v3570
    %5124 = vmatprep.subr.bf16.mxu0 %v3573
    %5125 = vmatpush1.bf16.msra.mxu0 %v3572
    %5126 = vmatprep.subr.bf16.mxu0 %v3575
    %5127 = vmatpush1.bf16.msra.mxu0 %v3574
    %5128 = vmatprep.subr.bf16.mxu0 %v3577
    %5129 = vmatpush1.bf16.msra.mxu0 %v3576
    %5130 = vmatprep.subr.bf16.mxu0 %v3579
    %5131 = vmatpush1.bf16.msra.mxu0 %v3578
    %5132 = vmatprep.subr.bf16.mxu0 %v3581
    %5133 = vmatpush1.bf16.msra.mxu0 %v3580
    %5134 = vmatprep.subr.bf16.mxu0 %v3583
    %5135 = vmatpush1.bf16.msra.mxu0 %v3582
    %5136 = vmatprep.subr.bf16.mxu0 %v3585
    %5137 = vmatpush1.bf16.msra.mxu0 %v3584
    %5138 = vmatprep.subr.bf16.mxu0 %v3587
    %5139 = vmatpush1.bf16.msra.mxu0 %v3586
    %5140 = vmatprep.subr.bf16.mxu0 %v3589
    %5141 = vmatpush1.bf16.msra.mxu0 %v3588
    %5142 = vmatprep.subr.bf16.mxu0 %v3591
    %5143 = vmatpush1.bf16.msra.mxu0 %v3590
    %5144 = vmatprep.subr.bf16.mxu0 %v3593
    %5145 = vmatpush1.bf16.msra.mxu0 %v3592
    %5146 = vmatprep.subr.bf16.mxu0 %v3595
    %5147 = vmatpush1.bf16.msra.mxu0 %v3594
    %5148 = vmatprep.subr.bf16.mxu0 %v3597
    %5149 = vmatpush1.bf16.msra.mxu0 %v3596
    %5150 = vmatprep.subr.bf16.mxu0 %v3599
    %5151 = vmatpush1.bf16.msra.mxu0 %v3598
    %5152 = vmatprep.mubr.bf16.mxu0 %v889
    %5153 = vmatmul.mubr.bf16.gmra.mrb[0].mxu0 %v888
    %v5154 = vpop.f32.mrb[0].mxu0
    %v5155 = vadd.f32 %v5114, %v5154
    %v5156 = vpop.f32.mrb[0].mxu0
    %v5157 = vadd.f32 %v5116, %v5156
    %v5158 = vpop.f32.mrb[0].mxu0
    %v5159 = vpop.f32.mrb[0].mxu0
    %5160 = vdwg.mxu0
    %5161 = vmatprep.subr.bf16.mxu0 %v3601
    %5162 = vmatpush1.bf16.msra.mxu0 %v3600
    %5163 = vmatprep.subr.bf16.mxu0 %v3603
    %5164 = vmatpush1.bf16.msra.mxu0 %v3602
    %5165 = vmatprep.subr.bf16.mxu0 %v3605
    %5166 = vmatpush1.bf16.msra.mxu0 %v3604
    %5167 = vmatprep.subr.bf16.mxu0 %v3607
    %5168 = vmatpush1.bf16.msra.mxu0 %v3606
    %5169 = vmatprep.subr.bf16.mxu0 %v3609
    %5170 = vmatpush1.bf16.msra.mxu0 %v3608
    %5171 = vmatprep.subr.bf16.mxu0 %v3611
    %5172 = vmatpush1.bf16.msra.mxu0 %v3610
    %5173 = vmatprep.subr.bf16.mxu0 %v3613
    %5174 = vmatpush1.bf16.msra.mxu0 %v3612
    %5175 = vmatprep.subr.bf16.mxu0 %v3615
    %5176 = vmatpush1.bf16.msra.mxu0 %v3614
    %5177 = vmatprep.subr.bf16.mxu0 %v3617
    %5178 = vmatpush1.bf16.msra.mxu0 %v3616
    %5179 = vmatprep.subr.bf16.mxu0 %v3619
    %5180 = vmatpush1.bf16.msra.mxu0 %v3618
    %5181 = vmatprep.subr.bf16.mxu0 %v3621
    %5182 = vmatpush1.bf16.msra.mxu0 %v3620
    %5183 = vmatprep.subr.bf16.mxu0 %v3623
    %5184 = vmatpush1.bf16.msra.mxu0 %v3622
    %5185 = vmatprep.subr.bf16.mxu0 %v3625
    %5186 = vmatpush1.bf16.msra.mxu0 %v3624
    %5187 = vmatprep.subr.bf16.mxu0 %v3627
    %5188 = vmatpush1.bf16.msra.mxu0 %v3626
    %5189 = vmatprep.subr.bf16.mxu0 %v3629
    %5190 = vmatpush1.bf16.msra.mxu0 %v3628
    %5191 = vmatprep.subr.bf16.mxu0 %v3631
    %5192 = vmatpush1.bf16.msra.mxu0 %v3630
    %5193 = vmatprep.mubr.bf16.mxu0 %v891
    %5194 = vmatmul.mubr.bf16.gmra.mrb[0].mxu0 %v890
    %v5195 = vpop.f32.mrb[0].mxu0
    %v5196 = vadd.f32 %v5155, %v5195
    %v5197 = vpop.f32.mrb[0].mxu0
    %v5198 = vadd.f32 %v5157, %v5197
    %v5199 = vpop.f32.mrb[0].mxu0
    %v5200 = vpop.f32.mrb[0].mxu0
    %5201 = vdwg.mxu0
    %5202 = vmatprep.subr.bf16.mxu0 %v3633
    %5203 = vmatpush1.bf16.msra.mxu0 %v3632
    %5204 = vmatprep.subr.bf16.mxu0 %v3635
    %5205 = vmatpush1.bf16.msra.mxu0 %v3634
    %5206 = vmatprep.subr.bf16.mxu0 %v3637
    %5207 = vmatpush1.bf16.msra.mxu0 %v3636
    %5208 = vmatprep.subr.bf16.mxu0 %v3639
    %5209 = vmatpush1.bf16.msra.mxu0 %v3638
    %5210 = vmatprep.subr.bf16.mxu0 %v3641
    %5211 = vmatpush1.bf16.msra.mxu0 %v3640
    %5212 = vmatprep.subr.bf16.mxu0 %v3643
    %5213 = vmatpush1.bf16.msra.mxu0 %v3642
    %5214 = vmatprep.subr.bf16.mxu0 %v3645
    %5215 = vmatpush1.bf16.msra.mxu0 %v3644
    %5216 = vmatprep.subr.bf16.mxu0 %v3647
    %5217 = vmatpush1.bf16.msra.mxu0 %v3646
    %5218 = vmatprep.subr.bf16.mxu0 %v3649
    %5219 = vmatpush1.bf16.msra.mxu0 %v3648
    %5220 = vmatprep.subr.bf16.mxu0 %v3651
    %5221 = vmatpush1.bf16.msra.mxu0 %v3650
    %5222 = vmatprep.subr.bf16.mxu0 %v3653
    %5223 = vmatpush1.bf16.msra.mxu0 %v3652
    %5224 = vmatprep.subr.bf16.mxu0 %v3655
    %5225 = vmatpush1.bf16.msra.mxu0 %v3654
    %5226 = vmatprep.subr.bf16.mxu0 %v3657
    %5227 = vmatpush1.bf16.msra.mxu0 %v3656
    %5228 = vmatprep.subr.bf16.mxu0 %v3659
    %5229 = vmatpush1.bf16.msra.mxu0 %v3658
    %5230 = vmatprep.subr.bf16.mxu0 %v3661
    %5231 = vmatpush1.bf16.msra.mxu0 %v3660
    %5232 = vmatprep.subr.bf16.mxu0 %v3663
    %5233 = vmatpush1.bf16.msra.mxu0 %v3662
    %5234 = vmatprep.mubr.bf16.mxu0 %v893
    %5235 = vmatmul.mubr.bf16.gmra.mrb[0].mxu0 %v892
    %v5236 = vpop.f32.mrb[0].mxu0
    %v5237 = vadd.f32 %v5196, %v5236
    %v5238 = vpop.f32.mrb[0].mxu0
    %v5239 = vadd.f32 %v5198, %v5238
    %v5240 = vpop.f32.mrb[0].mxu0
    %v5241 = vpop.f32.mrb[0].mxu0
    %5242 = vdwg.mxu0
    %5243 = vmatprep.subr.bf16.mxu0 %v3665
    %5244 = vmatpush1.bf16.msra.mxu0 %v3664
    %5245 = vmatprep.subr.bf16.mxu0 %v3667
    %5246 = vmatpush1.bf16.msra.mxu0 %v3666
    %5247 = vmatprep.subr.bf16.mxu0 %v3669
    %5248 = vmatpush1.bf16.msra.mxu0 %v3668
    %5249 = vmatprep.subr.bf16.mxu0 %v3671
    %5250 = vmatpush1.bf16.msra.mxu0 %v3670
    %5251 = vmatprep.subr.bf16.mxu0 %v3673
    %5252 = vmatpush1.bf16.msra.mxu0 %v3672
    %5253 = vmatprep.subr.bf16.mxu0 %v3675
    %5254 = vmatpush1.bf16.msra.mxu0 %v3674
    %5255 = vmatprep.subr.bf16.mxu0 %v3677
    %5256 = vmatpush1.bf16.msra.mxu0 %v3676
    %5257 = vmatprep.subr.bf16.mxu0 %v3679
    %5258 = vmatpush1.bf16.msra.mxu0 %v3678
    %5259 = vmatprep.subr.bf16.mxu0 %v3681
    %5260 = vmatpush1.bf16.msra.mxu0 %v3680
    %5261 = vmatprep.subr.bf16.mxu0 %v3683
    %5262 = vmatpush1.bf16.msra.mxu0 %v3682
    %5263 = vmatprep.subr.bf16.mxu0 %v3685
    %5264 = vmatpush1.bf16.msra.mxu0 %v3684
    %5265 = vmatprep.subr.bf16.mxu0 %v3687
    %5266 = vmatpush1.bf16.msra.mxu0 %v3686
    %5267 = vmatprep.subr.bf16.mxu0 %v3689
    %5268 = vmatpush1.bf16.msra.mxu0 %v3688
    %5269 = vmatprep.subr.bf16.mxu0 %v3691
    %5270 = vmatpush1.bf16.msra.mxu0 %v3690
    %5271 = vmatprep.subr.bf16.mxu0 %v3693
    %5272 = vmatpush1.bf16.msra.mxu0 %v3692
    %5273 = vmatprep.subr.bf16.mxu0 %v3695
    %5274 = vmatpush1.bf16.msra.mxu0 %v3694
    %5275 = vmatprep.mubr.bf16.mxu0 %v895
    %5276 = vmatmul.mubr.bf16.gmra.mrb[0].mxu0 %v894
    %v5277 = vpop.f32.mrb[0].mxu0
    %v5278 = vadd.f32 %v5237, %v5277
    %v5279 = vpop.f32.mrb[0].mxu0
    %v5280 = vadd.f32 %v5239, %v5279
    %v5281 = vpop.f32.mrb[0].mxu0
    %v5282 = vpop.f32.mrb[0].mxu0
    %5283 = vdwg.mxu0
    %5284 = vmatprep.subr.bf16.mxu0 %v3697
    %5285 = vmatpush1.bf16.msra.mxu0 %v3696
    %5286 = vmatprep.subr.bf16.mxu0 %v3699
    %5287 = vmatpush1.bf16.msra.mxu0 %v3698
    %5288 = vmatprep.subr.bf16.mxu0 %v3701
    %5289 = vmatpush1.bf16.msra.mxu0 %v3700
    %5290 = vmatprep.subr.bf16.mxu0 %v3703
    %5291 = vmatpush1.bf16.msra.mxu0 %v3702
    %5292 = vmatprep.subr.bf16.mxu0 %v3705
    %5293 = vmatpush1.bf16.msra.mxu0 %v3704
    %5294 = vmatprep.subr.bf16.mxu0 %v3707
    %5295 = vmatpush1.bf16.msra.mxu0 %v3706
    %5296 = vmatprep.subr.bf16.mxu0 %v3709
    %5297 = vmatpush1.bf16.msra.mxu0 %v3708
    %5298 = vmatprep.subr.bf16.mxu0 %v3711
    %5299 = vmatpush1.bf16.msra.mxu0 %v3710
    %5300 = vmatprep.subr.bf16.mxu0 %v3713
    %5301 = vmatpush1.bf16.msra.mxu0 %v3712
    %5302 = vmatprep.subr.bf16.mxu0 %v3715
    %5303 = vmatpush1.bf16.msra.mxu0 %v3714
    %5304 = vmatprep.subr.bf16.mxu0 %v3717
    %5305 = vmatpush1.bf16.msra.mxu0 %v3716
    %5306 = vmatprep.subr.bf16.mxu0 %v3719
    %5307 = vmatpush1.bf16.msra.mxu0 %v3718
    %5308 = vmatprep.subr.bf16.mxu0 %v3721
    %5309 = vmatpush1.bf16.msra.mxu0 %v3720
    %5310 = vmatprep.subr.bf16.mxu0 %v3723
    %5311 = vmatpush1.bf16.msra.mxu0 %v3722
    %5312 = vmatprep.subr.bf16.mxu0 %v3725
    %5313 = vmatpush1.bf16.msra.mxu0 %v3724
    %5314 = vmatprep.subr.bf16.mxu0 %v3727
    %5315 = vmatpush1.bf16.msra.mxu0 %v3726
    %5316 = vmatprep.mubr.bf16.mxu0 %v897
    %5317 = vmatmul.mubr.bf16.gmra.mrb[0].mxu0 %v896
    %v5318 = vpop.f32.mrb[0].mxu0
    %v5319 = vadd.f32 %v5278, %v5318
    %v5320 = vpop.f32.mrb[0].mxu0
    %v5321 = vadd.f32 %v5280, %v5320
    %v5322 = vpop.f32.mrb[0].mxu0
    %v5323 = vpop.f32.mrb[0].mxu0
    %5324 = vdwg.mxu0
    %5325 = vmatprep.subr.bf16.mxu0 %v3729
    %5326 = vmatpush1.bf16.msra.mxu0 %v3728
    %5327 = vmatprep.subr.bf16.mxu0 %v3731
    %5328 = vmatpush1.bf16.msra.mxu0 %v3730
    %5329 = vmatprep.subr.bf16.mxu0 %v3733
    %5330 = vmatpush1.bf16.msra.mxu0 %v3732
    %5331 = vmatprep.subr.bf16.mxu0 %v3735
    %5332 = vmatpush1.bf16.msra.mxu0 %v3734
    %5333 = vmatprep.subr.bf16.mxu0 %v3737
    %5334 = vmatpush1.bf16.msra.mxu0 %v3736
    %5335 = vmatprep.subr.bf16.mxu0 %v3739
    %5336 = vmatpush1.bf16.msra.mxu0 %v3738
    %5337 = vmatprep.subr.bf16.mxu0 %v3741
    %5338 = vmatpush1.bf16.msra.mxu0 %v3740
    %5339 = vmatprep.subr.bf16.mxu0 %v3743
    %5340 = vmatpush1.bf16.msra.mxu0 %v3742
    %5341 = vmatprep.subr.bf16.mxu0 %v3745
    %5342 = vmatpush1.bf16.msra.mxu0 %v3744
    %5343 = vmatprep.subr.bf16.mxu0 %v3747
    %5344 = vmatpush1.bf16.msra.mxu0 %v3746
    %5345 = vmatprep.subr.bf16.mxu0 %v3749
    %5346 = vmatpush1.bf16.msra.mxu0 %v3748
    %5347 = vmatprep.subr.bf16.mxu0 %v3751
    %5348 = vmatpush1.bf16.msra.mxu0 %v3750
    %5349 = vmatprep.subr.bf16.mxu0 %v3753
    %5350 = vmatpush1.bf16.msra.mxu0 %v3752
    %5351 = vmatprep.subr.bf16.mxu0 %v3755
    %5352 = vmatpush1.bf16.msra.mxu0 %v3754
    %5353 = vmatprep.subr.bf16.mxu0 %v3757
    %5354 = vmatpush1.bf16.msra.mxu0 %v3756
    %5355 = vmatprep.subr.bf16.mxu0 %v3759
    %5356 = vmatpush1.bf16.msra.mxu0 %v3758
    %5357 = vmatprep.mubr.bf16.mxu0 %v899
    %5358 = vmatmul.mubr.bf16.gmra.mrb[0].mxu0 %v898
    %v5359 = vpop.f32.mrb[0].mxu0
    %v5360 = vadd.f32 %v5319, %v5359
    %v5361 = vpop.f32.mrb[0].mxu0
    %v5362 = vadd.f32 %v5321, %v5361
    %v5363 = vpop.f32.mrb[0].mxu0
    %v5364 = vpop.f32.mrb[0].mxu0
    %5365 = vdwg.mxu0
    %v5366 = vmax.f32 %v5360, 0.0
    %v5367 = vmax.f32 %v5362, 0.0
    %v5368 = vmax.f32 %v5366, %v5367
    %5369 = vmax.xlane.f32.xlu0 %v5368
    %v5370 = vpop.xlane.xlu0 %5369
    %v5371 = vsub.f32 %v5366, %v5370
    %v5372 = vsub.f32 %v5367, %v5370
    %v5373 = vmul.f32 %v5371, 1.442695
    %v5374 = vpow.pop %v5373
    %v5375 = vmul.f32 %v5372, 1.442695
    %v5376 = vpow.pop %v5375
    %v5377 = vadd.f32 %v5374, %v5376
    %5378 = vadd.xlane.f32.xlu0 %v5377
    %v5379 = vpop.xlane.xlu0 %5378
    %v5380 = vlog2.pop %v5379
    %v5381 = vmul.f32 %v5380, 0.6931472
    %v5382 = vsub.f32 %v5371, %v5381
    %v5383 = vsub.f32 %v5372, %v5381
    %5384 = vst [vmem:[#allocation8] sm:$0xff] %v5382
    %5385 = vst [vmem:[#allocation8 + $0x8] sm:$0xff] %v5383
    // Predicated region
    $region26: #{tpu_custom_call.1} parent=1 // pred_check
      _
    $region27: #{tpu_custom_call.1} parent=1 // pred_check_branch
      %5387 = sbr.rel (0) target = $region29
    $region28: #{tpu_custom_call.1} parent=1 // pred_region
      %s5389 = ssub.s32 256, 256
      %5390 = vsyncadd [#allocation4], %s5389
      %s5392 = sshll.u32 [#allocation8], 4
      %s5393 = int_to_ptr.vmem [resolvable:$true] %s5392
      %5395 = dma.vmem_to_hbm [thread:$0]  %s5393, 256, %s3, [#allocation4]
    $region29: #{tpu_custom_call.1} parent=1 // pred_fallthru
      _
    // Predicated region
    $region30: #{tpu_custom_call.1} parent=1 // pred_check
      _
    $region31: #{tpu_custom_call.1} parent=1 // pred_check_branch
      %5397 = sbr.rel (0) target = $region33
    $region32: #{tpu_custom_call.1} parent=1 // pred_region
      %5398 = dma.done [#allocation4], 256
    $region33: #{tpu_custom_call.1} parent=1 // pred_fallthru
      _
    %5399 = vsyncpa [#allocation3], 1
    %5400 = vsyncpa [#allocation6], 1
    %5401 = vsyncpa [#allocation4], 1

</llo_original>
